<compile_context>
chip_gen: v5e
topology: v5e:2x2
jax: 0.10.0
libtpu: 0.0.40
codegen_flags: <defaults>
</compile_context>

<pallas_src>
import jax
import jax.numpy as jnp
from jax.experimental import pallas as pl
from jax.experimental.pallas import tpu as pltpu

EPS = 1e-5


def fused_add_relu_conv1x1_bn_kernel(xa_ref, xb_ref, w_ref, gamma_ref, beta_ref,
                                     o_ref, acc_ref):
    # xa_ref, xb_ref : (TK, P)   f32   residual-branch input tiles, channel-major
    # w_ref          : (Cout, TK) bf16  1x1-conv weight tile
    # gamma_ref/beta_ref : (Cout, 1) f32 BatchNorm affine params (resident)
    # o_ref          : (Cout, P)  output tile (resident across the grid)
    # acc_ref        : (Cout, P)  f32 VMEM accumulator scratch
    k = pl.program_id(0)

    @pl.when(k == 0)
    def _():
        acc_ref[...] = jnp.zeros_like(acc_ref)

    # add + ReLU, cast to bf16 only for the MXU operands
    x = jnp.maximum(xa_ref[...] + xb_ref[...], 0.0).astype(jnp.bfloat16)
    # partial 1x1 conv == matmul over this Cin chunk, f32 accumulation
    acc_ref[...] += jnp.dot(w_ref[...], x, preferred_element_type=jnp.float32)

    @pl.when(k == pl.num_programs(0) - 1)
    def _():
        y = acc_ref[...]                                                # (Cout, P)
        # BatchNorm2d (training mode): batch statistics over P per output
        # channel, computed in one pass via sum / sum-of-squares (biased var).
        inv_p = jnp.float32(1.0 / y.shape[-1])
        s1 = jnp.sum(y, axis=-1, keepdims=True)                         # (Cout, 1)
        s2 = jnp.sum(y * y, axis=-1, keepdims=True)                     # (Cout, 1)
        mean = s1 * inv_p
        var = jnp.maximum(s2 * inv_p - mean * mean, 0.0)
        # Fold normalization + affine into per-channel scale/shift.
        scale = gamma_ref[...] * jax.lax.rsqrt(var + EPS)               # (Cout, 1)
        shift = beta_ref[...] - mean * scale                            # (Cout, 1)
        o_ref[...] = (y * scale + shift).astype(o_ref.dtype)


def fused_forward(x388, x380, weight, gamma, beta, out_dtype=jnp.float32):
    """x388, x380: (N, Cin, H, W) NCHW float32. weight: (Cout, Cin, 1, 1)."""
    n, cin, h, w = x388.shape
    cout = weight.shape[0]
    p = n * h * w

    # NCHW -> (Cin, N*H*W). For N == 1 this is a pure reshape (no data movement).
    if n == 1:
        xa = x388.reshape(cin, p)
        xb = x380.reshape(cin, p)
    else:
        # TODO(synk): for large N, tile over P with a two-phase BN instead of a
        # single resident (Cout, P) accumulator; size tiles for v7x's 64 MiB VMEM.
        xa = jnp.transpose(x388.reshape(n, cin, h * w), (1, 0, 2)).reshape(cin, p)
        xb = jnp.transpose(x380.reshape(n, cin, h * w), (1, 0, 2)).reshape(cin, p)

    w2d = weight.reshape(cout, cin).astype(jnp.bfloat16)                 # (Cout, Cin)
    g2d = gamma.reshape(cout, 1).astype(jnp.float32)
    b2d = beta.reshape(cout, 1).astype(jnp.float32)

    # Shallow pipeline over Cin: 2 steps of TK=512 for Cin=1024; fall back to a
    # single step if Cin is not divisible (tiny problem either way).
    tk = 512 if (cin % 512 == 0 and cin >= 512) else cin
    nsteps = cin // tk

    out_bytes = cout * p * jnp.dtype(out_dtype).itemsize
    cost = pl.CostEstimate(
        flops=2 * p * cin * cout,
        transcendentals=cout,  # rsqrt per channel
        bytes_accessed=2 * cin * p * 4 + cout * cin * 2 + out_bytes + 2 * cout * 4,
    )

    out_cp = pl.pallas_call(
        fused_add_relu_conv1x1_bn_kernel,
        out_shape=jax.ShapeDtypeStruct((cout, p), out_dtype),
        grid=(nsteps,),
        in_specs=[
            pl.BlockSpec((tk, p), lambda k: (k, 0)),       # xa chunk
            pl.BlockSpec((tk, p), lambda k: (k, 0)),       # xb chunk
            pl.BlockSpec((cout, tk), lambda k: (0, k)),    # weight chunk streams too
            pl.BlockSpec((cout, 1), lambda k: (0, 0)),     # gamma (resident)
            pl.BlockSpec((cout, 1), lambda k: (0, 0)),     # beta  (resident)
        ],
        out_specs=pl.BlockSpec((cout, p), lambda k: (0, 0)),
        scratch_shapes=[pltpu.VMEM((cout, p), jnp.float32)],
        compiler_params=pltpu.CompilerParams(
            dimension_semantics=("arbitrary",),
            vmem_limit_bytes=32 << 20,
        ),
        cost_estimate=cost,
    )(xa, xb, w2d, g2d, b2d)

    # (Cout, N*H*W) -> NCHW
    if n == 1:
        return out_cp.reshape(1, cout, h, w)
    return jnp.transpose(out_cp.reshape(cout, n, h, w), (1, 0, 2, 3))


def reference_forward(x388, x380, weight, gamma, beta):
    """Pure-JAX f32 reference of the PyTorch module's forward (training-mode BN)."""
    n, cin, h, w = x388.shape
    cout = weight.shape[0]
    x = jnp.maximum(x388 + x380, 0.0).reshape(n, cin, h * w)
    wm = weight.reshape(cout, cin)
    y = jnp.einsum("oc,ncp->nop", wm, x)                                 # (N, Cout, P)
    mean = jnp.mean(y, axis=(0, 2), keepdims=True)
    var = jnp.mean((y - mean) ** 2, axis=(0, 2), keepdims=True)
    yh = (y - mean) * jax.lax.rsqrt(var + EPS)
    out = yh * gamma.reshape(1, cout, 1) + beta.reshape(1, cout, 1)
    return out.reshape(n, cout, h, w)


if __name__ == "__main__":
    key = jax.random.PRNGKey(0)
    k1, k2, k3 = jax.random.split(key, 3)

    N, CIN, H, W = 1, 1024, 14, 14
    COUT = 256

    x388 = jax.random.normal(k1, (N, CIN, H, W), dtype=jnp.float32)
    x380 = jax.random.normal(k2, (N, CIN, H, W), dtype=jnp.float32)

    # Conv2d(1024, 256, 1, bias=False) weight, deterministic kaiming-like init.
    fan_in = CIN
    weight = jax.random.normal(k3, (COUT, CIN, 1, 1), dtype=jnp.float32) * (2.0 / fan_in) ** 0.5
    # BatchNorm2d(256) default affine init: gamma=1, beta=0.
    gamma = jnp.ones((COUT,), dtype=jnp.float32)
    beta = jnp.zeros((COUT,), dtype=jnp.float32)

    out = fused_forward(x388, x380, weight, gamma, beta)
    jax.block_until_ready(out)
    assert out.shape == (N, COUT, H, W)
    assert out.dtype == jnp.float32

    # Correctness check vs f32 reference (tolerance widened for the intentional
    # bf16 MXU-operand precision choice).
    ref = reference_forward(x388, x380, weight, gamma, beta)
    assert jnp.allclose(out, ref, atol=5e-2, rtol=5e-2), float(jnp.max(jnp.abs(out - ref)))

    print("KERNEL_OK")
</pallas_src>

<mosaic_0001>
module attributes {stable_mosaic.version = 11 : i64} {
  func.func @fused_add_relu_conv1x1_bn_kernel(%arg0: i32, %arg1: memref<512x196xf32, #tpu.memory_space<vmem>>, %arg2: memref<512x196xf32, #tpu.memory_space<vmem>>, %arg3: memref<256x512xbf16, #tpu.memory_space<vmem>>, %arg4: memref<256x1xf32, #tpu.memory_space<vmem>>, %arg5: memref<256x1xf32, #tpu.memory_space<vmem>>, %arg6: memref<256x196xf32, #tpu.memory_space<vmem>>, %arg7: memref<256x196xf32, #tpu.memory_space<vmem>>) attributes {dimension_semantics = [#tpu.dimension_semantics<arbitrary>], iteration_bounds = array<i64: 2>, scalar_prefetch = 0 : i64, scratch_operands = 1 : i64, tpu.core_type = #tpu.core_type<tc>, window_params = [{transform_indices = @transform_0, window_bounds = array<i64: 512, 196>}, {transform_indices = @transform_1, window_bounds = array<i64: 512, 196>}, {transform_indices = @transform_2, window_bounds = array<i64: 256, 512>}, {pipeline_mode = #tpu.pipeline_mode<synchronous>, transform_indices = @transform_3, window_bounds = array<i64: 256, 1>}, {pipeline_mode = #tpu.pipeline_mode<synchronous>, transform_indices = @transform_4, window_bounds = array<i64: 256, 1>}, {pipeline_mode = #tpu.pipeline_mode<synchronous>, transform_indices = @transform_5, window_bounds = array<i64: 256, 196>}]} {
    %c0_i32 = arith.constant 0 : i32
    %0 = arith.cmpi eq, %arg0, %c0_i32 : i32
    %1 = arith.extui %0 : i1 to i32
    %c0_i32_0 = arith.constant 0 : i32
    %2 = arith.cmpi ne, %1, %c0_i32_0 : i32
    scf.if %2 {
      %cst_12 = arith.constant 0.000000e+00 : f32
      %17 = vector.broadcast %cst_12 : f32 to vector<256x196xf32>
      %c0_13 = arith.constant 0 : index
      %c0_14 = arith.constant 0 : index
      %18 = vector.load %arg7[%c0_13, %c0_14] : memref<256x196xf32, #tpu.memory_space<vmem>>, vector<256x196xf32>
      tpu.vector_store %arg7[%c0_13, %c0_14], %17 {strides = array<i32>} : memref<256x196xf32, #tpu.memory_space<vmem>>, vector<256x196xf32>,
    } else {
    }
    %c0 = arith.constant 0 : index
    %c0_1 = arith.constant 0 : index
    %3 = vector.load %arg1[%c0, %c0_1] : memref<512x196xf32, #tpu.memory_space<vmem>>, vector<512x196xf32>
    %c0_2 = arith.constant 0 : index
    %c0_3 = arith.constant 0 : index
    %4 = vector.load %arg2[%c0_2, %c0_3] : memref<512x196xf32, #tpu.memory_space<vmem>>, vector<512x196xf32>
    %5 = arith.addf %3, %4 : vector<512x196xf32>
    %cst = arith.constant 0.000000e+00 : f32
    %6 = vector.broadcast %cst : f32 to vector<512x196xf32>
    %7 = arith.maximumf %5, %6 : vector<512x196xf32>
    %8 = arith.truncf %7 : vector<512x196xf32> to vector<512x196xbf16>
    %c0_4 = arith.constant 0 : index
    %c0_5 = arith.constant 0 : index
    %9 = vector.load %arg7[%c0_4, %c0_5] : memref<256x196xf32, #tpu.memory_space<vmem>>, vector<256x196xf32>
    %c0_6 = arith.constant 0 : index
    %c0_7 = arith.constant 0 : index
    %10 = vector.load %arg3[%c0_6, %c0_7] : memref<256x512xbf16, #tpu.memory_space<vmem>>, vector<256x512xbf16>
    %cst_8 = arith.constant dense<0.000000e+00> : vector<256x196xf32>
    %11 = tpu.matmul %10, %8, %cst_8 {dimension_numbers = #tpu.dot_dimension_numbers<[1], [0], [0], [1], [0, 0, 1, 1], [], []>} : vector<256x512xbf16>, vector<512x196xbf16>, vector<256x196xf32> -> vector<256x196xf32>
    %12 = arith.addf %9, %11 : vector<256x196xf32>
    %c0_9 = arith.constant 0 : index
    %c0_10 = arith.constant 0 : index
    %13 = vector.load %arg7[%c0_9, %c0_10] : memref<256x196xf32, #tpu.memory_space<vmem>>, vector<256x196xf32>
    tpu.vector_store %arg7[%c0_9, %c0_10], %12 {strides = array<i32>} : memref<256x196xf32, #tpu.memory_space<vmem>>, vector<256x196xf32>,
    %c1_i32 = arith.constant 1 : i32
    %14 = arith.cmpi eq, %arg0, %c1_i32 : i32
    %15 = arith.extui %14 : i1 to i32
    %c0_i32_11 = arith.constant 0 : i32
    %16 = arith.cmpi ne, %15, %c0_i32_11 : i32
    scf.if %16 {
      %c0_12 = arith.constant 0 : index
      %c0_13 = arith.constant 0 : index
      %17 = vector.load %arg7[%c0_12, %c0_13] : memref<256x196xf32, #tpu.memory_space<vmem>>, vector<256x196xf32>
      %cst_14 = arith.constant dense<0.000000e+00> : vector<256xf32>
      %18 = vector.multi_reduction <add>, %17, %cst_14 [1] : vector<256x196xf32> to vector<256xf32>
      %19 = vector.shape_cast %18 : vector<256xf32> to vector<256x1xf32>
      %20 = arith.mulf %17, %17 : vector<256x196xf32>
      %cst_15 = arith.constant dense<0.000000e+00> : vector<256xf32>
      %21 = vector.multi_reduction <add>, %20, %cst_15 [1] : vector<256x196xf32> to vector<256xf32>
      %22 = vector.shape_cast %21 : vector<256xf32> to vector<256x1xf32>
      %cst_16 = arith.constant 0.00510204071 : f32
      %23 = vector.broadcast %cst_16 : f32 to vector<256x1xf32>
      %24 = arith.mulf %19, %23 : vector<256x1xf32>
      %cst_17 = arith.constant 0.00510204071 : f32
      %25 = vector.broadcast %cst_17 : f32 to vector<256x1xf32>
      %26 = arith.mulf %22, %25 : vector<256x1xf32>
      %27 = arith.mulf %24, %24 : vector<256x1xf32>
      %28 = arith.subf %26, %27 : vector<256x1xf32>
      %cst_18 = arith.constant 0.000000e+00 : f32
      %29 = vector.broadcast %cst_18 : f32 to vector<256x1xf32>
      %30 = arith.maximumf %28, %29 : vector<256x1xf32>
      %c0_19 = arith.constant 0 : index
      %c0_20 = arith.constant 0 : index
      %31 = vector.load %arg4[%c0_19, %c0_20] : memref<256x1xf32, #tpu.memory_space<vmem>>, vector<256x1xf32>
      %cst_21 = arith.constant 9.99999974E-6 : f32
      %32 = vector.broadcast %cst_21 : f32 to vector<256x1xf32>
      %33 = arith.addf %30, %32 : vector<256x1xf32>
      %34 = math.rsqrt %33 : vector<256x1xf32>
      %35 = arith.mulf %31, %34 : vector<256x1xf32>
      %c0_22 = arith.constant 0 : index
      %c0_23 = arith.constant 0 : index
      %36 = vector.load %arg5[%c0_22, %c0_23] : memref<256x1xf32, #tpu.memory_space<vmem>>, vector<256x1xf32>
      %37 = arith.mulf %24, %35 : vector<256x1xf32>
      %38 = arith.subf %36, %37 : vector<256x1xf32>
      %39 = vector.broadcast %35 : vector<256x1xf32> to vector<256x196xf32>
      %40 = arith.mulf %17, %39 : vector<256x196xf32>
      %41 = vector.broadcast %38 : vector<256x1xf32> to vector<256x196xf32>
      %42 = arith.addf %40, %41 : vector<256x196xf32>
      %c0_24 = arith.constant 0 : index
      %c0_25 = arith.constant 0 : index
      %43 = vector.load %arg6[%c0_24, %c0_25] : memref<256x196xf32, #tpu.memory_space<vmem>>, vector<256x196xf32>
      tpu.vector_store %arg6[%c0_24, %c0_25], %42 {strides = array<i32>} : memref<256x196xf32, #tpu.memory_space<vmem>>, vector<256x196xf32>,
    } else {
    }
    return
  }
  func.func @transform_0(%arg0: i32) -> (i32, i32) {
    %c0_i32 = arith.constant 0 : i32
    %c0_i32_0 = arith.constant 0 : i32
    return %arg0, %c0_i32 : i32, i32
  }
  func.func @transform_1(%arg0: i32) -> (i32, i32) {
    %c0_i32 = arith.constant 0 : i32
    %c0_i32_0 = arith.constant 0 : i32
    return %arg0, %c0_i32 : i32, i32
  }
  func.func @transform_2(%arg0: i32) -> (i32, i32) {
    %c0_i32 = arith.constant 0 : i32
    %c0_i32_0 = arith.constant 0 : i32
    return %c0_i32, %arg0 : i32, i32
  }
  func.func @transform_3(%arg0: i32) -> (i32, i32) {
    %c0_i32 = arith.constant 0 : i32
    %c0_i32_0 = arith.constant 0 : i32
    %c0_i32_1 = arith.constant 0 : i32
    return %c0_i32, %c0_i32_0 : i32, i32
  }
  func.func @transform_4(%arg0: i32) -> (i32, i32) {
    %c0_i32 = arith.constant 0 : i32
    %c0_i32_0 = arith.constant 0 : i32
    %c0_i32_1 = arith.constant 0 : i32
    return %c0_i32, %c0_i32_0 : i32, i32
  }
  func.func @transform_5(%arg0: i32) -> (i32, i32) {
    %c0_i32 = arith.constant 0 : i32
    %c0_i32_0 = arith.constant 0 : i32
    %c0_i32_1 = arith.constant 0 : i32
    return %c0_i32, %c0_i32_0 : i32, i32
  }
}

</mosaic_0001>

<llo_original>
// kernel: tpu_custom_call.1
$region0: #{tpu_custom_call.1}
  #allocation0 [shape = 'u32[]', space=smem, size = 0x4, offset = 0x4, fixed_abs, tag = 'smem constant byte address 0x4 - core index']
  #allocation1 [shape = 'u32[72,128]{1,0:T(1,128)}', space=vmem, size = 0x9000, scoped, tag = 'internal scratch']
  #allocation2 [shape = 'f32[256,196]{1,0:T(8,128)}', space=vmem, size = 0x40000, scoped, tag = 'scratch operand']
  %s0 = inlined_call_operand.vmem [shape: f32[1024,196], index: 0, kind: input, shape index: {}]
  %s1 = inlined_call_operand.vmem [shape: f32[1024,196], index: 1, kind: input, shape index: {}]
  %s2 = inlined_call_operand.vmem [shape: bf16[256,1024], index: 2, kind: input, shape index: {}]
  %s3 = inlined_call_operand.vmem [shape: f32[256,1], index: 3, kind: input, shape index: {}]
  %s4 = inlined_call_operand.vmem [shape: f32[256,1], index: 4, kind: input, shape index: {}]
  %s5 = inlined_call_operand.vmem [shape: f32[256,196], index: 5, kind: output, shape index: {}]
  %s6 = sld [smem:[#allocation0]]
  $region84: #{tpu_custom_call.1} parent=0
    _
  %s8 = ssub.s32 1, %s6
  %s9 = scalar_select 0, %s8, %s6
  $region1: #{tpu_custom_call.1} parent=0
    #allocation3 [shape = 'u8[524288]{0}', space=vmem, size = 0x80000, scoped, tag = 'input window, operand 2']
    loop: start=0, step=1, limit=4
    $region2: #{tpu_custom_call.1} parent=1 // loop_pre_header
      _
    $region3: #{tpu_custom_call.1} parent=1 // loop_header
      %s11 = sphi 0, %s15
      %p12 = scmp.ge.s32.totalorder %s11, 4
      %s21 = sphi 0, %s23
      %s24 = sphi 0, %s21
      %s25 = sphi 0, %s24
      %s41 = sphi 0, %s25
      %s47 = sphi 0, %s49
      %s50 = sphi 0, %s47
      %s51 = sphi 0, %s50
      %s67 = sphi 0, %s51
      %s73 = sphi 0, %s75
      %s76 = sphi 0, %s73
      %s77 = sphi 0, %s76
      %s93 = sphi 0, %s77
      %s97 = sphi 0, %s97
      %s99 = sphi 0, %s97
      %s100 = sphi 0, %s99
      %s114 = sphi 0, %s100
      %s118 = sphi 0, %s118
      %s120 = sphi 0, %s118
      %s121 = sphi 0, %s120
      %s135 = sphi 0, %s121
      %s139 = sphi 0, %s139
      %s141 = sphi 0, %s139
      %s142 = sphi 0, %s141
      %s156 = sphi 0, %s142
    $region4: #{tpu_custom_call.1} parent=1 // loop_header_branch
      %14 = sbr.rel (%p12) target = $region8
    $region5: #{tpu_custom_call.1} parent=1 // loop_body
      %s16 = ssub.s32 %s11, 1
      %s17 = ssub.s32 %s11, 2
      %s18 = sadd.s32 %s11, 1
      %s19 = ssub.s32 %s11, %s18
      %p20 = scmp.eq.s32.totalorder %s19, 0
      %s22 = sadd.s32 %s21, 1
      %s23 = scalar_select %p20, %s21, %s22
      %p26 = pneg %p20
      %p27 = scmp.eq.s32.totalorder %s11, 1
      %p28 = por %p26, %p27
      %p29 = scmp.ne.s32.totalorder %s21, %s24
      %p30 = scmp.eq.s32.totalorder %s11, 0
      %p31 = por %p29, %p30
      %p32 = scmp.ne.s32.totalorder %s21, %s24
      %p33 = scmp.eq.s32.totalorder %s16, 1
      %p34 = por %p32, %p33
      %p35 = scmp.ne.s32.totalorder %s24, %s25
      %p36 = scmp.eq.s32.totalorder %s16, 0
      %p37 = por %p35, %p36
      %p38 = scmp.ne.s32.totalorder %s24, %s25
      %p39 = scmp.eq.s32.totalorder %s17, 1
      %p40 = por %p38, %p39
      %p42 = scmp.ne.s32.totalorder %s25, %s41
      %p43 = scmp.eq.s32.totalorder %s17, 0
      %p44 = por %p42, %p43
      %s45 = ssub.s32 %s11, %s18
      %p46 = scmp.eq.s32.totalorder %s45, 0
      %s48 = sadd.s32 %s47, 1
      %s49 = scalar_select %p46, %s47, %s48
      %p52 = pneg %p46
      %p53 = scmp.eq.s32.totalorder %s11, 1
      %p54 = por %p52, %p53
      %p55 = scmp.ne.s32.totalorder %s47, %s50
      %p56 = scmp.eq.s32.totalorder %s11, 0
      %p57 = por %p55, %p56
      %p58 = scmp.ne.s32.totalorder %s47, %s50
      %p59 = scmp.eq.s32.totalorder %s16, 1
      %p60 = por %p58, %p59
      %p61 = scmp.ne.s32.totalorder %s50, %s51
      %p62 = scmp.eq.s32.totalorder %s16, 0
      %p63 = por %p61, %p62
      %p64 = scmp.ne.s32.totalorder %s50, %s51
      %p65 = scmp.eq.s32.totalorder %s17, 1
      %p66 = por %p64, %p65
      %p68 = scmp.ne.s32.totalorder %s51, %s67
      %p69 = scmp.eq.s32.totalorder %s17, 0
      %p70 = por %p68, %p69
      %s71 = ssub.s32 %s11, %s18
      %p72 = scmp.eq.s32.totalorder %s71, 0
      %s74 = sadd.s32 %s73, 1
      %s75 = scalar_select %p72, %s73, %s74
      %p78 = pneg %p72
      %p79 = scmp.eq.s32.totalorder %s11, 1
      %p80 = por %p78, %p79
      %p81 = scmp.ne.s32.totalorder %s73, %s76
      %p82 = scmp.eq.s32.totalorder %s11, 0
      %p83 = por %p81, %p82
      %p84 = scmp.ne.s32.totalorder %s73, %s76
      %p85 = scmp.eq.s32.totalorder %s16, 1
      %p86 = por %p84, %p85
      %p87 = scmp.ne.s32.totalorder %s76, %s77
      %p88 = scmp.eq.s32.totalorder %s16, 0
      %p89 = por %p87, %p88
      %p90 = scmp.ne.s32.totalorder %s76, %s77
      %p91 = scmp.eq.s32.totalorder %s17, 1
      %p92 = por %p90, %p91
      %p94 = scmp.ne.s32.totalorder %s77, %s93
      %p95 = scmp.eq.s32.totalorder %s17, 0
      %p96 = por %p94, %p95
      %s98 = sadd.s32 %s97, 1
      %p101 = scmp.eq.s32.totalorder %s11, 1
      %p102 = scmp.ne.s32.totalorder %s97, %s99
      %p103 = scmp.eq.s32.totalorder %s11, 0
      %p104 = por %p102, %p103
      %p105 = scmp.ne.s32.totalorder %s97, %s99
      %p106 = scmp.eq.s32.totalorder %s16, 1
      %p107 = por %p105, %p106
      %p108 = scmp.ne.s32.totalorder %s99, %s100
      %p109 = scmp.eq.s32.totalorder %s16, 0
      %p110 = por %p108, %p109
      %p111 = scmp.ne.s32.totalorder %s99, %s100
      %p112 = scmp.eq.s32.totalorder %s17, 1
      %p113 = por %p111, %p112
      %p115 = scmp.ne.s32.totalorder %s100, %s114
      %p116 = scmp.eq.s32.totalorder %s17, 0
      %p117 = por %p115, %p116
      %s119 = sadd.s32 %s118, 1
      %p122 = scmp.eq.s32.totalorder %s11, 1
      %p123 = scmp.ne.s32.totalorder %s118, %s120
      %p124 = scmp.eq.s32.totalorder %s11, 0
      %p125 = por %p123, %p124
      %p126 = scmp.ne.s32.totalorder %s118, %s120
      %p127 = scmp.eq.s32.totalorder %s16, 1
      %p128 = por %p126, %p127
      %p129 = scmp.ne.s32.totalorder %s120, %s121
      %p130 = scmp.eq.s32.totalorder %s16, 0
      %p131 = por %p129, %p130
      %p132 = scmp.ne.s32.totalorder %s120, %s121
      %p133 = scmp.eq.s32.totalorder %s17, 1
      %p134 = por %p132, %p133
      %p136 = scmp.ne.s32.totalorder %s121, %s135
      %p137 = scmp.eq.s32.totalorder %s17, 0
      %p138 = por %p136, %p137
      %s140 = sadd.s32 %s139, 1
      %p143 = scmp.eq.s32.totalorder %s11, 1
      %p144 = scmp.ne.s32.totalorder %s139, %s141
      %p145 = scmp.eq.s32.totalorder %s11, 0
      %p146 = por %p144, %p145
      %p147 = scmp.ne.s32.totalorder %s139, %s141
      %p148 = scmp.eq.s32.totalorder %s16, 1
      %p149 = por %p147, %p148
      %p150 = scmp.ne.s32.totalorder %s141, %s142
      %p151 = scmp.eq.s32.totalorder %s16, 0
      %p152 = por %p150, %p151
      %p153 = scmp.ne.s32.totalorder %s141, %s142
      %p154 = scmp.eq.s32.totalorder %s17, 1
      %p155 = por %p153, %p154
      %p157 = scmp.ne.s32.totalorder %s142, %s156
      %p158 = scmp.eq.s32.totalorder %s17, 0
      %p159 = por %p157, %p158
      %p160 = scmp.le.s32.totalorder 1, %s11
      %p161 = scmp.lt.s32.totalorder %s11, 3
      %p162 = pnand %p160, %p161
      %p163 = pneg %p162
      // Predicated region
      $region9: #{tpu_custom_call.1} parent=5 // pred_check
        _
      $region10: #{tpu_custom_call.1} parent=5 // pred_check_branch
        %165 = sbr.rel (%p162) target = $region12
      $region11: #{tpu_custom_call.1} parent=5 // pred_region
        %s166 = ssub.s32 %s11, 1
        // Predicated region
        $region13: #{tpu_custom_call.1} parent=11 // pred_check
          %p167 = pneg %p110
        $region14: #{tpu_custom_call.1} parent=11 // pred_check_branch
          %169 = sbr.rel (%p167) target = $region16
        $region15: #{tpu_custom_call.1} parent=11 // pred_region
          _
        $region16: #{tpu_custom_call.1} parent=11 // pred_fallthru
          _
        // Predicated region
        $region17: #{tpu_custom_call.1} parent=11 // pred_check
          %p170 = pneg %p131
        $region18: #{tpu_custom_call.1} parent=11 // pred_check_branch
          %172 = sbr.rel (%p170) target = $region20
        $region19: #{tpu_custom_call.1} parent=11 // pred_region
          _
        $region20: #{tpu_custom_call.1} parent=11 // pred_fallthru
          _
      $region12: #{tpu_custom_call.1} parent=5 // pred_fallthru
        _
      %p173 = scmp.lt.s32.totalorder %s11, 2
      // Predicated region
      $region21: #{tpu_custom_call.1} parent=5 // pred_check
        %p174 = pneg %p173
      $region22: #{tpu_custom_call.1} parent=5 // pred_check_branch
        %176 = sbr.rel (%p174) target = $region24
      $region23: #{tpu_custom_call.1} parent=5 // pred_region
        // Predicated region
        $region25: #{tpu_custom_call.1} parent=23 // pred_check
          %p177 = pneg %p31
        $region26: #{tpu_custom_call.1} parent=23 // pred_check_branch
          %179 = sbr.rel (%p177) target = $region28
        $region27: #{tpu_custom_call.1} parent=23 // pred_region
          %s180 = smul.u32 64, %s11
          %p181 = scmp.lt.s32.totalorder %s180, 127
          %s182 = scalar_select %p181, %s180, 127
          %s183 = smul.addr %s182, 2
          %s184 = smul.addr %s183, 8
          %s185 = scalar_lea.vmem %s0, %s184
          %s186 = smul.u32 64, %s11
        $region28: #{tpu_custom_call.1} parent=23 // pred_fallthru
          _
        // Predicated region
        $region29: #{tpu_custom_call.1} parent=23 // pred_check
          %p187 = pneg %p57
        $region30: #{tpu_custom_call.1} parent=23 // pred_check_branch
          %189 = sbr.rel (%p187) target = $region32
        $region31: #{tpu_custom_call.1} parent=23 // pred_region
          %s190 = smul.u32 64, %s11
          %p191 = scmp.lt.s32.totalorder %s190, 127
          %s192 = scalar_select %p191, %s190, 127
          %s193 = smul.addr %s192, 2
          %s194 = smul.addr %s193, 8
          %s195 = scalar_lea.vmem %s1, %s194
          %s196 = smul.u32 64, %s11
        $region32: #{tpu_custom_call.1} parent=23 // pred_fallthru
          _
        // Predicated region
        $region33: #{tpu_custom_call.1} parent=23 // pred_check
          %p197 = pneg %p83
        $region34: #{tpu_custom_call.1} parent=23 // pred_check_branch
          %199 = sbr.rel (%p197) target = $region36
        $region35: #{tpu_custom_call.1} parent=23 // pred_region
          %s200 = sand.u32 %s73, 1
          %s201 = sand.u32 %s73, 1
          %s202 = smul.addr %s201, 512
          %s203 = scalar_lea.vmem [#allocation3], %s202
          %s204 = smul.u32 4, %s11
          %s205 = smul.addr %s204, 4
          %s206 = scalar_lea.vmem %s2, %s205
          // Predicated region
          $region37: #{tpu_custom_call.1} parent=35 // pred_check
            _
          $region38: #{tpu_custom_call.1} parent=35 // pred_check_branch
            %208 = sbr.rel (0) target = $region40
          $region39: #{tpu_custom_call.1} parent=35 // pred_region
            // Predicated region
            $region41: #{tpu_custom_call.1} parent=39 // pred_check
              _
            $region42: #{tpu_custom_call.1} parent=39 // pred_check_branch
              %210 = sbr.rel (0) target = $region44
            $region43: #{tpu_custom_call.1} parent=39 // pred_region
              loop: start=0, step=1, limit=1
              $region45: #{tpu_custom_call.1} parent=43 // loop_pre_header
                _
              $region46: #{tpu_custom_call.1} parent=43 // loop_header
                %s212 = sphi 0, %s216
                %p213 = scmp.ge.s32.totalorder %s212, 1
                %s217 = sphi %s206, %s206
                %s218 = sphi %s203, %s203
              $region47: #{tpu_custom_call.1} parent=43 // loop_header_branch
                %215 = sbr.rel (%p213) target = $region51
              $region48: #{tpu_custom_call.1} parent=43 // loop_body
                %v219 = vld [vmem:[%s217] sm:$0xff]
                %220 = vst [vmem:[%s218] sm:$0xff] %v219
                %v221 = vld [vmem:[%s217 + $0x8] sm:$0xff]
                %222 = vst [vmem:[%s218 + $0x8] sm:$0xff] %v221
                %v223 = vld [vmem:[%s217 + $0x20] sm:$0xff]
                %224 = vst [vmem:[%s218 + $0x10] sm:$0xff] %v223
                %v225 = vld [vmem:[%s217 + $0x28] sm:$0xff]
                %226 = vst [vmem:[%s218 + $0x18] sm:$0xff] %v225
                %v227 = vld [vmem:[%s217 + $0x40] sm:$0xff]
                %228 = vst [vmem:[%s218 + $0x20] sm:$0xff] %v227
                %v229 = vld [vmem:[%s217 + $0x48] sm:$0xff]
                %230 = vst [vmem:[%s218 + $0x28] sm:$0xff] %v229
                %v231 = vld [vmem:[%s217 + $0x60] sm:$0xff]
                %232 = vst [vmem:[%s218 + $0x30] sm:$0xff] %v231
                %v233 = vld [vmem:[%s217 + $0x68] sm:$0xff]
                %234 = vst [vmem:[%s218 + $0x38] sm:$0xff] %v233
                %v235 = vld [vmem:[%s217 + $0x80] sm:$0xff]
                %236 = vst [vmem:[%s218 + $0x40] sm:$0xff] %v235
                %v237 = vld [vmem:[%s217 + $0x88] sm:$0xff]
                %238 = vst [vmem:[%s218 + $0x48] sm:$0xff] %v237
                %v239 = vld [vmem:[%s217 + $0xa0] sm:$0xff]
                %240 = vst [vmem:[%s218 + $0x50] sm:$0xff] %v239
                %v241 = vld [vmem:[%s217 + $0xa8] sm:$0xff]
                %242 = vst [vmem:[%s218 + $0x58] sm:$0xff] %v241
                %v243 = vld [vmem:[%s217 + $0xc0] sm:$0xff]
                %244 = vst [vmem:[%s218 + $0x60] sm:$0xff] %v243
                %v245 = vld [vmem:[%s217 + $0xc8] sm:$0xff]
                %246 = vst [vmem:[%s218 + $0x68] sm:$0xff] %v245
                %v247 = vld [vmem:[%s217 + $0xe0] sm:$0xff]
                %248 = vst [vmem:[%s218 + $0x70] sm:$0xff] %v247
                %v249 = vld [vmem:[%s217 + $0xe8] sm:$0xff]
                %250 = vst [vmem:[%s218 + $0x78] sm:$0xff] %v249
                %v251 = vld [vmem:[%s217 + $0x100] sm:$0xff]
                %252 = vst [vmem:[%s218 + $0x80] sm:$0xff] %v251
                %v253 = vld [vmem:[%s217 + $0x108] sm:$0xff]
                %254 = vst [vmem:[%s218 + $0x88] sm:$0xff] %v253
                %v255 = vld [vmem:[%s217 + $0x120] sm:$0xff]
                %256 = vst [vmem:[%s218 + $0x90] sm:$0xff] %v255
                %v257 = vld [vmem:[%s217 + $0x128] sm:$0xff]
                %258 = vst [vmem:[%s218 + $0x98] sm:$0xff] %v257
                %v259 = vld [vmem:[%s217 + $0x140] sm:$0xff]
                %260 = vst [vmem:[%s218 + $0xa0] sm:$0xff] %v259
                %v261 = vld [vmem:[%s217 + $0x148] sm:$0xff]
                %262 = vst [vmem:[%s218 + $0xa8] sm:$0xff] %v261
                %v263 = vld [vmem:[%s217 + $0x160] sm:$0xff]
                %264 = vst [vmem:[%s218 + $0xb0] sm:$0xff] %v263
                %v265 = vld [vmem:[%s217 + $0x168] sm:$0xff]
                %266 = vst [vmem:[%s218 + $0xb8] sm:$0xff] %v265
                %v267 = vld [vmem:[%s217 + $0x180] sm:$0xff]
                %268 = vst [vmem:[%s218 + $0xc0] sm:$0xff] %v267
                %v269 = vld [vmem:[%s217 + $0x188] sm:$0xff]
                %270 = vst [vmem:[%s218 + $0xc8] sm:$0xff] %v269
                %v271 = vld [vmem:[%s217 + $0x1a0] sm:$0xff]
                %272 = vst [vmem:[%s218 + $0xd0] sm:$0xff] %v271
                %v273 = vld [vmem:[%s217 + $0x1a8] sm:$0xff]
                %274 = vst [vmem:[%s218 + $0xd8] sm:$0xff] %v273
                %v275 = vld [vmem:[%s217 + $0x1c0] sm:$0xff]
                %276 = vst [vmem:[%s218 + $0xe0] sm:$0xff] %v275
                %v277 = vld [vmem:[%s217 + $0x1c8] sm:$0xff]
                %278 = vst [vmem:[%s218 + $0xe8] sm:$0xff] %v277
                %v279 = vld [vmem:[%s217 + $0x1e0] sm:$0xff]
                %280 = vst [vmem:[%s218 + $0xf0] sm:$0xff] %v279
                %v281 = vld [vmem:[%s217 + $0x1e8] sm:$0xff]
                %282 = vst [vmem:[%s218 + $0xf8] sm:$0xff] %v281
                %v283 = vld [vmem:[%s217 + $0x200] sm:$0xff]
                %284 = vst [vmem:[%s218 + $0x100] sm:$0xff] %v283
                %v285 = vld [vmem:[%s217 + $0x208] sm:$0xff]
                %286 = vst [vmem:[%s218 + $0x108] sm:$0xff] %v285
                %v287 = vld [vmem:[%s217 + $0x220] sm:$0xff]
                %288 = vst [vmem:[%s218 + $0x110] sm:$0xff] %v287
                %v289 = vld [vmem:[%s217 + $0x228] sm:$0xff]
                %290 = vst [vmem:[%s218 + $0x118] sm:$0xff] %v289
                %v291 = vld [vmem:[%s217 + $0x240] sm:$0xff]
                %292 = vst [vmem:[%s218 + $0x120] sm:$0xff] %v291
                %v293 = vld [vmem:[%s217 + $0x248] sm:$0xff]
                %294 = vst [vmem:[%s218 + $0x128] sm:$0xff] %v293
                %v295 = vld [vmem:[%s217 + $0x260] sm:$0xff]
                %296 = vst [vmem:[%s218 + $0x130] sm:$0xff] %v295
                %v297 = vld [vmem:[%s217 + $0x268] sm:$0xff]
                %298 = vst [vmem:[%s218 + $0x138] sm:$0xff] %v297
                %v299 = vld [vmem:[%s217 + $0x280] sm:$0xff]
                %300 = vst [vmem:[%s218 + $0x140] sm:$0xff] %v299
                %v301 = vld [vmem:[%s217 + $0x288] sm:$0xff]
                %302 = vst [vmem:[%s218 + $0x148] sm:$0xff] %v301
                %v303 = vld [vmem:[%s217 + $0x2a0] sm:$0xff]
                %304 = vst [vmem:[%s218 + $0x150] sm:$0xff] %v303
                %v305 = vld [vmem:[%s217 + $0x2a8] sm:$0xff]
                %306 = vst [vmem:[%s218 + $0x158] sm:$0xff] %v305
                %v307 = vld [vmem:[%s217 + $0x2c0] sm:$0xff]
                %308 = vst [vmem:[%s218 + $0x160] sm:$0xff] %v307
                %v309 = vld [vmem:[%s217 + $0x2c8] sm:$0xff]
                %310 = vst [vmem:[%s218 + $0x168] sm:$0xff] %v309
                %v311 = vld [vmem:[%s217 + $0x2e0] sm:$0xff]
                %312 = vst [vmem:[%s218 + $0x170] sm:$0xff] %v311
                %v313 = vld [vmem:[%s217 + $0x2e8] sm:$0xff]
                %314 = vst [vmem:[%s218 + $0x178] sm:$0xff] %v313
                %v315 = vld [vmem:[%s217 + $0x300] sm:$0xff]
                %316 = vst [vmem:[%s218 + $0x180] sm:$0xff] %v315
                %v317 = vld [vmem:[%s217 + $0x308] sm:$0xff]
                %318 = vst [vmem:[%s218 + $0x188] sm:$0xff] %v317
                %v319 = vld [vmem:[%s217 + $0x320] sm:$0xff]
                %320 = vst [vmem:[%s218 + $0x190] sm:$0xff] %v319
                %v321 = vld [vmem:[%s217 + $0x328] sm:$0xff]
                %322 = vst [vmem:[%s218 + $0x198] sm:$0xff] %v321
                %v323 = vld [vmem:[%s217 + $0x340] sm:$0xff]
                %324 = vst [vmem:[%s218 + $0x1a0] sm:$0xff] %v323
                %v325 = vld [vmem:[%s217 + $0x348] sm:$0xff]
                %326 = vst [vmem:[%s218 + $0x1a8] sm:$0xff] %v325
                %v327 = vld [vmem:[%s217 + $0x360] sm:$0xff]
                %328 = vst [vmem:[%s218 + $0x1b0] sm:$0xff] %v327
                %v329 = vld [vmem:[%s217 + $0x368] sm:$0xff]
                %330 = vst [vmem:[%s218 + $0x1b8] sm:$0xff] %v329
                %v331 = vld [vmem:[%s217 + $0x380] sm:$0xff]
                %332 = vst [vmem:[%s218 + $0x1c0] sm:$0xff] %v331
                %v333 = vld [vmem:[%s217 + $0x388] sm:$0xff]
                %334 = vst [vmem:[%s218 + $0x1c8] sm:$0xff] %v333
                %v335 = vld [vmem:[%s217 + $0x3a0] sm:$0xff]
                %336 = vst [vmem:[%s218 + $0x1d0] sm:$0xff] %v335
                %v337 = vld [vmem:[%s217 + $0x3a8] sm:$0xff]
                %338 = vst [vmem:[%s218 + $0x1d8] sm:$0xff] %v337
                %v339 = vld [vmem:[%s217 + $0x3c0] sm:$0xff]
                %340 = vst [vmem:[%s218 + $0x1e0] sm:$0xff] %v339
                %v341 = vld [vmem:[%s217 + $0x3c8] sm:$0xff]
                %342 = vst [vmem:[%s218 + $0x1e8] sm:$0xff] %v341
                %v343 = vld [vmem:[%s217 + $0x3e0] sm:$0xff]
                %344 = vst [vmem:[%s218 + $0x1f0] sm:$0xff] %v343
                %v345 = vld [vmem:[%s217 + $0x3e8] sm:$0xff]
                %346 = vst [vmem:[%s218 + $0x1f8] sm:$0xff] %v345
              $region49: #{tpu_custom_call.1} parent=43 // loop_footer
                %s216 = sadd.s32 1, %s212
              $region50: #{tpu_custom_call.1} parent=43 // loop_footer_branch
                %211 = sbr.rel target = $region46
              $region51: #{tpu_custom_call.1} parent=43 // loop_exit
                _
            $region44: #{tpu_custom_call.1} parent=39 // pred_fallthru
              _
            // Predicated region
            $region52: #{tpu_custom_call.1} parent=39 // pred_check
              _
            $region53: #{tpu_custom_call.1} parent=39 // pred_check_branch
              %348 = sbr.rel target = $region55
            $region54: #{tpu_custom_call.1} parent=39 // pred_region
              _
            $region55: #{tpu_custom_call.1} parent=39 // pred_fallthru
              _
          $region40: #{tpu_custom_call.1} parent=35 // pred_fallthru
            _
          %349 = vnop
        $region36: #{tpu_custom_call.1} parent=23 // pred_fallthru
          _
      $region24: #{tpu_custom_call.1} parent=5 // pred_fallthru
        _
      %p350 = scmp.le.s32.totalorder 1, %s11
      %p351 = scmp.lt.s32.totalorder %s11, 3
      %p352 = pnand %p350, %p351
      %p353 = pneg %p352
      // Predicated region
      $region56: #{tpu_custom_call.1} parent=5 // pred_check
        _
      $region57: #{tpu_custom_call.1} parent=5 // pred_check_branch
        %355 = sbr.rel (%p352) target = $region59
      $region58: #{tpu_custom_call.1} parent=5 // pred_region
        %s356 = ssub.s32 %s11, 1
        %s357 = sand.u32 %s76, 1
        %s358 = sand.u32 %s76, 1
        %s359 = smul.addr %s358, 512
        %s360 = scalar_lea.vmem [#allocation3], %s359
        // Predicated region
        $region60: #{tpu_custom_call.1} parent=58 // pred_check
          %p361 = pneg %p89
        $region61: #{tpu_custom_call.1} parent=58 // pred_check_branch
          %363 = sbr.rel (%p361) target = $region63
        $region62: #{tpu_custom_call.1} parent=58 // pred_region
          _
        $region63: #{tpu_custom_call.1} parent=58 // pred_fallthru
          _
        %s364 = smul.u32 64, %s16
        %p365 = scmp.lt.s32.totalorder %s364, 127
        %s366 = scalar_select %p365, %s364, 127
        %s367 = smul.addr %s366, 2
        %s368 = smul.addr %s367, 8
        %s369 = scalar_lea.vmem %s0, %s368
        %p370 = pneg %p37
        %p371 = pneg %p34
        %s372 = smul.u32 64, %s16
        %p373 = scmp.lt.s32.totalorder %s372, 127
        %s374 = scalar_select %p373, %s372, 127
        %s375 = smul.addr %s374, 2
        %s376 = smul.addr %s375, 8
        %s377 = scalar_lea.vmem %s1, %s376
        %p378 = pneg %p63
        %p379 = pneg %p60
        %s380 = sand.u32 %s76, 1
        %s381 = sand.u32 %s76, 1
        %s382 = smul.addr %s381, 512
        %s383 = scalar_lea.vmem [#allocation3], %s382
        %p384 = pneg %p89
        %p385 = pneg %p86
        %p386 = pneg %p110
        %p387 = pneg %p107
        %p388 = pneg %p131
        %p389 = pneg %p128
        %p390 = pneg %p152
        %p391 = pneg %p149
        %s392 = smul.u32 64, %s16
        %p393 = scmp.lt.s32.totalorder %s392, 127
        %s394 = scalar_select %p393, %s392, 127
        %s395 = smul.addr %s394, 2
        %s396 = smul.addr %s395, 8
        %s397 = scalar_lea.vmem %s0, %s396
        %s398 = smul.u32 64, %s16
        %s399 = smul.u32 64, %s16
        %p400 = scmp.lt.s32.totalorder %s399, 127
        %s401 = scalar_select %p400, %s399, 127
        %s402 = smul.addr %s401, 2
        %s403 = smul.addr %s402, 8
        %s404 = scalar_lea.vmem %s1, %s403
        %s405 = smul.u32 64, %s16
        %s406 = smul.u32 4, %s16
        %p407 = scmp.eq.s32.totalorder %s16, 0
        // Predicated region
        $region64: #{tpu_custom_call.1} parent=58 // pred_check
          %p408 = pneg %p407
        $region65: #{tpu_custom_call.1} parent=58 // pred_check_branch
          %410 = sbr.rel (%p408) target = $region67
        $region66: #{tpu_custom_call.1} parent=58 // pred_region
          %411 = vst [vmem:[#allocation2] sm:$0xff] 0.0
          %vm412 = vcmask 556032
          %413 = vst.msk [vmem:[#allocation2 + $0x8] sm:$0xff] %vm412, 0.0
          %414 = vst [vmem:[#allocation2 + $0x10] sm:$0xff] 0.0
          %415 = vst.msk [vmem:[#allocation2 + $0x18] sm:$0xff] %vm412, 0.0
          %416 = vst [vmem:[#allocation2 + $0x20] sm:$0xff] 0.0
          %417 = vst.msk [vmem:[#allocation2 + $0x28] sm:$0xff] %vm412, 0.0
          %418 = vst [vmem:[#allocation2 + $0x30] sm:$0xff] 0.0
          %419 = vst.msk [vmem:[#allocation2 + $0x38] sm:$0xff] %vm412, 0.0
          %420 = vst [vmem:[#allocation2 + $0x40] sm:$0xff] 0.0
          %421 = vst.msk [vmem:[#allocation2 + $0x48] sm:$0xff] %vm412, 0.0
          %422 = vst [vmem:[#allocation2 + $0x50] sm:$0xff] 0.0
          %423 = vst.msk [vmem:[#allocation2 + $0x58] sm:$0xff] %vm412, 0.0
          %424 = vst [vmem:[#allocation2 + $0x60] sm:$0xff] 0.0
          %425 = vst.msk [vmem:[#allocation2 + $0x68] sm:$0xff] %vm412, 0.0
          %426 = vst [vmem:[#allocation2 + $0x70] sm:$0xff] 0.0
          %427 = vst.msk [vmem:[#allocation2 + $0x78] sm:$0xff] %vm412, 0.0
          %428 = vst [vmem:[#allocation2 + $0x80] sm:$0xff] 0.0
          %429 = vst.msk [vmem:[#allocation2 + $0x88] sm:$0xff] %vm412, 0.0
          %430 = vst [vmem:[#allocation2 + $0x90] sm:$0xff] 0.0
          %431 = vst.msk [vmem:[#allocation2 + $0x98] sm:$0xff] %vm412, 0.0
          %432 = vst [vmem:[#allocation2 + $0xa0] sm:$0xff] 0.0
          %433 = vst.msk [vmem:[#allocation2 + $0xa8] sm:$0xff] %vm412, 0.0
          %434 = vst [vmem:[#allocation2 + $0xb0] sm:$0xff] 0.0
          %435 = vst.msk [vmem:[#allocation2 + $0xb8] sm:$0xff] %vm412, 0.0
          %436 = vst [vmem:[#allocation2 + $0xc0] sm:$0xff] 0.0
          %437 = vst.msk [vmem:[#allocation2 + $0xc8] sm:$0xff] %vm412, 0.0
          %438 = vst [vmem:[#allocation2 + $0xd0] sm:$0xff] 0.0
          %439 = vst.msk [vmem:[#allocation2 + $0xd8] sm:$0xff] %vm412, 0.0
          %440 = vst [vmem:[#allocation2 + $0xe0] sm:$0xff] 0.0
          %441 = vst.msk [vmem:[#allocation2 + $0xe8] sm:$0xff] %vm412, 0.0
          %442 = vst [vmem:[#allocation2 + $0xf0] sm:$0xff] 0.0
          %443 = vst.msk [vmem:[#allocation2 + $0xf8] sm:$0xff] %vm412, 0.0
          %444 = vst [vmem:[#allocation2 + $0x100] sm:$0xff] 0.0
          %445 = vst.msk [vmem:[#allocation2 + $0x108] sm:$0xff] %vm412, 0.0
          %446 = vst [vmem:[#allocation2 + $0x110] sm:$0xff] 0.0
          %447 = vst.msk [vmem:[#allocation2 + $0x118] sm:$0xff] %vm412, 0.0
          %448 = vst [vmem:[#allocation2 + $0x120] sm:$0xff] 0.0
          %449 = vst.msk [vmem:[#allocation2 + $0x128] sm:$0xff] %vm412, 0.0
          %450 = vst [vmem:[#allocation2 + $0x130] sm:$0xff] 0.0
          %451 = vst.msk [vmem:[#allocation2 + $0x138] sm:$0xff] %vm412, 0.0
          %452 = vst [vmem:[#allocation2 + $0x140] sm:$0xff] 0.0
          %453 = vst.msk [vmem:[#allocation2 + $0x148] sm:$0xff] %vm412, 0.0
          %454 = vst [vmem:[#allocation2 + $0x150] sm:$0xff] 0.0
          %455 = vst.msk [vmem:[#allocation2 + $0x158] sm:$0xff] %vm412, 0.0
          %456 = vst [vmem:[#allocation2 + $0x160] sm:$0xff] 0.0
          %457 = vst.msk [vmem:[#allocation2 + $0x168] sm:$0xff] %vm412, 0.0
          %458 = vst [vmem:[#allocation2 + $0x170] sm:$0xff] 0.0
          %459 = vst.msk [vmem:[#allocation2 + $0x178] sm:$0xff] %vm412, 0.0
          %460 = vst [vmem:[#allocation2 + $0x180] sm:$0xff] 0.0
          %461 = vst.msk [vmem:[#allocation2 + $0x188] sm:$0xff] %vm412, 0.0
          %462 = vst [vmem:[#allocation2 + $0x190] sm:$0xff] 0.0
          %463 = vst.msk [vmem:[#allocation2 + $0x198] sm:$0xff] %vm412, 0.0
          %464 = vst [vmem:[#allocation2 + $0x1a0] sm:$0xff] 0.0
          %465 = vst.msk [vmem:[#allocation2 + $0x1a8] sm:$0xff] %vm412, 0.0
          %466 = vst [vmem:[#allocation2 + $0x1b0] sm:$0xff] 0.0
          %467 = vst.msk [vmem:[#allocation2 + $0x1b8] sm:$0xff] %vm412, 0.0
          %468 = vst [vmem:[#allocation2 + $0x1c0] sm:$0xff] 0.0
          %469 = vst.msk [vmem:[#allocation2 + $0x1c8] sm:$0xff] %vm412, 0.0
          %470 = vst [vmem:[#allocation2 + $0x1d0] sm:$0xff] 0.0
          %471 = vst.msk [vmem:[#allocation2 + $0x1d8] sm:$0xff] %vm412, 0.0
          %472 = vst [vmem:[#allocation2 + $0x1e0] sm:$0xff] 0.0
          %473 = vst.msk [vmem:[#allocation2 + $0x1e8] sm:$0xff] %vm412, 0.0
          %474 = vst [vmem:[#allocation2 + $0x1f0] sm:$0xff] 0.0
          %475 = vst.msk [vmem:[#allocation2 + $0x1f8] sm:$0xff] %vm412, 0.0
        $region67: #{tpu_custom_call.1} parent=58 // pred_fallthru
          _
        %v476 = vld [vmem:[%s397] sm:$0xff]
        %v477 = vld [vmem:[%s397 + $0x8] sm:$0xff]
        %v478 = vld [vmem:[%s397 + $0x10] sm:$0xff]
        %v479 = vld [vmem:[%s397 + $0x18] sm:$0xff]
        %v480 = vld [vmem:[%s397 + $0x20] sm:$0xff]
        %v481 = vld [vmem:[%s397 + $0x28] sm:$0xff]
        %v482 = vld [vmem:[%s397 + $0x30] sm:$0xff]
        %v483 = vld [vmem:[%s397 + $0x38] sm:$0xff]
        %v484 = vld [vmem:[%s397 + $0x40] sm:$0xff]
        %v485 = vld [vmem:[%s397 + $0x48] sm:$0xff]
        %v486 = vld [vmem:[%s397 + $0x50] sm:$0xff]
        %v487 = vld [vmem:[%s397 + $0x58] sm:$0xff]
        %v488 = vld [vmem:[%s397 + $0x60] sm:$0xff]
        %v489 = vld [vmem:[%s397 + $0x68] sm:$0xff]
        %v490 = vld [vmem:[%s397 + $0x70] sm:$0xff]
        %v491 = vld [vmem:[%s397 + $0x78] sm:$0xff]
        %v492 = vld [vmem:[%s397 + $0x80] sm:$0xff]
        %v493 = vld [vmem:[%s397 + $0x88] sm:$0xff]
        %v494 = vld [vmem:[%s397 + $0x90] sm:$0xff]
        %v495 = vld [vmem:[%s397 + $0x98] sm:$0xff]
        %v496 = vld [vmem:[%s397 + $0xa0] sm:$0xff]
        %v497 = vld [vmem:[%s397 + $0xa8] sm:$0xff]
        %v498 = vld [vmem:[%s397 + $0xb0] sm:$0xff]
        %v499 = vld [vmem:[%s397 + $0xb8] sm:$0xff]
        %v500 = vld [vmem:[%s397 + $0xc0] sm:$0xff]
        %v501 = vld [vmem:[%s397 + $0xc8] sm:$0xff]
        %v502 = vld [vmem:[%s397 + $0xd0] sm:$0xff]
        %v503 = vld [vmem:[%s397 + $0xd8] sm:$0xff]
        %v504 = vld [vmem:[%s397 + $0xe0] sm:$0xff]
        %v505 = vld [vmem:[%s397 + $0xe8] sm:$0xff]
        %v506 = vld [vmem:[%s397 + $0xf0] sm:$0xff]
        %v507 = vld [vmem:[%s397 + $0xf8] sm:$0xff]
        %v508 = vld [vmem:[%s397 + $0x100] sm:$0xff]
        %v509 = vld [vmem:[%s397 + $0x108] sm:$0xff]
        %v510 = vld [vmem:[%s397 + $0x110] sm:$0xff]
        %v511 = vld [vmem:[%s397 + $0x118] sm:$0xff]
        %v512 = vld [vmem:[%s397 + $0x120] sm:$0xff]
        %v513 = vld [vmem:[%s397 + $0x128] sm:$0xff]
        %v514 = vld [vmem:[%s397 + $0x130] sm:$0xff]
        %v515 = vld [vmem:[%s397 + $0x138] sm:$0xff]
        %v516 = vld [vmem:[%s397 + $0x140] sm:$0xff]
        %v517 = vld [vmem:[%s397 + $0x148] sm:$0xff]
        %v518 = vld [vmem:[%s397 + $0x150] sm:$0xff]
        %v519 = vld [vmem:[%s397 + $0x158] sm:$0xff]
        %v520 = vld [vmem:[%s397 + $0x160] sm:$0xff]
        %v521 = vld [vmem:[%s397 + $0x168] sm:$0xff]
        %v522 = vld [vmem:[%s397 + $0x170] sm:$0xff]
        %v523 = vld [vmem:[%s397 + $0x178] sm:$0xff]
        %v524 = vld [vmem:[%s397 + $0x180] sm:$0xff]
        %v525 = vld [vmem:[%s397 + $0x188] sm:$0xff]
        %v526 = vld [vmem:[%s397 + $0x190] sm:$0xff]
        %v527 = vld [vmem:[%s397 + $0x198] sm:$0xff]
        %v528 = vld [vmem:[%s397 + $0x1a0] sm:$0xff]
        %v529 = vld [vmem:[%s397 + $0x1a8] sm:$0xff]
        %v530 = vld [vmem:[%s397 + $0x1b0] sm:$0xff]
        %v531 = vld [vmem:[%s397 + $0x1b8] sm:$0xff]
        %v532 = vld [vmem:[%s397 + $0x1c0] sm:$0xff]
        %v533 = vld [vmem:[%s397 + $0x1c8] sm:$0xff]
        %v534 = vld [vmem:[%s397 + $0x1d0] sm:$0xff]
        %v535 = vld [vmem:[%s397 + $0x1d8] sm:$0xff]
        %v536 = vld [vmem:[%s397 + $0x1e0] sm:$0xff]
        %v537 = vld [vmem:[%s397 + $0x1e8] sm:$0xff]
        %v538 = vld [vmem:[%s397 + $0x1f0] sm:$0xff]
        %v539 = vld [vmem:[%s397 + $0x1f8] sm:$0xff]
        %v540 = vld [vmem:[%s397 + $0x200] sm:$0xff]
        %v541 = vld [vmem:[%s397 + $0x208] sm:$0xff]
        %v542 = vld [vmem:[%s397 + $0x210] sm:$0xff]
        %v543 = vld [vmem:[%s397 + $0x218] sm:$0xff]
        %v544 = vld [vmem:[%s397 + $0x220] sm:$0xff]
        %v545 = vld [vmem:[%s397 + $0x228] sm:$0xff]
        %v546 = vld [vmem:[%s397 + $0x230] sm:$0xff]
        %v547 = vld [vmem:[%s397 + $0x238] sm:$0xff]
        %v548 = vld [vmem:[%s397 + $0x240] sm:$0xff]
        %v549 = vld [vmem:[%s397 + $0x248] sm:$0xff]
        %v550 = vld [vmem:[%s397 + $0x250] sm:$0xff]
        %v551 = vld [vmem:[%s397 + $0x258] sm:$0xff]
        %v552 = vld [vmem:[%s397 + $0x260] sm:$0xff]
        %v553 = vld [vmem:[%s397 + $0x268] sm:$0xff]
        %v554 = vld [vmem:[%s397 + $0x270] sm:$0xff]
        %v555 = vld [vmem:[%s397 + $0x278] sm:$0xff]
        %v556 = vld [vmem:[%s397 + $0x280] sm:$0xff]
        %v557 = vld [vmem:[%s397 + $0x288] sm:$0xff]
        %v558 = vld [vmem:[%s397 + $0x290] sm:$0xff]
        %v559 = vld [vmem:[%s397 + $0x298] sm:$0xff]
        %v560 = vld [vmem:[%s397 + $0x2a0] sm:$0xff]
        %v561 = vld [vmem:[%s397 + $0x2a8] sm:$0xff]
        %v562 = vld [vmem:[%s397 + $0x2b0] sm:$0xff]
        %v563 = vld [vmem:[%s397 + $0x2b8] sm:$0xff]
        %v564 = vld [vmem:[%s397 + $0x2c0] sm:$0xff]
        %v565 = vld [vmem:[%s397 + $0x2c8] sm:$0xff]
        %v566 = vld [vmem:[%s397 + $0x2d0] sm:$0xff]
        %v567 = vld [vmem:[%s397 + $0x2d8] sm:$0xff]
        %v568 = vld [vmem:[%s397 + $0x2e0] sm:$0xff]
        %v569 = vld [vmem:[%s397 + $0x2e8] sm:$0xff]
        %v570 = vld [vmem:[%s397 + $0x2f0] sm:$0xff]
        %v571 = vld [vmem:[%s397 + $0x2f8] sm:$0xff]
        %v572 = vld [vmem:[%s397 + $0x300] sm:$0xff]
        %v573 = vld [vmem:[%s397 + $0x308] sm:$0xff]
        %v574 = vld [vmem:[%s397 + $0x310] sm:$0xff]
        %v575 = vld [vmem:[%s397 + $0x318] sm:$0xff]
        %v576 = vld [vmem:[%s397 + $0x320] sm:$0xff]
        %v577 = vld [vmem:[%s397 + $0x328] sm:$0xff]
        %v578 = vld [vmem:[%s397 + $0x330] sm:$0xff]
        %v579 = vld [vmem:[%s397 + $0x338] sm:$0xff]
        %v580 = vld [vmem:[%s397 + $0x340] sm:$0xff]
        %v581 = vld [vmem:[%s397 + $0x348] sm:$0xff]
        %v582 = vld [vmem:[%s397 + $0x350] sm:$0xff]
        %v583 = vld [vmem:[%s397 + $0x358] sm:$0xff]
        %v584 = vld [vmem:[%s397 + $0x360] sm:$0xff]
        %v585 = vld [vmem:[%s397 + $0x368] sm:$0xff]
        %v586 = vld [vmem:[%s397 + $0x370] sm:$0xff]
        %v587 = vld [vmem:[%s397 + $0x378] sm:$0xff]
        %v588 = vld [vmem:[%s397 + $0x380] sm:$0xff]
        %v589 = vld [vmem:[%s397 + $0x388] sm:$0xff]
        %v590 = vld [vmem:[%s397 + $0x390] sm:$0xff]
        %v591 = vld [vmem:[%s397 + $0x398] sm:$0xff]
        %v592 = vld [vmem:[%s397 + $0x3a0] sm:$0xff]
        %v593 = vld [vmem:[%s397 + $0x3a8] sm:$0xff]
        %v594 = vld [vmem:[%s397 + $0x3b0] sm:$0xff]
        %v595 = vld [vmem:[%s397 + $0x3b8] sm:$0xff]
        %v596 = vld [vmem:[%s397 + $0x3c0] sm:$0xff]
        %v597 = vld [vmem:[%s397 + $0x3c8] sm:$0xff]
        %v598 = vld [vmem:[%s397 + $0x3d0] sm:$0xff]
        %v599 = vld [vmem:[%s397 + $0x3d8] sm:$0xff]
        %v600 = vld [vmem:[%s397 + $0x3e0] sm:$0xff]
        %v601 = vld [vmem:[%s397 + $0x3e8] sm:$0xff]
        %v602 = vld [vmem:[%s397 + $0x3f0] sm:$0xff]
        %v603 = vld [vmem:[%s397 + $0x3f8] sm:$0xff]
        %v604 = vld [vmem:[%s404] sm:$0xff]
        %v605 = vld [vmem:[%s404 + $0x8] sm:$0xff]
        %v606 = vld [vmem:[%s404 + $0x10] sm:$0xff]
        %v607 = vld [vmem:[%s404 + $0x18] sm:$0xff]
        %v608 = vld [vmem:[%s404 + $0x20] sm:$0xff]
        %v609 = vld [vmem:[%s404 + $0x28] sm:$0xff]
        %v610 = vld [vmem:[%s404 + $0x30] sm:$0xff]
        %v611 = vld [vmem:[%s404 + $0x38] sm:$0xff]
        %v612 = vld [vmem:[%s404 + $0x40] sm:$0xff]
        %v613 = vld [vmem:[%s404 + $0x48] sm:$0xff]
        %v614 = vld [vmem:[%s404 + $0x50] sm:$0xff]
        %v615 = vld [vmem:[%s404 + $0x58] sm:$0xff]
        %v616 = vld [vmem:[%s404 + $0x60] sm:$0xff]
        %v617 = vld [vmem:[%s404 + $0x68] sm:$0xff]
        %v618 = vld [vmem:[%s404 + $0x70] sm:$0xff]
        %v619 = vld [vmem:[%s404 + $0x78] sm:$0xff]
        %v620 = vld [vmem:[%s404 + $0x80] sm:$0xff]
        %v621 = vld [vmem:[%s404 + $0x88] sm:$0xff]
        %v622 = vld [vmem:[%s404 + $0x90] sm:$0xff]
        %v623 = vld [vmem:[%s404 + $0x98] sm:$0xff]
        %v624 = vld [vmem:[%s404 + $0xa0] sm:$0xff]
        %v625 = vld [vmem:[%s404 + $0xa8] sm:$0xff]
        %v626 = vld [vmem:[%s404 + $0xb0] sm:$0xff]
        %v627 = vld [vmem:[%s404 + $0xb8] sm:$0xff]
        %v628 = vld [vmem:[%s404 + $0xc0] sm:$0xff]
        %v629 = vld [vmem:[%s404 + $0xc8] sm:$0xff]
        %v630 = vld [vmem:[%s404 + $0xd0] sm:$0xff]
        %v631 = vld [vmem:[%s404 + $0xd8] sm:$0xff]
        %v632 = vld [vmem:[%s404 + $0xe0] sm:$0xff]
        %v633 = vld [vmem:[%s404 + $0xe8] sm:$0xff]
        %v634 = vld [vmem:[%s404 + $0xf0] sm:$0xff]
        %v635 = vld [vmem:[%s404 + $0xf8] sm:$0xff]
        %v636 = vld [vmem:[%s404 + $0x100] sm:$0xff]
        %v637 = vld [vmem:[%s404 + $0x108] sm:$0xff]
        %v638 = vld [vmem:[%s404 + $0x110] sm:$0xff]
        %v639 = vld [vmem:[%s404 + $0x118] sm:$0xff]
        %v640 = vld [vmem:[%s404 + $0x120] sm:$0xff]
        %v641 = vld [vmem:[%s404 + $0x128] sm:$0xff]
        %v642 = vld [vmem:[%s404 + $0x130] sm:$0xff]
        %v643 = vld [vmem:[%s404 + $0x138] sm:$0xff]
        %v644 = vld [vmem:[%s404 + $0x140] sm:$0xff]
        %v645 = vld [vmem:[%s404 + $0x148] sm:$0xff]
        %v646 = vld [vmem:[%s404 + $0x150] sm:$0xff]
        %v647 = vld [vmem:[%s404 + $0x158] sm:$0xff]
        %v648 = vld [vmem:[%s404 + $0x160] sm:$0xff]
        %v649 = vld [vmem:[%s404 + $0x168] sm:$0xff]
        %v650 = vld [vmem:[%s404 + $0x170] sm:$0xff]
        %v651 = vld [vmem:[%s404 + $0x178] sm:$0xff]
        %v652 = vld [vmem:[%s404 + $0x180] sm:$0xff]
        %v653 = vld [vmem:[%s404 + $0x188] sm:$0xff]
        %v654 = vld [vmem:[%s404 + $0x190] sm:$0xff]
        %v655 = vld [vmem:[%s404 + $0x198] sm:$0xff]
        %v656 = vld [vmem:[%s404 + $0x1a0] sm:$0xff]
        %v657 = vld [vmem:[%s404 + $0x1a8] sm:$0xff]
        %v658 = vld [vmem:[%s404 + $0x1b0] sm:$0xff]
        %v659 = vld [vmem:[%s404 + $0x1b8] sm:$0xff]
        %v660 = vld [vmem:[%s404 + $0x1c0] sm:$0xff]
        %v661 = vld [vmem:[%s404 + $0x1c8] sm:$0xff]
        %v662 = vld [vmem:[%s404 + $0x1d0] sm:$0xff]
        %v663 = vld [vmem:[%s404 + $0x1d8] sm:$0xff]
        %v664 = vld [vmem:[%s404 + $0x1e0] sm:$0xff]
        %v665 = vld [vmem:[%s404 + $0x1e8] sm:$0xff]
        %v666 = vld [vmem:[%s404 + $0x1f0] sm:$0xff]
        %v667 = vld [vmem:[%s404 + $0x1f8] sm:$0xff]
        %v668 = vld [vmem:[%s404 + $0x200] sm:$0xff]
        %v669 = vld [vmem:[%s404 + $0x208] sm:$0xff]
        %v670 = vld [vmem:[%s404 + $0x210] sm:$0xff]
        %v671 = vld [vmem:[%s404 + $0x218] sm:$0xff]
        %v672 = vld [vmem:[%s404 + $0x220] sm:$0xff]
        %v673 = vld [vmem:[%s404 + $0x228] sm:$0xff]
        %v674 = vld [vmem:[%s404 + $0x230] sm:$0xff]
        %v675 = vld [vmem:[%s404 + $0x238] sm:$0xff]
        %v676 = vld [vmem:[%s404 + $0x240] sm:$0xff]
        %v677 = vld [vmem:[%s404 + $0x248] sm:$0xff]
        %v678 = vld [vmem:[%s404 + $0x250] sm:$0xff]
        %v679 = vld [vmem:[%s404 + $0x258] sm:$0xff]
        %v680 = vld [vmem:[%s404 + $0x260] sm:$0xff]
        %v681 = vld [vmem:[%s404 + $0x268] sm:$0xff]
        %v682 = vld [vmem:[%s404 + $0x270] sm:$0xff]
        %v683 = vld [vmem:[%s404 + $0x278] sm:$0xff]
        %v684 = vld [vmem:[%s404 + $0x280] sm:$0xff]
        %v685 = vld [vmem:[%s404 + $0x288] sm:$0xff]
        %v686 = vld [vmem:[%s404 + $0x290] sm:$0xff]
        %v687 = vld [vmem:[%s404 + $0x298] sm:$0xff]
        %v688 = vld [vmem:[%s404 + $0x2a0] sm:$0xff]
        %v689 = vld [vmem:[%s404 + $0x2a8] sm:$0xff]
        %v690 = vld [vmem:[%s404 + $0x2b0] sm:$0xff]
        %v691 = vld [vmem:[%s404 + $0x2b8] sm:$0xff]
        %v692 = vld [vmem:[%s404 + $0x2c0] sm:$0xff]
        %v693 = vld [vmem:[%s404 + $0x2c8] sm:$0xff]
        %v694 = vld [vmem:[%s404 + $0x2d0] sm:$0xff]
        %v695 = vld [vmem:[%s404 + $0x2d8] sm:$0xff]
        %v696 = vld [vmem:[%s404 + $0x2e0] sm:$0xff]
        %v697 = vld [vmem:[%s404 + $0x2e8] sm:$0xff]
        %v698 = vld [vmem:[%s404 + $0x2f0] sm:$0xff]
        %v699 = vld [vmem:[%s404 + $0x2f8] sm:$0xff]
        %v700 = vld [vmem:[%s404 + $0x300] sm:$0xff]
        %v701 = vld [vmem:[%s404 + $0x308] sm:$0xff]
        %v702 = vld [vmem:[%s404 + $0x310] sm:$0xff]
        %v703 = vld [vmem:[%s404 + $0x318] sm:$0xff]
        %v704 = vld [vmem:[%s404 + $0x320] sm:$0xff]
        %v705 = vld [vmem:[%s404 + $0x328] sm:$0xff]
        %v706 = vld [vmem:[%s404 + $0x330] sm:$0xff]
        %v707 = vld [vmem:[%s404 + $0x338] sm:$0xff]
        %v708 = vld [vmem:[%s404 + $0x340] sm:$0xff]
        %v709 = vld [vmem:[%s404 + $0x348] sm:$0xff]
        %v710 = vld [vmem:[%s404 + $0x350] sm:$0xff]
        %v711 = vld [vmem:[%s404 + $0x358] sm:$0xff]
        %v712 = vld [vmem:[%s404 + $0x360] sm:$0xff]
        %v713 = vld [vmem:[%s404 + $0x368] sm:$0xff]
        %v714 = vld [vmem:[%s404 + $0x370] sm:$0xff]
        %v715 = vld [vmem:[%s404 + $0x378] sm:$0xff]
        %v716 = vld [vmem:[%s404 + $0x380] sm:$0xff]
        %v717 = vld [vmem:[%s404 + $0x388] sm:$0xff]
        %v718 = vld [vmem:[%s404 + $0x390] sm:$0xff]
        %v719 = vld [vmem:[%s404 + $0x398] sm:$0xff]
        %v720 = vld [vmem:[%s404 + $0x3a0] sm:$0xff]
        %v721 = vld [vmem:[%s404 + $0x3a8] sm:$0xff]
        %v722 = vld [vmem:[%s404 + $0x3b0] sm:$0xff]
        %v723 = vld [vmem:[%s404 + $0x3b8] sm:$0xff]
        %v724 = vld [vmem:[%s404 + $0x3c0] sm:$0xff]
        %v725 = vld [vmem:[%s404 + $0x3c8] sm:$0xff]
        %v726 = vld [vmem:[%s404 + $0x3d0] sm:$0xff]
        %v727 = vld [vmem:[%s404 + $0x3d8] sm:$0xff]
        %v728 = vld [vmem:[%s404 + $0x3e0] sm:$0xff]
        %v729 = vld [vmem:[%s404 + $0x3e8] sm:$0xff]
        %v730 = vld [vmem:[%s404 + $0x3f0] sm:$0xff]
        %v731 = vld [vmem:[%s404 + $0x3f8] sm:$0xff]
        %v732 = vadd.f32 %v476, %v604
        %v733 = vadd.f32 %v477, %v605
        %v734 = vadd.f32 %v478, %v606
        %v735 = vadd.f32 %v479, %v607
        %v736 = vadd.f32 %v480, %v608
        %v737 = vadd.f32 %v481, %v609
        %v738 = vadd.f32 %v482, %v610
        %v739 = vadd.f32 %v483, %v611
        %v740 = vadd.f32 %v484, %v612
        %v741 = vadd.f32 %v485, %v613
        %v742 = vadd.f32 %v486, %v614
        %v743 = vadd.f32 %v487, %v615
        %v744 = vadd.f32 %v488, %v616
        %v745 = vadd.f32 %v489, %v617
        %v746 = vadd.f32 %v490, %v618
        %v747 = vadd.f32 %v491, %v619
        %v748 = vadd.f32 %v492, %v620
        %v749 = vadd.f32 %v493, %v621
        %v750 = vadd.f32 %v494, %v622
        %v751 = vadd.f32 %v495, %v623
        %v752 = vadd.f32 %v496, %v624
        %v753 = vadd.f32 %v497, %v625
        %v754 = vadd.f32 %v498, %v626
        %v755 = vadd.f32 %v499, %v627
        %v756 = vadd.f32 %v500, %v628
        %v757 = vadd.f32 %v501, %v629
        %v758 = vadd.f32 %v502, %v630
        %v759 = vadd.f32 %v503, %v631
        %v760 = vadd.f32 %v504, %v632
        %v761 = vadd.f32 %v505, %v633
        %v762 = vadd.f32 %v506, %v634
        %v763 = vadd.f32 %v507, %v635
        %v764 = vadd.f32 %v508, %v636
        %v765 = vadd.f32 %v509, %v637
        %v766 = vadd.f32 %v510, %v638
        %v767 = vadd.f32 %v511, %v639
        %v768 = vadd.f32 %v512, %v640
        %v769 = vadd.f32 %v513, %v641
        %v770 = vadd.f32 %v514, %v642
        %v771 = vadd.f32 %v515, %v643
        %v772 = vadd.f32 %v516, %v644
        %v773 = vadd.f32 %v517, %v645
        %v774 = vadd.f32 %v518, %v646
        %v775 = vadd.f32 %v519, %v647
        %v776 = vadd.f32 %v520, %v648
        %v777 = vadd.f32 %v521, %v649
        %v778 = vadd.f32 %v522, %v650
        %v779 = vadd.f32 %v523, %v651
        %v780 = vadd.f32 %v524, %v652
        %v781 = vadd.f32 %v525, %v653
        %v782 = vadd.f32 %v526, %v654
        %v783 = vadd.f32 %v527, %v655
        %v784 = vadd.f32 %v528, %v656
        %v785 = vadd.f32 %v529, %v657
        %v786 = vadd.f32 %v530, %v658
        %v787 = vadd.f32 %v531, %v659
        %v788 = vadd.f32 %v532, %v660
        %v789 = vadd.f32 %v533, %v661
        %v790 = vadd.f32 %v534, %v662
        %v791 = vadd.f32 %v535, %v663
        %v792 = vadd.f32 %v536, %v664
        %v793 = vadd.f32 %v537, %v665
        %v794 = vadd.f32 %v538, %v666
        %v795 = vadd.f32 %v539, %v667
        %v796 = vadd.f32 %v540, %v668
        %v797 = vadd.f32 %v541, %v669
        %v798 = vadd.f32 %v542, %v670
        %v799 = vadd.f32 %v543, %v671
        %v800 = vadd.f32 %v544, %v672
        %v801 = vadd.f32 %v545, %v673
        %v802 = vadd.f32 %v546, %v674
        %v803 = vadd.f32 %v547, %v675
        %v804 = vadd.f32 %v548, %v676
        %v805 = vadd.f32 %v549, %v677
        %v806 = vadd.f32 %v550, %v678
        %v807 = vadd.f32 %v551, %v679
        %v808 = vadd.f32 %v552, %v680
        %v809 = vadd.f32 %v553, %v681
        %v810 = vadd.f32 %v554, %v682
        %v811 = vadd.f32 %v555, %v683
        %v812 = vadd.f32 %v556, %v684
        %v813 = vadd.f32 %v557, %v685
        %v814 = vadd.f32 %v558, %v686
        %v815 = vadd.f32 %v559, %v687
        %v816 = vadd.f32 %v560, %v688
        %v817 = vadd.f32 %v561, %v689
        %v818 = vadd.f32 %v562, %v690
        %v819 = vadd.f32 %v563, %v691
        %v820 = vadd.f32 %v564, %v692
        %v821 = vadd.f32 %v565, %v693
        %v822 = vadd.f32 %v566, %v694
        %v823 = vadd.f32 %v567, %v695
        %v824 = vadd.f32 %v568, %v696
        %v825 = vadd.f32 %v569, %v697
        %v826 = vadd.f32 %v570, %v698
        %v827 = vadd.f32 %v571, %v699
        %v828 = vadd.f32 %v572, %v700
        %v829 = vadd.f32 %v573, %v701
        %v830 = vadd.f32 %v574, %v702
        %v831 = vadd.f32 %v575, %v703
        %v832 = vadd.f32 %v576, %v704
        %v833 = vadd.f32 %v577, %v705
        %v834 = vadd.f32 %v578, %v706
        %v835 = vadd.f32 %v579, %v707
        %v836 = vadd.f32 %v580, %v708
        %v837 = vadd.f32 %v581, %v709
        %v838 = vadd.f32 %v582, %v710
        %v839 = vadd.f32 %v583, %v711
        %v840 = vadd.f32 %v584, %v712
        %v841 = vadd.f32 %v585, %v713
        %v842 = vadd.f32 %v586, %v714
        %v843 = vadd.f32 %v587, %v715
        %v844 = vadd.f32 %v588, %v716
        %v845 = vadd.f32 %v589, %v717
        %v846 = vadd.f32 %v590, %v718
        %v847 = vadd.f32 %v591, %v719
        %v848 = vadd.f32 %v592, %v720
        %v849 = vadd.f32 %v593, %v721
        %v850 = vadd.f32 %v594, %v722
        %v851 = vadd.f32 %v595, %v723
        %v852 = vadd.f32 %v596, %v724
        %v853 = vadd.f32 %v597, %v725
        %v854 = vadd.f32 %v598, %v726
        %v855 = vadd.f32 %v599, %v727
        %v856 = vadd.f32 %v600, %v728
        %v857 = vadd.f32 %v601, %v729
        %v858 = vadd.f32 %v602, %v730
        %v859 = vadd.f32 %v603, %v731
        %v860 = vmax.f32 %v732, 0.0
        %v861 = vmax.f32 %v733, 0.0
        %v862 = vmax.f32 %v734, 0.0
        %v863 = vmax.f32 %v735, 0.0
        %v864 = vmax.f32 %v736, 0.0
        %v865 = vmax.f32 %v737, 0.0
        %v866 = vmax.f32 %v738, 0.0
        %v867 = vmax.f32 %v739, 0.0
        %v868 = vmax.f32 %v740, 0.0
        %v869 = vmax.f32 %v741, 0.0
        %v870 = vmax.f32 %v742, 0.0
        %v871 = vmax.f32 %v743, 0.0
        %v872 = vmax.f32 %v744, 0.0
        %v873 = vmax.f32 %v745, 0.0
        %v874 = vmax.f32 %v746, 0.0
        %v875 = vmax.f32 %v747, 0.0
        %v876 = vmax.f32 %v748, 0.0
        %v877 = vmax.f32 %v749, 0.0
        %v878 = vmax.f32 %v750, 0.0
        %v879 = vmax.f32 %v751, 0.0
        %v880 = vmax.f32 %v752, 0.0
        %v881 = vmax.f32 %v753, 0.0
        %v882 = vmax.f32 %v754, 0.0
        %v883 = vmax.f32 %v755, 0.0
        %v884 = vmax.f32 %v756, 0.0
        %v885 = vmax.f32 %v757, 0.0
        %v886 = vmax.f32 %v758, 0.0
        %v887 = vmax.f32 %v759, 0.0
        %v888 = vmax.f32 %v760, 0.0
        %v889 = vmax.f32 %v761, 0.0
        %v890 = vmax.f32 %v762, 0.0
        %v891 = vmax.f32 %v763, 0.0
        %v892 = vmax.f32 %v764, 0.0
        %v893 = vmax.f32 %v765, 0.0
        %v894 = vmax.f32 %v766, 0.0
        %v895 = vmax.f32 %v767, 0.0
        %v896 = vmax.f32 %v768, 0.0
        %v897 = vmax.f32 %v769, 0.0
        %v898 = vmax.f32 %v770, 0.0
        %v899 = vmax.f32 %v771, 0.0
        %v900 = vmax.f32 %v772, 0.0
        %v901 = vmax.f32 %v773, 0.0
        %v902 = vmax.f32 %v774, 0.0
        %v903 = vmax.f32 %v775, 0.0
        %v904 = vmax.f32 %v776, 0.0
        %v905 = vmax.f32 %v777, 0.0
        %v906 = vmax.f32 %v778, 0.0
        %v907 = vmax.f32 %v779, 0.0
        %v908 = vmax.f32 %v780, 0.0
        %v909 = vmax.f32 %v781, 0.0
        %v910 = vmax.f32 %v782, 0.0
        %v911 = vmax.f32 %v783, 0.0
        %v912 = vmax.f32 %v784, 0.0
        %v913 = vmax.f32 %v785, 0.0
        %v914 = vmax.f32 %v786, 0.0
        %v915 = vmax.f32 %v787, 0.0
        %v916 = vmax.f32 %v788, 0.0
        %v917 = vmax.f32 %v789, 0.0
        %v918 = vmax.f32 %v790, 0.0
        %v919 = vmax.f32 %v791, 0.0
        %v920 = vmax.f32 %v792, 0.0
        %v921 = vmax.f32 %v793, 0.0
        %v922 = vmax.f32 %v794, 0.0
        %v923 = vmax.f32 %v795, 0.0
        %v924 = vmax.f32 %v796, 0.0
        %v925 = vmax.f32 %v797, 0.0
        %v926 = vmax.f32 %v798, 0.0
        %v927 = vmax.f32 %v799, 0.0
        %v928 = vmax.f32 %v800, 0.0
        %v929 = vmax.f32 %v801, 0.0
        %v930 = vmax.f32 %v802, 0.0
        %v931 = vmax.f32 %v803, 0.0
        %v932 = vmax.f32 %v804, 0.0
        %v933 = vmax.f32 %v805, 0.0
        %v934 = vmax.f32 %v806, 0.0
        %v935 = vmax.f32 %v807, 0.0
        %v936 = vmax.f32 %v808, 0.0
        %v937 = vmax.f32 %v809, 0.0
        %v938 = vmax.f32 %v810, 0.0
        %v939 = vmax.f32 %v811, 0.0
        %v940 = vmax.f32 %v812, 0.0
        %v941 = vmax.f32 %v813, 0.0
        %v942 = vmax.f32 %v814, 0.0
        %v943 = vmax.f32 %v815, 0.0
        %v944 = vmax.f32 %v816, 0.0
        %v945 = vmax.f32 %v817, 0.0
        %v946 = vmax.f32 %v818, 0.0
        %v947 = vmax.f32 %v819, 0.0
        %v948 = vmax.f32 %v820, 0.0
        %v949 = vmax.f32 %v821, 0.0
        %v950 = vmax.f32 %v822, 0.0
        %v951 = vmax.f32 %v823, 0.0
        %v952 = vmax.f32 %v824, 0.0
        %v953 = vmax.f32 %v825, 0.0
        %v954 = vmax.f32 %v826, 0.0
        %v955 = vmax.f32 %v827, 0.0
        %v956 = vmax.f32 %v828, 0.0
        %v957 = vmax.f32 %v829, 0.0
        %v958 = vmax.f32 %v830, 0.0
        %v959 = vmax.f32 %v831, 0.0
        %v960 = vmax.f32 %v832, 0.0
        %v961 = vmax.f32 %v833, 0.0
        %v962 = vmax.f32 %v834, 0.0
        %v963 = vmax.f32 %v835, 0.0
        %v964 = vmax.f32 %v836, 0.0
        %v965 = vmax.f32 %v837, 0.0
        %v966 = vmax.f32 %v838, 0.0
        %v967 = vmax.f32 %v839, 0.0
        %v968 = vmax.f32 %v840, 0.0
        %v969 = vmax.f32 %v841, 0.0
        %v970 = vmax.f32 %v842, 0.0
        %v971 = vmax.f32 %v843, 0.0
        %v972 = vmax.f32 %v844, 0.0
        %v973 = vmax.f32 %v845, 0.0
        %v974 = vmax.f32 %v846, 0.0
        %v975 = vmax.f32 %v847, 0.0
        %v976 = vmax.f32 %v848, 0.0
        %v977 = vmax.f32 %v849, 0.0
        %v978 = vmax.f32 %v850, 0.0
        %v979 = vmax.f32 %v851, 0.0
        %v980 = vmax.f32 %v852, 0.0
        %v981 = vmax.f32 %v853, 0.0
        %v982 = vmax.f32 %v854, 0.0
        %v983 = vmax.f32 %v855, 0.0
        %v984 = vmax.f32 %v856, 0.0
        %v985 = vmax.f32 %v857, 0.0
        %v986 = vmax.f32 %v858, 0.0
        %v987 = vmax.f32 %v859, 0.0
        %v988 = vpack.c.bf16 %v862, %v860
        %v989 = vpack.c.bf16 %v863, %v861
        %v990 = vpack.c.bf16 %v866, %v864
        %v991 = vpack.c.bf16 %v867, %v865
        %v992 = vpack.c.bf16 %v870, %v868
        %v993 = vpack.c.bf16 %v871, %v869
        %v994 = vpack.c.bf16 %v874, %v872
        %v995 = vpack.c.bf16 %v875, %v873
        %v996 = vpack.c.bf16 %v878, %v876
        %v997 = vpack.c.bf16 %v879, %v877
        %v998 = vpack.c.bf16 %v882, %v880
        %v999 = vpack.c.bf16 %v883, %v881
        %v1000 = vpack.c.bf16 %v886, %v884
        %v1001 = vpack.c.bf16 %v887, %v885
        %v1002 = vpack.c.bf16 %v890, %v888
        %v1003 = vpack.c.bf16 %v891, %v889
        %v1004 = vpack.c.bf16 %v894, %v892
        %v1005 = vpack.c.bf16 %v895, %v893
        %v1006 = vpack.c.bf16 %v898, %v896
        %v1007 = vpack.c.bf16 %v899, %v897
        %v1008 = vpack.c.bf16 %v902, %v900
        %v1009 = vpack.c.bf16 %v903, %v901
        %v1010 = vpack.c.bf16 %v906, %v904
        %v1011 = vpack.c.bf16 %v907, %v905
        %v1012 = vpack.c.bf16 %v910, %v908
        %v1013 = vpack.c.bf16 %v911, %v909
        %v1014 = vpack.c.bf16 %v914, %v912
        %v1015 = vpack.c.bf16 %v915, %v913
        %v1016 = vpack.c.bf16 %v918, %v916
        %v1017 = vpack.c.bf16 %v919, %v917
        %v1018 = vpack.c.bf16 %v922, %v920
        %v1019 = vpack.c.bf16 %v923, %v921
        %v1020 = vpack.c.bf16 %v926, %v924
        %v1021 = vpack.c.bf16 %v927, %v925
        %v1022 = vpack.c.bf16 %v930, %v928
        %v1023 = vpack.c.bf16 %v931, %v929
        %v1024 = vpack.c.bf16 %v934, %v932
        %v1025 = vpack.c.bf16 %v935, %v933
        %v1026 = vpack.c.bf16 %v938, %v936
        %v1027 = vpack.c.bf16 %v939, %v937
        %v1028 = vpack.c.bf16 %v942, %v940
        %v1029 = vpack.c.bf16 %v943, %v941
        %v1030 = vpack.c.bf16 %v946, %v944
        %v1031 = vpack.c.bf16 %v947, %v945
        %v1032 = vpack.c.bf16 %v950, %v948
        %v1033 = vpack.c.bf16 %v951, %v949
        %v1034 = vpack.c.bf16 %v954, %v952
        %v1035 = vpack.c.bf16 %v955, %v953
        %v1036 = vpack.c.bf16 %v958, %v956
        %v1037 = vpack.c.bf16 %v959, %v957
        %v1038 = vpack.c.bf16 %v962, %v960
        %v1039 = vpack.c.bf16 %v963, %v961
        %v1040 = vpack.c.bf16 %v966, %v964
        %v1041 = vpack.c.bf16 %v967, %v965
        %v1042 = vpack.c.bf16 %v970, %v968
        %v1043 = vpack.c.bf16 %v971, %v969
        %v1044 = vpack.c.bf16 %v974, %v972
        %v1045 = vpack.c.bf16 %v975, %v973
        %v1046 = vpack.c.bf16 %v978, %v976
        %v1047 = vpack.c.bf16 %v979, %v977
        %v1048 = vpack.c.bf16 %v982, %v980
        %v1049 = vpack.c.bf16 %v983, %v981
        %v1050 = vpack.c.bf16 %v986, %v984
        %v1051 = vpack.c.bf16 %v987, %v985
        %v1052 = vld [vmem:[#allocation2] sm:$0xff]
        %v1053 = vld [vmem:[#allocation2 + $0x8] sm:$0xff]
        %v1054 = vld [vmem:[#allocation2 + $0x10] sm:$0xff]
        %v1055 = vld [vmem:[#allocation2 + $0x18] sm:$0xff]
        %v1056 = vld [vmem:[#allocation2 + $0x20] sm:$0xff]
        %v1057 = vld [vmem:[#allocation2 + $0x28] sm:$0xff]
        %v1058 = vld [vmem:[#allocation2 + $0x30] sm:$0xff]
        %v1059 = vld [vmem:[#allocation2 + $0x38] sm:$0xff]
        %v1060 = vld [vmem:[#allocation2 + $0x40] sm:$0xff]
        %v1061 = vld [vmem:[#allocation2 + $0x48] sm:$0xff]
        %v1062 = vld [vmem:[#allocation2 + $0x50] sm:$0xff]
        %v1063 = vld [vmem:[#allocation2 + $0x58] sm:$0xff]
        %v1064 = vld [vmem:[#allocation2 + $0x60] sm:$0xff]
        %v1065 = vld [vmem:[#allocation2 + $0x68] sm:$0xff]
        %v1066 = vld [vmem:[#allocation2 + $0x70] sm:$0xff]
        %v1067 = vld [vmem:[#allocation2 + $0x78] sm:$0xff]
        %v1068 = vld [vmem:[#allocation2 + $0x80] sm:$0xff]
        %v1069 = vld [vmem:[#allocation2 + $0x88] sm:$0xff]
        %v1070 = vld [vmem:[#allocation2 + $0x90] sm:$0xff]
        %v1071 = vld [vmem:[#allocation2 + $0x98] sm:$0xff]
        %v1072 = vld [vmem:[#allocation2 + $0xa0] sm:$0xff]
        %v1073 = vld [vmem:[#allocation2 + $0xa8] sm:$0xff]
        %v1074 = vld [vmem:[#allocation2 + $0xb0] sm:$0xff]
        %v1075 = vld [vmem:[#allocation2 + $0xb8] sm:$0xff]
        %v1076 = vld [vmem:[#allocation2 + $0xc0] sm:$0xff]
        %v1077 = vld [vmem:[#allocation2 + $0xc8] sm:$0xff]
        %v1078 = vld [vmem:[#allocation2 + $0xd0] sm:$0xff]
        %v1079 = vld [vmem:[#allocation2 + $0xd8] sm:$0xff]
        %v1080 = vld [vmem:[#allocation2 + $0xe0] sm:$0xff]
        %v1081 = vld [vmem:[#allocation2 + $0xe8] sm:$0xff]
        %v1082 = vld [vmem:[#allocation2 + $0xf0] sm:$0xff]
        %v1083 = vld [vmem:[#allocation2 + $0xf8] sm:$0xff]
        %v1084 = vld [vmem:[#allocation2 + $0x100] sm:$0xff]
        %v1085 = vld [vmem:[#allocation2 + $0x108] sm:$0xff]
        %v1086 = vld [vmem:[#allocation2 + $0x110] sm:$0xff]
        %v1087 = vld [vmem:[#allocation2 + $0x118] sm:$0xff]
        %v1088 = vld [vmem:[#allocation2 + $0x120] sm:$0xff]
        %v1089 = vld [vmem:[#allocation2 + $0x128] sm:$0xff]
        %v1090 = vld [vmem:[#allocation2 + $0x130] sm:$0xff]
        %v1091 = vld [vmem:[#allocation2 + $0x138] sm:$0xff]
        %v1092 = vld [vmem:[#allocation2 + $0x140] sm:$0xff]
        %v1093 = vld [vmem:[#allocation2 + $0x148] sm:$0xff]
        %v1094 = vld [vmem:[#allocation2 + $0x150] sm:$0xff]
        %v1095 = vld [vmem:[#allocation2 + $0x158] sm:$0xff]
        %v1096 = vld [vmem:[#allocation2 + $0x160] sm:$0xff]
        %v1097 = vld [vmem:[#allocation2 + $0x168] sm:$0xff]
        %v1098 = vld [vmem:[#allocation2 + $0x170] sm:$0xff]
        %v1099 = vld [vmem:[#allocation2 + $0x178] sm:$0xff]
        %v1100 = vld [vmem:[#allocation2 + $0x180] sm:$0xff]
        %v1101 = vld [vmem:[#allocation2 + $0x188] sm:$0xff]
        %v1102 = vld [vmem:[#allocation2 + $0x190] sm:$0xff]
        %v1103 = vld [vmem:[#allocation2 + $0x198] sm:$0xff]
        %v1104 = vld [vmem:[#allocation2 + $0x1a0] sm:$0xff]
        %v1105 = vld [vmem:[#allocation2 + $0x1a8] sm:$0xff]
        %v1106 = vld [vmem:[#allocation2 + $0x1b0] sm:$0xff]
        %v1107 = vld [vmem:[#allocation2 + $0x1b8] sm:$0xff]
        %v1108 = vld [vmem:[#allocation2 + $0x1c0] sm:$0xff]
        %v1109 = vld [vmem:[#allocation2 + $0x1c8] sm:$0xff]
        %v1110 = vld [vmem:[#allocation2 + $0x1d0] sm:$0xff]
        %v1111 = vld [vmem:[#allocation2 + $0x1d8] sm:$0xff]
        %v1112 = vld [vmem:[#allocation2 + $0x1e0] sm:$0xff]
        %v1113 = vld [vmem:[#allocation2 + $0x1e8] sm:$0xff]
        %v1114 = vld [vmem:[#allocation2 + $0x1f0] sm:$0xff]
        %v1115 = vld [vmem:[#allocation2 + $0x1f8] sm:$0xff]
        %v1116 = vld [vmem:[%s360] sm:$0xff]
        %v1117 = vld [vmem:[%s360 + $0x8] sm:$0xff]
        %v1118 = vld [vmem:[%s360 + $0x10] sm:$0xff]
        %v1119 = vld [vmem:[%s360 + $0x18] sm:$0xff]
        %v1120 = vld [vmem:[%s360 + $0x20] sm:$0xff]
        %v1121 = vld [vmem:[%s360 + $0x28] sm:$0xff]
        %v1122 = vld [vmem:[%s360 + $0x30] sm:$0xff]
        %v1123 = vld [vmem:[%s360 + $0x38] sm:$0xff]
        %v1124 = vld [vmem:[%s360 + $0x40] sm:$0xff]
        %v1125 = vld [vmem:[%s360 + $0x48] sm:$0xff]
        %v1126 = vld [vmem:[%s360 + $0x50] sm:$0xff]
        %v1127 = vld [vmem:[%s360 + $0x58] sm:$0xff]
        %v1128 = vld [vmem:[%s360 + $0x60] sm:$0xff]
        %v1129 = vld [vmem:[%s360 + $0x68] sm:$0xff]
        %v1130 = vld [vmem:[%s360 + $0x70] sm:$0xff]
        %v1131 = vld [vmem:[%s360 + $0x78] sm:$0xff]
        %v1132 = vld [vmem:[%s360 + $0x80] sm:$0xff]
        %v1133 = vld [vmem:[%s360 + $0x88] sm:$0xff]
        %v1134 = vld [vmem:[%s360 + $0x90] sm:$0xff]
        %v1135 = vld [vmem:[%s360 + $0x98] sm:$0xff]
        %v1136 = vld [vmem:[%s360 + $0xa0] sm:$0xff]
        %v1137 = vld [vmem:[%s360 + $0xa8] sm:$0xff]
        %v1138 = vld [vmem:[%s360 + $0xb0] sm:$0xff]
        %v1139 = vld [vmem:[%s360 + $0xb8] sm:$0xff]
        %v1140 = vld [vmem:[%s360 + $0xc0] sm:$0xff]
        %v1141 = vld [vmem:[%s360 + $0xc8] sm:$0xff]
        %v1142 = vld [vmem:[%s360 + $0xd0] sm:$0xff]
        %v1143 = vld [vmem:[%s360 + $0xd8] sm:$0xff]
        %v1144 = vld [vmem:[%s360 + $0xe0] sm:$0xff]
        %v1145 = vld [vmem:[%s360 + $0xe8] sm:$0xff]
        %v1146 = vld [vmem:[%s360 + $0xf0] sm:$0xff]
        %v1147 = vld [vmem:[%s360 + $0xf8] sm:$0xff]
        %v1148 = vld [vmem:[%s360 + $0x100] sm:$0xff]
        %v1149 = vld [vmem:[%s360 + $0x108] sm:$0xff]
        %v1150 = vld [vmem:[%s360 + $0x110] sm:$0xff]
        %v1151 = vld [vmem:[%s360 + $0x118] sm:$0xff]
        %v1152 = vld [vmem:[%s360 + $0x120] sm:$0xff]
        %v1153 = vld [vmem:[%s360 + $0x128] sm:$0xff]
        %v1154 = vld [vmem:[%s360 + $0x130] sm:$0xff]
        %v1155 = vld [vmem:[%s360 + $0x138] sm:$0xff]
        %v1156 = vld [vmem:[%s360 + $0x140] sm:$0xff]
        %v1157 = vld [vmem:[%s360 + $0x148] sm:$0xff]
        %v1158 = vld [vmem:[%s360 + $0x150] sm:$0xff]
        %v1159 = vld [vmem:[%s360 + $0x158] sm:$0xff]
        %v1160 = vld [vmem:[%s360 + $0x160] sm:$0xff]
        %v1161 = vld [vmem:[%s360 + $0x168] sm:$0xff]
        %v1162 = vld [vmem:[%s360 + $0x170] sm:$0xff]
        %v1163 = vld [vmem:[%s360 + $0x178] sm:$0xff]
        %v1164 = vld [vmem:[%s360 + $0x180] sm:$0xff]
        %v1165 = vld [vmem:[%s360 + $0x188] sm:$0xff]
        %v1166 = vld [vmem:[%s360 + $0x190] sm:$0xff]
        %v1167 = vld [vmem:[%s360 + $0x198] sm:$0xff]
        %v1168 = vld [vmem:[%s360 + $0x1a0] sm:$0xff]
        %v1169 = vld [vmem:[%s360 + $0x1a8] sm:$0xff]
        %v1170 = vld [vmem:[%s360 + $0x1b0] sm:$0xff]
        %v1171 = vld [vmem:[%s360 + $0x1b8] sm:$0xff]
        %v1172 = vld [vmem:[%s360 + $0x1c0] sm:$0xff]
        %v1173 = vld [vmem:[%s360 + $0x1c8] sm:$0xff]
        %v1174 = vld [vmem:[%s360 + $0x1d0] sm:$0xff]
        %v1175 = vld [vmem:[%s360 + $0x1d8] sm:$0xff]
        %v1176 = vld [vmem:[%s360 + $0x1e0] sm:$0xff]
        %v1177 = vld [vmem:[%s360 + $0x1e8] sm:$0xff]
        %v1178 = vld [vmem:[%s360 + $0x1f0] sm:$0xff]
        %v1179 = vld [vmem:[%s360 + $0x1f8] sm:$0xff]
        %v1244 = vunpack.c.l.b16 %v1116
        %v1245 = vunpack.c.h.b16 %v1116
        %v1246 = vunpack.c.l.b16 %v1117
        %v1247 = vunpack.c.h.b16 %v1117
        %v1248 = vunpack.c.l.b16 %v1118
        %v1249 = vunpack.c.h.b16 %v1118
        %v1250 = vunpack.c.l.b16 %v1119
        %v1251 = vunpack.c.h.b16 %v1119
        %v1252 = vunpack.c.l.b16 %v1120
        %v1253 = vunpack.c.h.b16 %v1120
        %v1254 = vunpack.c.l.b16 %v1121
        %v1255 = vunpack.c.h.b16 %v1121
        %v1256 = vunpack.c.l.b16 %v1122
        %v1257 = vunpack.c.h.b16 %v1122
        %v1258 = vunpack.c.l.b16 %v1123
        %v1259 = vunpack.c.h.b16 %v1123
        %v1260 = vunpack.c.l.b16 %v1124
        %v1261 = vunpack.c.h.b16 %v1124
        %v1262 = vunpack.c.l.b16 %v1125
        %v1263 = vunpack.c.h.b16 %v1125
        %v1264 = vunpack.c.l.b16 %v1126
        %v1265 = vunpack.c.h.b16 %v1126
        %v1266 = vunpack.c.l.b16 %v1127
        %v1267 = vunpack.c.h.b16 %v1127
        %v1268 = vunpack.c.l.b16 %v1128
        %v1269 = vunpack.c.h.b16 %v1128
        %v1270 = vunpack.c.l.b16 %v1129
        %v1271 = vunpack.c.h.b16 %v1129
        %v1272 = vunpack.c.l.b16 %v1130
        %v1273 = vunpack.c.h.b16 %v1130
        %v1274 = vunpack.c.l.b16 %v1131
        %v1275 = vunpack.c.h.b16 %v1131
        %v1276 = vunpack.c.l.b16 %v1132
        %v1277 = vunpack.c.h.b16 %v1132
        %v1278 = vunpack.c.l.b16 %v1133
        %v1279 = vunpack.c.h.b16 %v1133
        %v1280 = vunpack.c.l.b16 %v1134
        %v1281 = vunpack.c.h.b16 %v1134
        %v1282 = vunpack.c.l.b16 %v1135
        %v1283 = vunpack.c.h.b16 %v1135
        %v1284 = vunpack.c.l.b16 %v1136
        %v1285 = vunpack.c.h.b16 %v1136
        %v1286 = vunpack.c.l.b16 %v1137
        %v1287 = vunpack.c.h.b16 %v1137
        %v1288 = vunpack.c.l.b16 %v1138
        %v1289 = vunpack.c.h.b16 %v1138
        %v1290 = vunpack.c.l.b16 %v1139
        %v1291 = vunpack.c.h.b16 %v1139
        %v1292 = vunpack.c.l.b16 %v1140
        %v1293 = vunpack.c.h.b16 %v1140
        %v1294 = vunpack.c.l.b16 %v1141
        %v1295 = vunpack.c.h.b16 %v1141
        %v1296 = vunpack.c.l.b16 %v1142
        %v1297 = vunpack.c.h.b16 %v1142
        %v1298 = vunpack.c.l.b16 %v1143
        %v1299 = vunpack.c.h.b16 %v1143
        %v1300 = vunpack.c.l.b16 %v1144
        %v1301 = vunpack.c.h.b16 %v1144
        %v1302 = vunpack.c.l.b16 %v1145
        %v1303 = vunpack.c.h.b16 %v1145
        %v1304 = vunpack.c.l.b16 %v1146
        %v1305 = vunpack.c.h.b16 %v1146
        %v1306 = vunpack.c.l.b16 %v1147
        %v1307 = vunpack.c.h.b16 %v1147
        %v1308 = vunpack.c.l.b16 %v1148
        %v1309 = vunpack.c.h.b16 %v1148
        %v1310 = vunpack.c.l.b16 %v1149
        %v1311 = vunpack.c.h.b16 %v1149
        %v1312 = vunpack.c.l.b16 %v1150
        %v1313 = vunpack.c.h.b16 %v1150
        %v1314 = vunpack.c.l.b16 %v1151
        %v1315 = vunpack.c.h.b16 %v1151
        %v1316 = vunpack.c.l.b16 %v1152
        %v1317 = vunpack.c.h.b16 %v1152
        %v1318 = vunpack.c.l.b16 %v1153
        %v1319 = vunpack.c.h.b16 %v1153
        %v1320 = vunpack.c.l.b16 %v1154
        %v1321 = vunpack.c.h.b16 %v1154
        %v1322 = vunpack.c.l.b16 %v1155
        %v1323 = vunpack.c.h.b16 %v1155
        %v1324 = vunpack.c.l.b16 %v1156
        %v1325 = vunpack.c.h.b16 %v1156
        %v1326 = vunpack.c.l.b16 %v1157
        %v1327 = vunpack.c.h.b16 %v1157
        %v1328 = vunpack.c.l.b16 %v1158
        %v1329 = vunpack.c.h.b16 %v1158
        %v1330 = vunpack.c.l.b16 %v1159
        %v1331 = vunpack.c.h.b16 %v1159
        %v1332 = vunpack.c.l.b16 %v1160
        %v1333 = vunpack.c.h.b16 %v1160
        %v1334 = vunpack.c.l.b16 %v1161
        %v1335 = vunpack.c.h.b16 %v1161
        %v1336 = vunpack.c.l.b16 %v1162
        %v1337 = vunpack.c.h.b16 %v1162
        %v1338 = vunpack.c.l.b16 %v1163
        %v1339 = vunpack.c.h.b16 %v1163
        %v1340 = vunpack.c.l.b16 %v1164
        %v1341 = vunpack.c.h.b16 %v1164
        %v1342 = vunpack.c.l.b16 %v1165
        %v1343 = vunpack.c.h.b16 %v1165
        %v1344 = vunpack.c.l.b16 %v1166
        %v1345 = vunpack.c.h.b16 %v1166
        %v1346 = vunpack.c.l.b16 %v1167
        %v1347 = vunpack.c.h.b16 %v1167
        %v1348 = vunpack.c.l.b16 %v1168
        %v1349 = vunpack.c.h.b16 %v1168
        %v1350 = vunpack.c.l.b16 %v1169
        %v1351 = vunpack.c.h.b16 %v1169
        %v1352 = vunpack.c.l.b16 %v1170
        %v1353 = vunpack.c.h.b16 %v1170
        %v1354 = vunpack.c.l.b16 %v1171
        %v1355 = vunpack.c.h.b16 %v1171
        %v1356 = vunpack.c.l.b16 %v1172
        %v1357 = vunpack.c.h.b16 %v1172
        %v1358 = vunpack.c.l.b16 %v1173
        %v1359 = vunpack.c.h.b16 %v1173
        %v1360 = vunpack.c.l.b16 %v1174
        %v1361 = vunpack.c.h.b16 %v1174
        %v1362 = vunpack.c.l.b16 %v1175
        %v1363 = vunpack.c.h.b16 %v1175
        %v1364 = vunpack.c.l.b16 %v1176
        %v1365 = vunpack.c.h.b16 %v1176
        %v1366 = vunpack.c.l.b16 %v1177
        %v1367 = vunpack.c.h.b16 %v1177
        %v1368 = vunpack.c.l.b16 %v1178
        %v1369 = vunpack.c.h.b16 %v1178
        %v1370 = vunpack.c.l.b16 %v1179
        %v1371 = vunpack.c.h.b16 %v1179
        %v1372 = vpack.c.b16 %v1248, %v1244
        %v1373 = vpack.c.b16 %v1249, %v1245
        %v1374 = vpack.c.b16 %v1250, %v1246
        %v1375 = vpack.c.b16 %v1251, %v1247
        %v1376 = vpack.c.b16 %v1256, %v1252
        %v1377 = vpack.c.b16 %v1257, %v1253
        %v1378 = vpack.c.b16 %v1258, %v1254
        %v1379 = vpack.c.b16 %v1259, %v1255
        %v1380 = vpack.c.b16 %v1264, %v1260
        %v1381 = vpack.c.b16 %v1265, %v1261
        %v1382 = vpack.c.b16 %v1266, %v1262
        %v1383 = vpack.c.b16 %v1267, %v1263
        %v1384 = vpack.c.b16 %v1272, %v1268
        %v1385 = vpack.c.b16 %v1273, %v1269
        %v1386 = vpack.c.b16 %v1274, %v1270
        %v1387 = vpack.c.b16 %v1275, %v1271
        %v1388 = vpack.c.b16 %v1280, %v1276
        %v1389 = vpack.c.b16 %v1281, %v1277
        %v1390 = vpack.c.b16 %v1282, %v1278
        %v1391 = vpack.c.b16 %v1283, %v1279
        %v1392 = vpack.c.b16 %v1288, %v1284
        %v1393 = vpack.c.b16 %v1289, %v1285
        %v1394 = vpack.c.b16 %v1290, %v1286
        %v1395 = vpack.c.b16 %v1291, %v1287
        %v1396 = vpack.c.b16 %v1296, %v1292
        %v1397 = vpack.c.b16 %v1297, %v1293
        %v1398 = vpack.c.b16 %v1298, %v1294
        %v1399 = vpack.c.b16 %v1299, %v1295
        %v1400 = vpack.c.b16 %v1304, %v1300
        %v1401 = vpack.c.b16 %v1305, %v1301
        %v1402 = vpack.c.b16 %v1306, %v1302
        %v1403 = vpack.c.b16 %v1307, %v1303
        %v1404 = vpack.c.b16 %v1312, %v1308
        %v1405 = vpack.c.b16 %v1313, %v1309
        %v1406 = vpack.c.b16 %v1314, %v1310
        %v1407 = vpack.c.b16 %v1315, %v1311
        %v1408 = vpack.c.b16 %v1320, %v1316
        %v1409 = vpack.c.b16 %v1321, %v1317
        %v1410 = vpack.c.b16 %v1322, %v1318
        %v1411 = vpack.c.b16 %v1323, %v1319
        %v1412 = vpack.c.b16 %v1328, %v1324
        %v1413 = vpack.c.b16 %v1329, %v1325
        %v1414 = vpack.c.b16 %v1330, %v1326
        %v1415 = vpack.c.b16 %v1331, %v1327
        %v1416 = vpack.c.b16 %v1336, %v1332
        %v1417 = vpack.c.b16 %v1337, %v1333
        %v1418 = vpack.c.b16 %v1338, %v1334
        %v1419 = vpack.c.b16 %v1339, %v1335
        %v1420 = vpack.c.b16 %v1344, %v1340
        %v1421 = vpack.c.b16 %v1345, %v1341
        %v1422 = vpack.c.b16 %v1346, %v1342
        %v1423 = vpack.c.b16 %v1347, %v1343
        %v1424 = vpack.c.b16 %v1352, %v1348
        %v1425 = vpack.c.b16 %v1353, %v1349
        %v1426 = vpack.c.b16 %v1354, %v1350
        %v1427 = vpack.c.b16 %v1355, %v1351
        %v1428 = vpack.c.b16 %v1360, %v1356
        %v1429 = vpack.c.b16 %v1361, %v1357
        %v1430 = vpack.c.b16 %v1362, %v1358
        %v1431 = vpack.c.b16 %v1363, %v1359
        %v1432 = vpack.c.b16 %v1368, %v1364
        %v1433 = vpack.c.b16 %v1369, %v1365
        %v1434 = vpack.c.b16 %v1370, %v1366
        %v1435 = vpack.c.b16 %v1371, %v1367
        %1500 = vmatpush.bf16.msra.mxu0 %v1002
        %1501 = vmatpush.bf16.msra.mxu0 %v1000
        %1502 = vmatpush.bf16.msra.mxu0 %v998
        %1503 = vmatpush.bf16.msra.mxu0 %v996
        %1504 = vmatpush.bf16.msra.mxu0 %v994
        %1505 = vmatpush.bf16.msra.mxu0 %v992
        %1506 = vmatpush.bf16.msra.mxu0 %v990
        %1507 = vmatpush.bf16.msra.mxu0 %v988
        %1508 = vmatmul.bf16.gmra.mxu0 %v1372
        %v1509 = vpop.f32.mrf.mxu0
        %v1510 = vadd.f32 0.0, %v1509
        %v1511 = vpop.f32.mrf.mxu0
        %v1512 = vadd.f32 0.0, %v1511
        %1513 = vmatmul.bf16.gmra.mxu0 %v1376
        %v1514 = vpop.f32.mrf.mxu0
        %v1515 = vadd.f32 0.0, %v1514
        %v1516 = vpop.f32.mrf.mxu0
        %v1517 = vadd.f32 0.0, %v1516
        %1518 = vmatmul.bf16.gmra.mxu0 %v1380
        %v1519 = vpop.f32.mrf.mxu0
        %v1520 = vadd.f32 0.0, %v1519
        %v1521 = vpop.f32.mrf.mxu0
        %v1522 = vadd.f32 0.0, %v1521
        %1523 = vmatmul.bf16.gmra.mxu0 %v1384
        %v1524 = vpop.f32.mrf.mxu0
        %v1525 = vadd.f32 0.0, %v1524
        %v1526 = vpop.f32.mrf.mxu0
        %v1527 = vadd.f32 0.0, %v1526
        %1528 = vmatmul.bf16.gmra.mxu0 %v1388
        %v1529 = vpop.f32.mrf.mxu0
        %v1530 = vadd.f32 0.0, %v1529
        %v1531 = vpop.f32.mrf.mxu0
        %v1532 = vadd.f32 0.0, %v1531
        %1533 = vmatmul.bf16.gmra.mxu0 %v1392
        %v1534 = vpop.f32.mrf.mxu0
        %v1535 = vadd.f32 0.0, %v1534
        %v1536 = vpop.f32.mrf.mxu0
        %v1537 = vadd.f32 0.0, %v1536
        %1538 = vmatmul.bf16.gmra.mxu0 %v1396
        %v1539 = vpop.f32.mrf.mxu0
        %v1540 = vadd.f32 0.0, %v1539
        %v1541 = vpop.f32.mrf.mxu0
        %v1542 = vadd.f32 0.0, %v1541
        %1543 = vmatmul.bf16.gmra.mxu0 %v1400
        %v1544 = vpop.f32.mrf.mxu0
        %v1545 = vadd.f32 0.0, %v1544
        %v1546 = vpop.f32.mrf.mxu0
        %v1547 = vadd.f32 0.0, %v1546
        %1548 = vmatmul.bf16.gmra.mxu0 %v1404
        %v1549 = vpop.f32.mrf.mxu0
        %v1550 = vadd.f32 0.0, %v1549
        %v1551 = vpop.f32.mrf.mxu0
        %v1552 = vadd.f32 0.0, %v1551
        %1553 = vmatmul.bf16.gmra.mxu0 %v1408
        %v1554 = vpop.f32.mrf.mxu0
        %v1555 = vadd.f32 0.0, %v1554
        %v1556 = vpop.f32.mrf.mxu0
        %v1557 = vadd.f32 0.0, %v1556
        %1558 = vmatmul.bf16.gmra.mxu0 %v1412
        %v1559 = vpop.f32.mrf.mxu0
        %v1560 = vadd.f32 0.0, %v1559
        %v1561 = vpop.f32.mrf.mxu0
        %v1562 = vadd.f32 0.0, %v1561
        %1563 = vmatmul.bf16.gmra.mxu0 %v1416
        %v1564 = vpop.f32.mrf.mxu0
        %v1565 = vadd.f32 0.0, %v1564
        %v1566 = vpop.f32.mrf.mxu0
        %v1567 = vadd.f32 0.0, %v1566
        %1568 = vmatmul.bf16.gmra.mxu0 %v1420
        %v1569 = vpop.f32.mrf.mxu0
        %v1570 = vadd.f32 0.0, %v1569
        %v1571 = vpop.f32.mrf.mxu0
        %v1572 = vadd.f32 0.0, %v1571
        %1573 = vmatmul.bf16.gmra.mxu0 %v1424
        %v1574 = vpop.f32.mrf.mxu0
        %v1575 = vadd.f32 0.0, %v1574
        %v1576 = vpop.f32.mrf.mxu0
        %v1577 = vadd.f32 0.0, %v1576
        %1578 = vmatmul.bf16.gmra.mxu0 %v1428
        %v1579 = vpop.f32.mrf.mxu0
        %v1580 = vadd.f32 0.0, %v1579
        %v1581 = vpop.f32.mrf.mxu0
        %v1582 = vadd.f32 0.0, %v1581
        %1583 = vmatmul.bf16.gmra.mxu0 %v1432
        %v1584 = vpop.f32.mrf.mxu0
        %v1585 = vadd.f32 0.0, %v1584
        %v1586 = vpop.f32.mrf.mxu0
        %v1587 = vadd.f32 0.0, %v1586
        %1588 = vdwg.mxu0
        %1589 = vmatpush.bf16.msra.mxu0 %v1018
        %1590 = vmatpush.bf16.msra.mxu0 %v1016
        %1591 = vmatpush.bf16.msra.mxu0 %v1014
        %1592 = vmatpush.bf16.msra.mxu0 %v1012
        %1593 = vmatpush.bf16.msra.mxu0 %v1010
        %1594 = vmatpush.bf16.msra.mxu0 %v1008
        %1595 = vmatpush.bf16.msra.mxu0 %v1006
        %1596 = vmatpush.bf16.msra.mxu0 %v1004
        %1597 = vmatmul.bf16.gmra.mxu0 %v1373
        %v1598 = vpop.f32.mrf.mxu0
        %v1599 = vadd.f32 %v1510, %v1598
        %v1600 = vpop.f32.mrf.mxu0
        %v1601 = vadd.f32 %v1512, %v1600
        %1602 = vmatmul.bf16.gmra.mxu0 %v1377
        %v1603 = vpop.f32.mrf.mxu0
        %v1604 = vadd.f32 %v1515, %v1603
        %v1605 = vpop.f32.mrf.mxu0
        %v1606 = vadd.f32 %v1517, %v1605
        %1607 = vmatmul.bf16.gmra.mxu0 %v1381
        %v1608 = vpop.f32.mrf.mxu0
        %v1609 = vadd.f32 %v1520, %v1608
        %v1610 = vpop.f32.mrf.mxu0
        %v1611 = vadd.f32 %v1522, %v1610
        %1612 = vmatmul.bf16.gmra.mxu0 %v1385
        %v1613 = vpop.f32.mrf.mxu0
        %v1614 = vadd.f32 %v1525, %v1613
        %v1615 = vpop.f32.mrf.mxu0
        %v1616 = vadd.f32 %v1527, %v1615
        %1617 = vmatmul.bf16.gmra.mxu0 %v1389
        %v1618 = vpop.f32.mrf.mxu0
        %v1619 = vadd.f32 %v1530, %v1618
        %v1620 = vpop.f32.mrf.mxu0
        %v1621 = vadd.f32 %v1532, %v1620
        %1622 = vmatmul.bf16.gmra.mxu0 %v1393
        %v1623 = vpop.f32.mrf.mxu0
        %v1624 = vadd.f32 %v1535, %v1623
        %v1625 = vpop.f32.mrf.mxu0
        %v1626 = vadd.f32 %v1537, %v1625
        %1627 = vmatmul.bf16.gmra.mxu0 %v1397
        %v1628 = vpop.f32.mrf.mxu0
        %v1629 = vadd.f32 %v1540, %v1628
        %v1630 = vpop.f32.mrf.mxu0
        %v1631 = vadd.f32 %v1542, %v1630
        %1632 = vmatmul.bf16.gmra.mxu0 %v1401
        %v1633 = vpop.f32.mrf.mxu0
        %v1634 = vadd.f32 %v1545, %v1633
        %v1635 = vpop.f32.mrf.mxu0
        %v1636 = vadd.f32 %v1547, %v1635
        %1637 = vmatmul.bf16.gmra.mxu0 %v1405
        %v1638 = vpop.f32.mrf.mxu0
        %v1639 = vadd.f32 %v1550, %v1638
        %v1640 = vpop.f32.mrf.mxu0
        %v1641 = vadd.f32 %v1552, %v1640
        %1642 = vmatmul.bf16.gmra.mxu0 %v1409
        %v1643 = vpop.f32.mrf.mxu0
        %v1644 = vadd.f32 %v1555, %v1643
        %v1645 = vpop.f32.mrf.mxu0
        %v1646 = vadd.f32 %v1557, %v1645
        %1647 = vmatmul.bf16.gmra.mxu0 %v1413
        %v1648 = vpop.f32.mrf.mxu0
        %v1649 = vadd.f32 %v1560, %v1648
        %v1650 = vpop.f32.mrf.mxu0
        %v1651 = vadd.f32 %v1562, %v1650
        %1652 = vmatmul.bf16.gmra.mxu0 %v1417
        %v1653 = vpop.f32.mrf.mxu0
        %v1654 = vadd.f32 %v1565, %v1653
        %v1655 = vpop.f32.mrf.mxu0
        %v1656 = vadd.f32 %v1567, %v1655
        %1657 = vmatmul.bf16.gmra.mxu0 %v1421
        %v1658 = vpop.f32.mrf.mxu0
        %v1659 = vadd.f32 %v1570, %v1658
        %v1660 = vpop.f32.mrf.mxu0
        %v1661 = vadd.f32 %v1572, %v1660
        %1662 = vmatmul.bf16.gmra.mxu0 %v1425
        %v1663 = vpop.f32.mrf.mxu0
        %v1664 = vadd.f32 %v1575, %v1663
        %v1665 = vpop.f32.mrf.mxu0
        %v1666 = vadd.f32 %v1577, %v1665
        %1667 = vmatmul.bf16.gmra.mxu0 %v1429
        %v1668 = vpop.f32.mrf.mxu0
        %v1669 = vadd.f32 %v1580, %v1668
        %v1670 = vpop.f32.mrf.mxu0
        %v1671 = vadd.f32 %v1582, %v1670
        %1672 = vmatmul.bf16.gmra.mxu0 %v1433
        %v1673 = vpop.f32.mrf.mxu0
        %v1674 = vadd.f32 %v1585, %v1673
        %v1675 = vpop.f32.mrf.mxu0
        %v1676 = vadd.f32 %v1587, %v1675
        %1677 = vdwg.mxu0
        %1678 = vmatpush.bf16.msra.mxu0 %v1034
        %1679 = vmatpush.bf16.msra.mxu0 %v1032
        %1680 = vmatpush.bf16.msra.mxu0 %v1030
        %1681 = vmatpush.bf16.msra.mxu0 %v1028
        %1682 = vmatpush.bf16.msra.mxu0 %v1026
        %1683 = vmatpush.bf16.msra.mxu0 %v1024
        %1684 = vmatpush.bf16.msra.mxu0 %v1022
        %1685 = vmatpush.bf16.msra.mxu0 %v1020
        %1686 = vmatmul.bf16.gmra.mxu0 %v1374
        %v1687 = vpop.f32.mrf.mxu0
        %v1688 = vadd.f32 %v1599, %v1687
        %v1689 = vpop.f32.mrf.mxu0
        %v1690 = vadd.f32 %v1601, %v1689
        %1691 = vmatmul.bf16.gmra.mxu0 %v1378
        %v1692 = vpop.f32.mrf.mxu0
        %v1693 = vadd.f32 %v1604, %v1692
        %v1694 = vpop.f32.mrf.mxu0
        %v1695 = vadd.f32 %v1606, %v1694
        %1696 = vmatmul.bf16.gmra.mxu0 %v1382
        %v1697 = vpop.f32.mrf.mxu0
        %v1698 = vadd.f32 %v1609, %v1697
        %v1699 = vpop.f32.mrf.mxu0
        %v1700 = vadd.f32 %v1611, %v1699
        %1701 = vmatmul.bf16.gmra.mxu0 %v1386
        %v1702 = vpop.f32.mrf.mxu0
        %v1703 = vadd.f32 %v1614, %v1702
        %v1704 = vpop.f32.mrf.mxu0
        %v1705 = vadd.f32 %v1616, %v1704
        %1706 = vmatmul.bf16.gmra.mxu0 %v1390
        %v1707 = vpop.f32.mrf.mxu0
        %v1708 = vadd.f32 %v1619, %v1707
        %v1709 = vpop.f32.mrf.mxu0
        %v1710 = vadd.f32 %v1621, %v1709
        %1711 = vmatmul.bf16.gmra.mxu0 %v1394
        %v1712 = vpop.f32.mrf.mxu0
        %v1713 = vadd.f32 %v1624, %v1712
        %v1714 = vpop.f32.mrf.mxu0
        %v1715 = vadd.f32 %v1626, %v1714
        %1716 = vmatmul.bf16.gmra.mxu0 %v1398
        %v1717 = vpop.f32.mrf.mxu0
        %v1718 = vadd.f32 %v1629, %v1717
        %v1719 = vpop.f32.mrf.mxu0
        %v1720 = vadd.f32 %v1631, %v1719
        %1721 = vmatmul.bf16.gmra.mxu0 %v1402
        %v1722 = vpop.f32.mrf.mxu0
        %v1723 = vadd.f32 %v1634, %v1722
        %v1724 = vpop.f32.mrf.mxu0
        %v1725 = vadd.f32 %v1636, %v1724
        %1726 = vmatmul.bf16.gmra.mxu0 %v1406
        %v1727 = vpop.f32.mrf.mxu0
        %v1728 = vadd.f32 %v1639, %v1727
        %v1729 = vpop.f32.mrf.mxu0
        %v1730 = vadd.f32 %v1641, %v1729
        %1731 = vmatmul.bf16.gmra.mxu0 %v1410
        %v1732 = vpop.f32.mrf.mxu0
        %v1733 = vadd.f32 %v1644, %v1732
        %v1734 = vpop.f32.mrf.mxu0
        %v1735 = vadd.f32 %v1646, %v1734
        %1736 = vmatmul.bf16.gmra.mxu0 %v1414
        %v1737 = vpop.f32.mrf.mxu0
        %v1738 = vadd.f32 %v1649, %v1737
        %v1739 = vpop.f32.mrf.mxu0
        %v1740 = vadd.f32 %v1651, %v1739
        %1741 = vmatmul.bf16.gmra.mxu0 %v1418
        %v1742 = vpop.f32.mrf.mxu0
        %v1743 = vadd.f32 %v1654, %v1742
        %v1744 = vpop.f32.mrf.mxu0
        %v1745 = vadd.f32 %v1656, %v1744
        %1746 = vmatmul.bf16.gmra.mxu0 %v1422
        %v1747 = vpop.f32.mrf.mxu0
        %v1748 = vadd.f32 %v1659, %v1747
        %v1749 = vpop.f32.mrf.mxu0
        %v1750 = vadd.f32 %v1661, %v1749
        %1751 = vmatmul.bf16.gmra.mxu0 %v1426
        %v1752 = vpop.f32.mrf.mxu0
        %v1753 = vadd.f32 %v1664, %v1752
        %v1754 = vpop.f32.mrf.mxu0
        %v1755 = vadd.f32 %v1666, %v1754
        %1756 = vmatmul.bf16.gmra.mxu0 %v1430
        %v1757 = vpop.f32.mrf.mxu0
        %v1758 = vadd.f32 %v1669, %v1757
        %v1759 = vpop.f32.mrf.mxu0
        %v1760 = vadd.f32 %v1671, %v1759
        %1761 = vmatmul.bf16.gmra.mxu0 %v1434
        %v1762 = vpop.f32.mrf.mxu0
        %v1763 = vadd.f32 %v1674, %v1762
        %v1764 = vpop.f32.mrf.mxu0
        %v1765 = vadd.f32 %v1676, %v1764
        %1766 = vdwg.mxu0
        %1767 = vmatpush.bf16.msra.mxu0 %v1050
        %1768 = vmatpush.bf16.msra.mxu0 %v1048
        %1769 = vmatpush.bf16.msra.mxu0 %v1046
        %1770 = vmatpush.bf16.msra.mxu0 %v1044
        %1771 = vmatpush.bf16.msra.mxu0 %v1042
        %1772 = vmatpush.bf16.msra.mxu0 %v1040
        %1773 = vmatpush.bf16.msra.mxu0 %v1038
        %1774 = vmatpush.bf16.msra.mxu0 %v1036
        %1775 = vmatmul.bf16.gmra.mxu0 %v1375
        %v1776 = vpop.f32.mrf.mxu0
        %v1777 = vadd.f32 %v1688, %v1776
        %v1778 = vpop.f32.mrf.mxu0
        %v1779 = vadd.f32 %v1690, %v1778
        %1780 = vmatmul.bf16.gmra.mxu0 %v1379
        %v1781 = vpop.f32.mrf.mxu0
        %v1782 = vadd.f32 %v1693, %v1781
        %v1783 = vpop.f32.mrf.mxu0
        %v1784 = vadd.f32 %v1695, %v1783
        %1785 = vmatmul.bf16.gmra.mxu0 %v1383
        %v1786 = vpop.f32.mrf.mxu0
        %v1787 = vadd.f32 %v1698, %v1786
        %v1788 = vpop.f32.mrf.mxu0
        %v1789 = vadd.f32 %v1700, %v1788
        %1790 = vmatmul.bf16.gmra.mxu0 %v1387
        %v1791 = vpop.f32.mrf.mxu0
        %v1792 = vadd.f32 %v1703, %v1791
        %v1793 = vpop.f32.mrf.mxu0
        %v1794 = vadd.f32 %v1705, %v1793
        %1795 = vmatmul.bf16.gmra.mxu0 %v1391
        %v1796 = vpop.f32.mrf.mxu0
        %v1797 = vadd.f32 %v1708, %v1796
        %v1798 = vpop.f32.mrf.mxu0
        %v1799 = vadd.f32 %v1710, %v1798
        %1800 = vmatmul.bf16.gmra.mxu0 %v1395
        %v1801 = vpop.f32.mrf.mxu0
        %v1802 = vadd.f32 %v1713, %v1801
        %v1803 = vpop.f32.mrf.mxu0
        %v1804 = vadd.f32 %v1715, %v1803
        %1805 = vmatmul.bf16.gmra.mxu0 %v1399
        %v1806 = vpop.f32.mrf.mxu0
        %v1807 = vadd.f32 %v1718, %v1806
        %v1808 = vpop.f32.mrf.mxu0
        %v1809 = vadd.f32 %v1720, %v1808
        %1810 = vmatmul.bf16.gmra.mxu0 %v1403
        %v1811 = vpop.f32.mrf.mxu0
        %v1812 = vadd.f32 %v1723, %v1811
        %v1813 = vpop.f32.mrf.mxu0
        %v1814 = vadd.f32 %v1725, %v1813
        %1815 = vmatmul.bf16.gmra.mxu0 %v1407
        %v1816 = vpop.f32.mrf.mxu0
        %v1817 = vadd.f32 %v1728, %v1816
        %v1818 = vpop.f32.mrf.mxu0
        %v1819 = vadd.f32 %v1730, %v1818
        %1820 = vmatmul.bf16.gmra.mxu0 %v1411
        %v1821 = vpop.f32.mrf.mxu0
        %v1822 = vadd.f32 %v1733, %v1821
        %v1823 = vpop.f32.mrf.mxu0
        %v1824 = vadd.f32 %v1735, %v1823
        %1825 = vmatmul.bf16.gmra.mxu0 %v1415
        %v1826 = vpop.f32.mrf.mxu0
        %v1827 = vadd.f32 %v1738, %v1826
        %v1828 = vpop.f32.mrf.mxu0
        %v1829 = vadd.f32 %v1740, %v1828
        %1830 = vmatmul.bf16.gmra.mxu0 %v1419
        %v1831 = vpop.f32.mrf.mxu0
        %v1832 = vadd.f32 %v1743, %v1831
        %v1833 = vpop.f32.mrf.mxu0
        %v1834 = vadd.f32 %v1745, %v1833
        %1835 = vmatmul.bf16.gmra.mxu0 %v1423
        %v1836 = vpop.f32.mrf.mxu0
        %v1837 = vadd.f32 %v1748, %v1836
        %v1838 = vpop.f32.mrf.mxu0
        %v1839 = vadd.f32 %v1750, %v1838
        %1840 = vmatmul.bf16.gmra.mxu0 %v1427
        %v1841 = vpop.f32.mrf.mxu0
        %v1842 = vadd.f32 %v1753, %v1841
        %v1843 = vpop.f32.mrf.mxu0
        %v1844 = vadd.f32 %v1755, %v1843
        %1845 = vmatmul.bf16.gmra.mxu0 %v1431
        %v1846 = vpop.f32.mrf.mxu0
        %v1847 = vadd.f32 %v1758, %v1846
        %v1848 = vpop.f32.mrf.mxu0
        %v1849 = vadd.f32 %v1760, %v1848
        %1850 = vmatmul.bf16.gmra.mxu0 %v1435
        %v1851 = vpop.f32.mrf.mxu0
        %v1852 = vadd.f32 %v1763, %v1851
        %v1853 = vpop.f32.mrf.mxu0
        %v1854 = vadd.f32 %v1765, %v1853
        %1855 = vdwg.mxu0
        %1856 = vmatpush.bf16.msra.mxu0 %v1003
        %1857 = vmatpush.bf16.msra.mxu0 %v1001
        %1858 = vmatpush.bf16.msra.mxu0 %v999
        %1859 = vmatpush.bf16.msra.mxu0 %v997
        %1860 = vmatpush.bf16.msra.mxu0 %v995
        %1861 = vmatpush.bf16.msra.mxu0 %v993
        %1862 = vmatpush.bf16.msra.mxu0 %v991
        %1863 = vmatpush.bf16.msra.mxu0 %v989
        %1864 = vmatmul.bf16.gmra.mxu0 %v1372
        %v1865 = vpop.f32.mrf.mxu0
        %v1866 = vadd.f32 0.0, %v1865
        %v1867 = vpop.f32.mrf.mxu0
        %v1868 = vadd.f32 0.0, %v1867
        %1869 = vmatmul.bf16.gmra.mxu0 %v1376
        %v1870 = vpop.f32.mrf.mxu0
        %v1871 = vadd.f32 0.0, %v1870
        %v1872 = vpop.f32.mrf.mxu0
        %v1873 = vadd.f32 0.0, %v1872
        %1874 = vmatmul.bf16.gmra.mxu0 %v1380
        %v1875 = vpop.f32.mrf.mxu0
        %v1876 = vadd.f32 0.0, %v1875
        %v1877 = vpop.f32.mrf.mxu0
        %v1878 = vadd.f32 0.0, %v1877
        %1879 = vmatmul.bf16.gmra.mxu0 %v1384
        %v1880 = vpop.f32.mrf.mxu0
        %v1881 = vadd.f32 0.0, %v1880
        %v1882 = vpop.f32.mrf.mxu0
        %v1883 = vadd.f32 0.0, %v1882
        %1884 = vmatmul.bf16.gmra.mxu0 %v1388
        %v1885 = vpop.f32.mrf.mxu0
        %v1886 = vadd.f32 0.0, %v1885
        %v1887 = vpop.f32.mrf.mxu0
        %v1888 = vadd.f32 0.0, %v1887
        %1889 = vmatmul.bf16.gmra.mxu0 %v1392
        %v1890 = vpop.f32.mrf.mxu0
        %v1891 = vadd.f32 0.0, %v1890
        %v1892 = vpop.f32.mrf.mxu0
        %v1893 = vadd.f32 0.0, %v1892
        %1894 = vmatmul.bf16.gmra.mxu0 %v1396
        %v1895 = vpop.f32.mrf.mxu0
        %v1896 = vadd.f32 0.0, %v1895
        %v1897 = vpop.f32.mrf.mxu0
        %v1898 = vadd.f32 0.0, %v1897
        %1899 = vmatmul.bf16.gmra.mxu0 %v1400
        %v1900 = vpop.f32.mrf.mxu0
        %v1901 = vadd.f32 0.0, %v1900
        %v1902 = vpop.f32.mrf.mxu0
        %v1903 = vadd.f32 0.0, %v1902
        %1904 = vmatmul.bf16.gmra.mxu0 %v1404
        %v1905 = vpop.f32.mrf.mxu0
        %v1906 = vadd.f32 0.0, %v1905
        %v1907 = vpop.f32.mrf.mxu0
        %v1908 = vadd.f32 0.0, %v1907
        %1909 = vmatmul.bf16.gmra.mxu0 %v1408
        %v1910 = vpop.f32.mrf.mxu0
        %v1911 = vadd.f32 0.0, %v1910
        %v1912 = vpop.f32.mrf.mxu0
        %v1913 = vadd.f32 0.0, %v1912
        %1914 = vmatmul.bf16.gmra.mxu0 %v1412
        %v1915 = vpop.f32.mrf.mxu0
        %v1916 = vadd.f32 0.0, %v1915
        %v1917 = vpop.f32.mrf.mxu0
        %v1918 = vadd.f32 0.0, %v1917
        %1919 = vmatmul.bf16.gmra.mxu0 %v1416
        %v1920 = vpop.f32.mrf.mxu0
        %v1921 = vadd.f32 0.0, %v1920
        %v1922 = vpop.f32.mrf.mxu0
        %v1923 = vadd.f32 0.0, %v1922
        %1924 = vmatmul.bf16.gmra.mxu0 %v1420
        %v1925 = vpop.f32.mrf.mxu0
        %v1926 = vadd.f32 0.0, %v1925
        %v1927 = vpop.f32.mrf.mxu0
        %v1928 = vadd.f32 0.0, %v1927
        %1929 = vmatmul.bf16.gmra.mxu0 %v1424
        %v1930 = vpop.f32.mrf.mxu0
        %v1931 = vadd.f32 0.0, %v1930
        %v1932 = vpop.f32.mrf.mxu0
        %v1933 = vadd.f32 0.0, %v1932
        %1934 = vmatmul.bf16.gmra.mxu0 %v1428
        %v1935 = vpop.f32.mrf.mxu0
        %v1936 = vadd.f32 0.0, %v1935
        %v1937 = vpop.f32.mrf.mxu0
        %v1938 = vadd.f32 0.0, %v1937
        %1939 = vmatmul.bf16.gmra.mxu0 %v1432
        %v1940 = vpop.f32.mrf.mxu0
        %v1941 = vadd.f32 0.0, %v1940
        %v1942 = vpop.f32.mrf.mxu0
        %v1943 = vadd.f32 0.0, %v1942
        %1944 = vdwg.mxu0
        %1945 = vmatpush.bf16.msra.mxu0 %v1019
        %1946 = vmatpush.bf16.msra.mxu0 %v1017
        %1947 = vmatpush.bf16.msra.mxu0 %v1015
        %1948 = vmatpush.bf16.msra.mxu0 %v1013
        %1949 = vmatpush.bf16.msra.mxu0 %v1011
        %1950 = vmatpush.bf16.msra.mxu0 %v1009
        %1951 = vmatpush.bf16.msra.mxu0 %v1007
        %1952 = vmatpush.bf16.msra.mxu0 %v1005
        %1953 = vmatmul.bf16.gmra.mxu0 %v1373
        %v1954 = vpop.f32.mrf.mxu0
        %v1955 = vadd.f32 %v1866, %v1954
        %v1956 = vpop.f32.mrf.mxu0
        %v1957 = vadd.f32 %v1868, %v1956
        %1958 = vmatmul.bf16.gmra.mxu0 %v1377
        %v1959 = vpop.f32.mrf.mxu0
        %v1960 = vadd.f32 %v1871, %v1959
        %v1961 = vpop.f32.mrf.mxu0
        %v1962 = vadd.f32 %v1873, %v1961
        %1963 = vmatmul.bf16.gmra.mxu0 %v1381
        %v1964 = vpop.f32.mrf.mxu0
        %v1965 = vadd.f32 %v1876, %v1964
        %v1966 = vpop.f32.mrf.mxu0
        %v1967 = vadd.f32 %v1878, %v1966
        %1968 = vmatmul.bf16.gmra.mxu0 %v1385
        %v1969 = vpop.f32.mrf.mxu0
        %v1970 = vadd.f32 %v1881, %v1969
        %v1971 = vpop.f32.mrf.mxu0
        %v1972 = vadd.f32 %v1883, %v1971
        %1973 = vmatmul.bf16.gmra.mxu0 %v1389
        %v1974 = vpop.f32.mrf.mxu0
        %v1975 = vadd.f32 %v1886, %v1974
        %v1976 = vpop.f32.mrf.mxu0
        %v1977 = vadd.f32 %v1888, %v1976
        %1978 = vmatmul.bf16.gmra.mxu0 %v1393
        %v1979 = vpop.f32.mrf.mxu0
        %v1980 = vadd.f32 %v1891, %v1979
        %v1981 = vpop.f32.mrf.mxu0
        %v1982 = vadd.f32 %v1893, %v1981
        %1983 = vmatmul.bf16.gmra.mxu0 %v1397
        %v1984 = vpop.f32.mrf.mxu0
        %v1985 = vadd.f32 %v1896, %v1984
        %v1986 = vpop.f32.mrf.mxu0
        %v1987 = vadd.f32 %v1898, %v1986
        %1988 = vmatmul.bf16.gmra.mxu0 %v1401
        %v1989 = vpop.f32.mrf.mxu0
        %v1990 = vadd.f32 %v1901, %v1989
        %v1991 = vpop.f32.mrf.mxu0
        %v1992 = vadd.f32 %v1903, %v1991
        %1993 = vmatmul.bf16.gmra.mxu0 %v1405
        %v1994 = vpop.f32.mrf.mxu0
        %v1995 = vadd.f32 %v1906, %v1994
        %v1996 = vpop.f32.mrf.mxu0
        %v1997 = vadd.f32 %v1908, %v1996
        %1998 = vmatmul.bf16.gmra.mxu0 %v1409
        %v1999 = vpop.f32.mrf.mxu0
        %v2000 = vadd.f32 %v1911, %v1999
        %v2001 = vpop.f32.mrf.mxu0
        %v2002 = vadd.f32 %v1913, %v2001
        %2003 = vmatmul.bf16.gmra.mxu0 %v1413
        %v2004 = vpop.f32.mrf.mxu0
        %v2005 = vadd.f32 %v1916, %v2004
        %v2006 = vpop.f32.mrf.mxu0
        %v2007 = vadd.f32 %v1918, %v2006
        %2008 = vmatmul.bf16.gmra.mxu0 %v1417
        %v2009 = vpop.f32.mrf.mxu0
        %v2010 = vadd.f32 %v1921, %v2009
        %v2011 = vpop.f32.mrf.mxu0
        %v2012 = vadd.f32 %v1923, %v2011
        %2013 = vmatmul.bf16.gmra.mxu0 %v1421
        %v2014 = vpop.f32.mrf.mxu0
        %v2015 = vadd.f32 %v1926, %v2014
        %v2016 = vpop.f32.mrf.mxu0
        %v2017 = vadd.f32 %v1928, %v2016
        %2018 = vmatmul.bf16.gmra.mxu0 %v1425
        %v2019 = vpop.f32.mrf.mxu0
        %v2020 = vadd.f32 %v1931, %v2019
        %v2021 = vpop.f32.mrf.mxu0
        %v2022 = vadd.f32 %v1933, %v2021
        %2023 = vmatmul.bf16.gmra.mxu0 %v1429
        %v2024 = vpop.f32.mrf.mxu0
        %v2025 = vadd.f32 %v1936, %v2024
        %v2026 = vpop.f32.mrf.mxu0
        %v2027 = vadd.f32 %v1938, %v2026
        %2028 = vmatmul.bf16.gmra.mxu0 %v1433
        %v2029 = vpop.f32.mrf.mxu0
        %v2030 = vadd.f32 %v1941, %v2029
        %v2031 = vpop.f32.mrf.mxu0
        %v2032 = vadd.f32 %v1943, %v2031
        %2033 = vdwg.mxu0
        %2034 = vmatpush.bf16.msra.mxu0 %v1035
        %2035 = vmatpush.bf16.msra.mxu0 %v1033
        %2036 = vmatpush.bf16.msra.mxu0 %v1031
        %2037 = vmatpush.bf16.msra.mxu0 %v1029
        %2038 = vmatpush.bf16.msra.mxu0 %v1027
        %2039 = vmatpush.bf16.msra.mxu0 %v1025
        %2040 = vmatpush.bf16.msra.mxu0 %v1023
        %2041 = vmatpush.bf16.msra.mxu0 %v1021
        %2042 = vmatmul.bf16.gmra.mxu0 %v1374
        %v2043 = vpop.f32.mrf.mxu0
        %v2044 = vadd.f32 %v1955, %v2043
        %v2045 = vpop.f32.mrf.mxu0
        %v2046 = vadd.f32 %v1957, %v2045
        %2047 = vmatmul.bf16.gmra.mxu0 %v1378
        %v2048 = vpop.f32.mrf.mxu0
        %v2049 = vadd.f32 %v1960, %v2048
        %v2050 = vpop.f32.mrf.mxu0
        %v2051 = vadd.f32 %v1962, %v2050
        %2052 = vmatmul.bf16.gmra.mxu0 %v1382
        %v2053 = vpop.f32.mrf.mxu0
        %v2054 = vadd.f32 %v1965, %v2053
        %v2055 = vpop.f32.mrf.mxu0
        %v2056 = vadd.f32 %v1967, %v2055
        %2057 = vmatmul.bf16.gmra.mxu0 %v1386
        %v2058 = vpop.f32.mrf.mxu0
        %v2059 = vadd.f32 %v1970, %v2058
        %v2060 = vpop.f32.mrf.mxu0
        %v2061 = vadd.f32 %v1972, %v2060
        %2062 = vmatmul.bf16.gmra.mxu0 %v1390
        %v2063 = vpop.f32.mrf.mxu0
        %v2064 = vadd.f32 %v1975, %v2063
        %v2065 = vpop.f32.mrf.mxu0
        %v2066 = vadd.f32 %v1977, %v2065
        %2067 = vmatmul.bf16.gmra.mxu0 %v1394
        %v2068 = vpop.f32.mrf.mxu0
        %v2069 = vadd.f32 %v1980, %v2068
        %v2070 = vpop.f32.mrf.mxu0
        %v2071 = vadd.f32 %v1982, %v2070
        %2072 = vmatmul.bf16.gmra.mxu0 %v1398
        %v2073 = vpop.f32.mrf.mxu0
        %v2074 = vadd.f32 %v1985, %v2073
        %v2075 = vpop.f32.mrf.mxu0
        %v2076 = vadd.f32 %v1987, %v2075
        %2077 = vmatmul.bf16.gmra.mxu0 %v1402
        %v2078 = vpop.f32.mrf.mxu0
        %v2079 = vadd.f32 %v1990, %v2078
        %v2080 = vpop.f32.mrf.mxu0
        %v2081 = vadd.f32 %v1992, %v2080
        %2082 = vmatmul.bf16.gmra.mxu0 %v1406
        %v2083 = vpop.f32.mrf.mxu0
        %v2084 = vadd.f32 %v1995, %v2083
        %v2085 = vpop.f32.mrf.mxu0
        %v2086 = vadd.f32 %v1997, %v2085
        %2087 = vmatmul.bf16.gmra.mxu0 %v1410
        %v2088 = vpop.f32.mrf.mxu0
        %v2089 = vadd.f32 %v2000, %v2088
        %v2090 = vpop.f32.mrf.mxu0
        %v2091 = vadd.f32 %v2002, %v2090
        %2092 = vmatmul.bf16.gmra.mxu0 %v1414
        %v2093 = vpop.f32.mrf.mxu0
        %v2094 = vadd.f32 %v2005, %v2093
        %v2095 = vpop.f32.mrf.mxu0
        %v2096 = vadd.f32 %v2007, %v2095
        %2097 = vmatmul.bf16.gmra.mxu0 %v1418
        %v2098 = vpop.f32.mrf.mxu0
        %v2099 = vadd.f32 %v2010, %v2098
        %v2100 = vpop.f32.mrf.mxu0
        %v2101 = vadd.f32 %v2012, %v2100
        %2102 = vmatmul.bf16.gmra.mxu0 %v1422
        %v2103 = vpop.f32.mrf.mxu0
        %v2104 = vadd.f32 %v2015, %v2103
        %v2105 = vpop.f32.mrf.mxu0
        %v2106 = vadd.f32 %v2017, %v2105
        %2107 = vmatmul.bf16.gmra.mxu0 %v1426
        %v2108 = vpop.f32.mrf.mxu0
        %v2109 = vadd.f32 %v2020, %v2108
        %v2110 = vpop.f32.mrf.mxu0
        %v2111 = vadd.f32 %v2022, %v2110
        %2112 = vmatmul.bf16.gmra.mxu0 %v1430
        %v2113 = vpop.f32.mrf.mxu0
        %v2114 = vadd.f32 %v2025, %v2113
        %v2115 = vpop.f32.mrf.mxu0
        %v2116 = vadd.f32 %v2027, %v2115
        %2117 = vmatmul.bf16.gmra.mxu0 %v1434
        %v2118 = vpop.f32.mrf.mxu0
        %v2119 = vadd.f32 %v2030, %v2118
        %v2120 = vpop.f32.mrf.mxu0
        %v2121 = vadd.f32 %v2032, %v2120
        %2122 = vdwg.mxu0
        %2123 = vmatpush.bf16.msra.mxu0 %v1051
        %2124 = vmatpush.bf16.msra.mxu0 %v1049
        %2125 = vmatpush.bf16.msra.mxu0 %v1047
        %2126 = vmatpush.bf16.msra.mxu0 %v1045
        %2127 = vmatpush.bf16.msra.mxu0 %v1043
        %2128 = vmatpush.bf16.msra.mxu0 %v1041
        %2129 = vmatpush.bf16.msra.mxu0 %v1039
        %2130 = vmatpush.bf16.msra.mxu0 %v1037
        %2131 = vmatmul.bf16.gmra.mxu0 %v1375
        %v2132 = vpop.f32.mrf.mxu0
        %v2133 = vadd.f32 %v2044, %v2132
        %v2134 = vpop.f32.mrf.mxu0
        %v2135 = vadd.f32 %v2046, %v2134
        %2136 = vmatmul.bf16.gmra.mxu0 %v1379
        %v2137 = vpop.f32.mrf.mxu0
        %v2138 = vadd.f32 %v2049, %v2137
        %v2139 = vpop.f32.mrf.mxu0
        %v2140 = vadd.f32 %v2051, %v2139
        %2141 = vmatmul.bf16.gmra.mxu0 %v1383
        %v2142 = vpop.f32.mrf.mxu0
        %v2143 = vadd.f32 %v2054, %v2142
        %v2144 = vpop.f32.mrf.mxu0
        %v2145 = vadd.f32 %v2056, %v2144
        %2146 = vmatmul.bf16.gmra.mxu0 %v1387
        %v2147 = vpop.f32.mrf.mxu0
        %v2148 = vadd.f32 %v2059, %v2147
        %v2149 = vpop.f32.mrf.mxu0
        %v2150 = vadd.f32 %v2061, %v2149
        %2151 = vmatmul.bf16.gmra.mxu0 %v1391
        %v2152 = vpop.f32.mrf.mxu0
        %v2153 = vadd.f32 %v2064, %v2152
        %v2154 = vpop.f32.mrf.mxu0
        %v2155 = vadd.f32 %v2066, %v2154
        %2156 = vmatmul.bf16.gmra.mxu0 %v1395
        %v2157 = vpop.f32.mrf.mxu0
        %v2158 = vadd.f32 %v2069, %v2157
        %v2159 = vpop.f32.mrf.mxu0
        %v2160 = vadd.f32 %v2071, %v2159
        %2161 = vmatmul.bf16.gmra.mxu0 %v1399
        %v2162 = vpop.f32.mrf.mxu0
        %v2163 = vadd.f32 %v2074, %v2162
        %v2164 = vpop.f32.mrf.mxu0
        %v2165 = vadd.f32 %v2076, %v2164
        %2166 = vmatmul.bf16.gmra.mxu0 %v1403
        %v2167 = vpop.f32.mrf.mxu0
        %v2168 = vadd.f32 %v2079, %v2167
        %v2169 = vpop.f32.mrf.mxu0
        %v2170 = vadd.f32 %v2081, %v2169
        %2171 = vmatmul.bf16.gmra.mxu0 %v1407
        %v2172 = vpop.f32.mrf.mxu0
        %v2173 = vadd.f32 %v2084, %v2172
        %v2174 = vpop.f32.mrf.mxu0
        %v2175 = vadd.f32 %v2086, %v2174
        %2176 = vmatmul.bf16.gmra.mxu0 %v1411
        %v2177 = vpop.f32.mrf.mxu0
        %v2178 = vadd.f32 %v2089, %v2177
        %v2179 = vpop.f32.mrf.mxu0
        %v2180 = vadd.f32 %v2091, %v2179
        %2181 = vmatmul.bf16.gmra.mxu0 %v1415
        %v2182 = vpop.f32.mrf.mxu0
        %v2183 = vadd.f32 %v2094, %v2182
        %v2184 = vpop.f32.mrf.mxu0
        %v2185 = vadd.f32 %v2096, %v2184
        %2186 = vmatmul.bf16.gmra.mxu0 %v1419
        %v2187 = vpop.f32.mrf.mxu0
        %v2188 = vadd.f32 %v2099, %v2187
        %v2189 = vpop.f32.mrf.mxu0
        %v2190 = vadd.f32 %v2101, %v2189
        %2191 = vmatmul.bf16.gmra.mxu0 %v1423
        %v2192 = vpop.f32.mrf.mxu0
        %v2193 = vadd.f32 %v2104, %v2192
        %v2194 = vpop.f32.mrf.mxu0
        %v2195 = vadd.f32 %v2106, %v2194
        %2196 = vmatmul.bf16.gmra.mxu0 %v1427
        %v2197 = vpop.f32.mrf.mxu0
        %v2198 = vadd.f32 %v2109, %v2197
        %v2199 = vpop.f32.mrf.mxu0
        %v2200 = vadd.f32 %v2111, %v2199
        %2201 = vmatmul.bf16.gmra.mxu0 %v1431
        %v2202 = vpop.f32.mrf.mxu0
        %v2203 = vadd.f32 %v2114, %v2202
        %v2204 = vpop.f32.mrf.mxu0
        %v2205 = vadd.f32 %v2116, %v2204
        %2206 = vmatmul.bf16.gmra.mxu0 %v1435
        %v2207 = vpop.f32.mrf.mxu0
        %v2208 = vadd.f32 %v2119, %v2207
        %v2209 = vpop.f32.mrf.mxu0
        %v2210 = vadd.f32 %v2121, %v2209
        %2211 = vdwg.mxu0
        %v2212 = vadd.f32 %v1052, %v1777
        %v2213 = vadd.f32 %v1053, %v2133
        %v2214 = vadd.f32 %v1054, %v1779
        %v2215 = vadd.f32 %v1055, %v2135
        %v2216 = vadd.f32 %v1056, %v1782
        %v2217 = vadd.f32 %v1057, %v2138
        %v2218 = vadd.f32 %v1058, %v1784
        %v2219 = vadd.f32 %v1059, %v2140
        %v2220 = vadd.f32 %v1060, %v1787
        %v2221 = vadd.f32 %v1061, %v2143
        %v2222 = vadd.f32 %v1062, %v1789
        %v2223 = vadd.f32 %v1063, %v2145
        %v2224 = vadd.f32 %v1064, %v1792
        %v2225 = vadd.f32 %v1065, %v2148
        %v2226 = vadd.f32 %v1066, %v1794
        %v2227 = vadd.f32 %v1067, %v2150
        %v2228 = vadd.f32 %v1068, %v1797
        %v2229 = vadd.f32 %v1069, %v2153
        %v2230 = vadd.f32 %v1070, %v1799
        %v2231 = vadd.f32 %v1071, %v2155
        %v2232 = vadd.f32 %v1072, %v1802
        %v2233 = vadd.f32 %v1073, %v2158
        %v2234 = vadd.f32 %v1074, %v1804
        %v2235 = vadd.f32 %v1075, %v2160
        %v2236 = vadd.f32 %v1076, %v1807
        %v2237 = vadd.f32 %v1077, %v2163
        %v2238 = vadd.f32 %v1078, %v1809
        %v2239 = vadd.f32 %v1079, %v2165
        %v2240 = vadd.f32 %v1080, %v1812
        %v2241 = vadd.f32 %v1081, %v2168
        %v2242 = vadd.f32 %v1082, %v1814
        %v2243 = vadd.f32 %v1083, %v2170
        %v2244 = vadd.f32 %v1084, %v1817
        %v2245 = vadd.f32 %v1085, %v2173
        %v2246 = vadd.f32 %v1086, %v1819
        %v2247 = vadd.f32 %v1087, %v2175
        %v2248 = vadd.f32 %v1088, %v1822
        %v2249 = vadd.f32 %v1089, %v2178
        %v2250 = vadd.f32 %v1090, %v1824
        %v2251 = vadd.f32 %v1091, %v2180
        %v2252 = vadd.f32 %v1092, %v1827
        %v2253 = vadd.f32 %v1093, %v2183
        %v2254 = vadd.f32 %v1094, %v1829
        %v2255 = vadd.f32 %v1095, %v2185
        %v2256 = vadd.f32 %v1096, %v1832
        %v2257 = vadd.f32 %v1097, %v2188
        %v2258 = vadd.f32 %v1098, %v1834
        %v2259 = vadd.f32 %v1099, %v2190
        %v2260 = vadd.f32 %v1100, %v1837
        %v2261 = vadd.f32 %v1101, %v2193
        %v2262 = vadd.f32 %v1102, %v1839
        %v2263 = vadd.f32 %v1103, %v2195
        %v2264 = vadd.f32 %v1104, %v1842
        %v2265 = vadd.f32 %v1105, %v2198
        %v2266 = vadd.f32 %v1106, %v1844
        %v2267 = vadd.f32 %v1107, %v2200
        %v2268 = vadd.f32 %v1108, %v1847
        %v2269 = vadd.f32 %v1109, %v2203
        %v2270 = vadd.f32 %v1110, %v1849
        %v2271 = vadd.f32 %v1111, %v2205
        %v2272 = vadd.f32 %v1112, %v1852
        %v2273 = vadd.f32 %v1113, %v2208
        %v2274 = vadd.f32 %v1114, %v1854
        %v2275 = vadd.f32 %v1115, %v2210
        %2276 = vst [vmem:[#allocation2] sm:$0xff] %v2212
        %vm2277 = vcmask 556032
        %2278 = vst.msk [vmem:[#allocation2 + $0x8] sm:$0xff] %vm2277, %v2213
        %2279 = vst [vmem:[#allocation2 + $0x10] sm:$0xff] %v2214
        %2280 = vst.msk [vmem:[#allocation2 + $0x18] sm:$0xff] %vm2277, %v2215
        %2281 = vst [vmem:[#allocation2 + $0x20] sm:$0xff] %v2216
        %2282 = vst.msk [vmem:[#allocation2 + $0x28] sm:$0xff] %vm2277, %v2217
        %2283 = vst [vmem:[#allocation2 + $0x30] sm:$0xff] %v2218
        %2284 = vst.msk [vmem:[#allocation2 + $0x38] sm:$0xff] %vm2277, %v2219
        %2285 = vst [vmem:[#allocation2 + $0x40] sm:$0xff] %v2220
        %2286 = vst.msk [vmem:[#allocation2 + $0x48] sm:$0xff] %vm2277, %v2221
        %2287 = vst [vmem:[#allocation2 + $0x50] sm:$0xff] %v2222
        %2288 = vst.msk [vmem:[#allocation2 + $0x58] sm:$0xff] %vm2277, %v2223
        %2289 = vst [vmem:[#allocation2 + $0x60] sm:$0xff] %v2224
        %2290 = vst.msk [vmem:[#allocation2 + $0x68] sm:$0xff] %vm2277, %v2225
        %2291 = vst [vmem:[#allocation2 + $0x70] sm:$0xff] %v2226
        %2292 = vst.msk [vmem:[#allocation2 + $0x78] sm:$0xff] %vm2277, %v2227
        %2293 = vst [vmem:[#allocation2 + $0x80] sm:$0xff] %v2228
        %2294 = vst.msk [vmem:[#allocation2 + $0x88] sm:$0xff] %vm2277, %v2229
        %2295 = vst [vmem:[#allocation2 + $0x90] sm:$0xff] %v2230
        %2296 = vst.msk [vmem:[#allocation2 + $0x98] sm:$0xff] %vm2277, %v2231
        %2297 = vst [vmem:[#allocation2 + $0xa0] sm:$0xff] %v2232
        %2298 = vst.msk [vmem:[#allocation2 + $0xa8] sm:$0xff] %vm2277, %v2233
        %2299 = vst [vmem:[#allocation2 + $0xb0] sm:$0xff] %v2234
        %2300 = vst.msk [vmem:[#allocation2 + $0xb8] sm:$0xff] %vm2277, %v2235
        %2301 = vst [vmem:[#allocation2 + $0xc0] sm:$0xff] %v2236
        %2302 = vst.msk [vmem:[#allocation2 + $0xc8] sm:$0xff] %vm2277, %v2237
        %2303 = vst [vmem:[#allocation2 + $0xd0] sm:$0xff] %v2238
        %2304 = vst.msk [vmem:[#allocation2 + $0xd8] sm:$0xff] %vm2277, %v2239
        %2305 = vst [vmem:[#allocation2 + $0xe0] sm:$0xff] %v2240
        %2306 = vst.msk [vmem:[#allocation2 + $0xe8] sm:$0xff] %vm2277, %v2241
        %2307 = vst [vmem:[#allocation2 + $0xf0] sm:$0xff] %v2242
        %2308 = vst.msk [vmem:[#allocation2 + $0xf8] sm:$0xff] %vm2277, %v2243
        %2309 = vst [vmem:[#allocation2 + $0x100] sm:$0xff] %v2244
        %2310 = vst.msk [vmem:[#allocation2 + $0x108] sm:$0xff] %vm2277, %v2245
        %2311 = vst [vmem:[#allocation2 + $0x110] sm:$0xff] %v2246
        %2312 = vst.msk [vmem:[#allocation2 + $0x118] sm:$0xff] %vm2277, %v2247
        %2313 = vst [vmem:[#allocation2 + $0x120] sm:$0xff] %v2248
        %2314 = vst.msk [vmem:[#allocation2 + $0x128] sm:$0xff] %vm2277, %v2249
        %2315 = vst [vmem:[#allocation2 + $0x130] sm:$0xff] %v2250
        %2316 = vst.msk [vmem:[#allocation2 + $0x138] sm:$0xff] %vm2277, %v2251
        %2317 = vst [vmem:[#allocation2 + $0x140] sm:$0xff] %v2252
        %2318 = vst.msk [vmem:[#allocation2 + $0x148] sm:$0xff] %vm2277, %v2253
        %2319 = vst [vmem:[#allocation2 + $0x150] sm:$0xff] %v2254
        %2320 = vst.msk [vmem:[#allocation2 + $0x158] sm:$0xff] %vm2277, %v2255
        %2321 = vst [vmem:[#allocation2 + $0x160] sm:$0xff] %v2256
        %2322 = vst.msk [vmem:[#allocation2 + $0x168] sm:$0xff] %vm2277, %v2257
        %2323 = vst [vmem:[#allocation2 + $0x170] sm:$0xff] %v2258
        %2324 = vst.msk [vmem:[#allocation2 + $0x178] sm:$0xff] %vm2277, %v2259
        %2325 = vst [vmem:[#allocation2 + $0x180] sm:$0xff] %v2260
        %2326 = vst.msk [vmem:[#allocation2 + $0x188] sm:$0xff] %vm2277, %v2261
        %2327 = vst [vmem:[#allocation2 + $0x190] sm:$0xff] %v2262
        %2328 = vst.msk [vmem:[#allocation2 + $0x198] sm:$0xff] %vm2277, %v2263
        %2329 = vst [vmem:[#allocation2 + $0x1a0] sm:$0xff] %v2264
        %2330 = vst.msk [vmem:[#allocation2 + $0x1a8] sm:$0xff] %vm2277, %v2265
        %2331 = vst [vmem:[#allocation2 + $0x1b0] sm:$0xff] %v2266
        %2332 = vst.msk [vmem:[#allocation2 + $0x1b8] sm:$0xff] %vm2277, %v2267
        %2333 = vst [vmem:[#allocation2 + $0x1c0] sm:$0xff] %v2268
        %2334 = vst.msk [vmem:[#allocation2 + $0x1c8] sm:$0xff] %vm2277, %v2269
        %2335 = vst [vmem:[#allocation2 + $0x1d0] sm:$0xff] %v2270
        %2336 = vst.msk [vmem:[#allocation2 + $0x1d8] sm:$0xff] %vm2277, %v2271
        %2337 = vst [vmem:[#allocation2 + $0x1e0] sm:$0xff] %v2272
        %2338 = vst.msk [vmem:[#allocation2 + $0x1e8] sm:$0xff] %vm2277, %v2273
        %2339 = vst [vmem:[#allocation2 + $0x1f0] sm:$0xff] %v2274
        %2340 = vst.msk [vmem:[#allocation2 + $0x1f8] sm:$0xff] %vm2277, %v2275
        %p2341 = scmp.eq.s32.totalorder %s16, 1
        // Predicated region
        $region68: #{tpu_custom_call.1} parent=58 // pred_check
          %p2342 = pneg %p2341
        $region69: #{tpu_custom_call.1} parent=58 // pred_check_branch
          %2344 = sbr.rel (%p2342) target = $region71
        $region70: #{tpu_custom_call.1} parent=58 // pred_region
          %v2345 = vld [vmem:[#allocation2] sm:$0xff]
          %v2346 = vld [vmem:[#allocation2 + $0x8] sm:$0xff]
          %v2347 = vld [vmem:[#allocation2 + $0x10] sm:$0xff]
          %v2348 = vld [vmem:[#allocation2 + $0x18] sm:$0xff]
          %v2349 = vld [vmem:[#allocation2 + $0x20] sm:$0xff]
          %v2350 = vld [vmem:[#allocation2 + $0x28] sm:$0xff]
          %v2351 = vld [vmem:[#allocation2 + $0x30] sm:$0xff]
          %v2352 = vld [vmem:[#allocation2 + $0x38] sm:$0xff]
          %v2353 = vld [vmem:[#allocation2 + $0x40] sm:$0xff]
          %v2354 = vld [vmem:[#allocation2 + $0x48] sm:$0xff]
          %v2355 = vld [vmem:[#allocation2 + $0x50] sm:$0xff]
          %v2356 = vld [vmem:[#allocation2 + $0x58] sm:$0xff]
          %v2357 = vld [vmem:[#allocation2 + $0x60] sm:$0xff]
          %v2358 = vld [vmem:[#allocation2 + $0x68] sm:$0xff]
          %v2359 = vld [vmem:[#allocation2 + $0x70] sm:$0xff]
          %v2360 = vld [vmem:[#allocation2 + $0x78] sm:$0xff]
          %v2361 = vld [vmem:[#allocation2 + $0x80] sm:$0xff]
          %v2362 = vld [vmem:[#allocation2 + $0x88] sm:$0xff]
          %v2363 = vld [vmem:[#allocation2 + $0x90] sm:$0xff]
          %v2364 = vld [vmem:[#allocation2 + $0x98] sm:$0xff]
          %v2365 = vld [vmem:[#allocation2 + $0xa0] sm:$0xff]
          %v2366 = vld [vmem:[#allocation2 + $0xa8] sm:$0xff]
          %v2367 = vld [vmem:[#allocation2 + $0xb0] sm:$0xff]
          %v2368 = vld [vmem:[#allocation2 + $0xb8] sm:$0xff]
          %v2369 = vld [vmem:[#allocation2 + $0xc0] sm:$0xff]
          %v2370 = vld [vmem:[#allocation2 + $0xc8] sm:$0xff]
          %v2371 = vld [vmem:[#allocation2 + $0xd0] sm:$0xff]
          %v2372 = vld [vmem:[#allocation2 + $0xd8] sm:$0xff]
          %v2373 = vld [vmem:[#allocation2 + $0xe0] sm:$0xff]
          %v2374 = vld [vmem:[#allocation2 + $0xe8] sm:$0xff]
          %v2375 = vld [vmem:[#allocation2 + $0xf0] sm:$0xff]
          %v2376 = vld [vmem:[#allocation2 + $0xf8] sm:$0xff]
          %v2377 = vld [vmem:[#allocation2 + $0x100] sm:$0xff]
          %v2378 = vld [vmem:[#allocation2 + $0x108] sm:$0xff]
          %v2379 = vld [vmem:[#allocation2 + $0x110] sm:$0xff]
          %v2380 = vld [vmem:[#allocation2 + $0x118] sm:$0xff]
          %v2381 = vld [vmem:[#allocation2 + $0x120] sm:$0xff]
          %v2382 = vld [vmem:[#allocation2 + $0x128] sm:$0xff]
          %v2383 = vld [vmem:[#allocation2 + $0x130] sm:$0xff]
          %v2384 = vld [vmem:[#allocation2 + $0x138] sm:$0xff]
          %v2385 = vld [vmem:[#allocation2 + $0x140] sm:$0xff]
          %v2386 = vld [vmem:[#allocation2 + $0x148] sm:$0xff]
          %v2387 = vld [vmem:[#allocation2 + $0x150] sm:$0xff]
          %v2388 = vld [vmem:[#allocation2 + $0x158] sm:$0xff]
          %v2389 = vld [vmem:[#allocation2 + $0x160] sm:$0xff]
          %v2390 = vld [vmem:[#allocation2 + $0x168] sm:$0xff]
          %v2391 = vld [vmem:[#allocation2 + $0x170] sm:$0xff]
          %v2392 = vld [vmem:[#allocation2 + $0x178] sm:$0xff]
          %v2393 = vld [vmem:[#allocation2 + $0x180] sm:$0xff]
          %v2394 = vld [vmem:[#allocation2 + $0x188] sm:$0xff]
          %v2395 = vld [vmem:[#allocation2 + $0x190] sm:$0xff]
          %v2396 = vld [vmem:[#allocation2 + $0x198] sm:$0xff]
          %v2397 = vld [vmem:[#allocation2 + $0x1a0] sm:$0xff]
          %v2398 = vld [vmem:[#allocation2 + $0x1a8] sm:$0xff]
          %v2399 = vld [vmem:[#allocation2 + $0x1b0] sm:$0xff]
          %v2400 = vld [vmem:[#allocation2 + $0x1b8] sm:$0xff]
          %v2401 = vld [vmem:[#allocation2 + $0x1c0] sm:$0xff]
          %v2402 = vld [vmem:[#allocation2 + $0x1c8] sm:$0xff]
          %v2403 = vld [vmem:[#allocation2 + $0x1d0] sm:$0xff]
          %v2404 = vld [vmem:[#allocation2 + $0x1d8] sm:$0xff]
          %v2405 = vld [vmem:[#allocation2 + $0x1e0] sm:$0xff]
          %v2406 = vld [vmem:[#allocation2 + $0x1e8] sm:$0xff]
          %v2407 = vld [vmem:[#allocation2 + $0x1f0] sm:$0xff]
          %v2408 = vld [vmem:[#allocation2 + $0x1f8] sm:$0xff]
          %v2409 = vsel %vm2277, %v2346, 0.0
          %v2410 = vadd.f32 %v2345, %v2409
          %2411 = vadd.xlane.f32.xlu0 %v2410
          %v2412 = vpop.xlane.xlu0 %2411
          %v2413 = vsel %vm2277, %v2348, 0.0
          %v2414 = vadd.f32 %v2347, %v2413
          %2415 = vadd.xlane.f32.xlu0 %v2414
          %v2416 = vpop.xlane.xlu0 %2415
          %v2417 = vsel %vm2277, %v2350, 0.0
          %v2418 = vadd.f32 %v2349, %v2417
          %2419 = vadd.xlane.f32.xlu0 %v2418
          %v2420 = vpop.xlane.xlu0 %2419
          %v2421 = vsel %vm2277, %v2352, 0.0
          %v2422 = vadd.f32 %v2351, %v2421
          %2423 = vadd.xlane.f32.xlu0 %v2422
          %v2424 = vpop.xlane.xlu0 %2423
          %v2425 = vsel %vm2277, %v2354, 0.0
          %v2426 = vadd.f32 %v2353, %v2425
          %2427 = vadd.xlane.f32.xlu0 %v2426
          %v2428 = vpop.xlane.xlu0 %2427
          %v2429 = vsel %vm2277, %v2356, 0.0
          %v2430 = vadd.f32 %v2355, %v2429
          %2431 = vadd.xlane.f32.xlu0 %v2430
          %v2432 = vpop.xlane.xlu0 %2431
          %v2433 = vsel %vm2277, %v2358, 0.0
          %v2434 = vadd.f32 %v2357, %v2433
          %2435 = vadd.xlane.f32.xlu0 %v2434
          %v2436 = vpop.xlane.xlu0 %2435
          %v2437 = vsel %vm2277, %v2360, 0.0
          %v2438 = vadd.f32 %v2359, %v2437
          %2439 = vadd.xlane.f32.xlu0 %v2438
          %v2440 = vpop.xlane.xlu0 %2439
          %v2441 = vsel %vm2277, %v2362, 0.0
          %v2442 = vadd.f32 %v2361, %v2441
          %2443 = vadd.xlane.f32.xlu0 %v2442
          %v2444 = vpop.xlane.xlu0 %2443
          %v2445 = vsel %vm2277, %v2364, 0.0
          %v2446 = vadd.f32 %v2363, %v2445
          %2447 = vadd.xlane.f32.xlu0 %v2446
          %v2448 = vpop.xlane.xlu0 %2447
          %v2449 = vsel %vm2277, %v2366, 0.0
          %v2450 = vadd.f32 %v2365, %v2449
          %2451 = vadd.xlane.f32.xlu0 %v2450
          %v2452 = vpop.xlane.xlu0 %2451
          %v2453 = vsel %vm2277, %v2368, 0.0
          %v2454 = vadd.f32 %v2367, %v2453
          %2455 = vadd.xlane.f32.xlu0 %v2454
          %v2456 = vpop.xlane.xlu0 %2455
          %v2457 = vsel %vm2277, %v2370, 0.0
          %v2458 = vadd.f32 %v2369, %v2457
          %2459 = vadd.xlane.f32.xlu0 %v2458
          %v2460 = vpop.xlane.xlu0 %2459
          %v2461 = vsel %vm2277, %v2372, 0.0
          %v2462 = vadd.f32 %v2371, %v2461
          %2463 = vadd.xlane.f32.xlu0 %v2462
          %v2464 = vpop.xlane.xlu0 %2463
          %v2465 = vsel %vm2277, %v2374, 0.0
          %v2466 = vadd.f32 %v2373, %v2465
          %2467 = vadd.xlane.f32.xlu0 %v2466
          %v2468 = vpop.xlane.xlu0 %2467
          %v2469 = vsel %vm2277, %v2376, 0.0
          %v2470 = vadd.f32 %v2375, %v2469
          %2471 = vadd.xlane.f32.xlu0 %v2470
          %v2472 = vpop.xlane.xlu0 %2471
          %v2473 = vsel %vm2277, %v2378, 0.0
          %v2474 = vadd.f32 %v2377, %v2473
          %2475 = vadd.xlane.f32.xlu0 %v2474
          %v2476 = vpop.xlane.xlu0 %2475
          %v2477 = vsel %vm2277, %v2380, 0.0
          %v2478 = vadd.f32 %v2379, %v2477
          %2479 = vadd.xlane.f32.xlu0 %v2478
          %v2480 = vpop.xlane.xlu0 %2479
          %v2481 = vsel %vm2277, %v2382, 0.0
          %v2482 = vadd.f32 %v2381, %v2481
          %2483 = vadd.xlane.f32.xlu0 %v2482
          %v2484 = vpop.xlane.xlu0 %2483
          %v2485 = vsel %vm2277, %v2384, 0.0
          %v2486 = vadd.f32 %v2383, %v2485
          %2487 = vadd.xlane.f32.xlu0 %v2486
          %v2488 = vpop.xlane.xlu0 %2487
          %v2489 = vsel %vm2277, %v2386, 0.0
          %v2490 = vadd.f32 %v2385, %v2489
          %2491 = vadd.xlane.f32.xlu0 %v2490
          %v2492 = vpop.xlane.xlu0 %2491
          %v2493 = vsel %vm2277, %v2388, 0.0
          %v2494 = vadd.f32 %v2387, %v2493
          %2495 = vadd.xlane.f32.xlu0 %v2494
          %v2496 = vpop.xlane.xlu0 %2495
          %v2497 = vsel %vm2277, %v2390, 0.0
          %v2498 = vadd.f32 %v2389, %v2497
          %2499 = vadd.xlane.f32.xlu0 %v2498
          %v2500 = vpop.xlane.xlu0 %2499
          %v2501 = vsel %vm2277, %v2392, 0.0
          %v2502 = vadd.f32 %v2391, %v2501
          %2503 = vadd.xlane.f32.xlu0 %v2502
          %v2504 = vpop.xlane.xlu0 %2503
          %v2505 = vsel %vm2277, %v2394, 0.0
          %v2506 = vadd.f32 %v2393, %v2505
          %2507 = vadd.xlane.f32.xlu0 %v2506
          %v2508 = vpop.xlane.xlu0 %2507
          %v2509 = vsel %vm2277, %v2396, 0.0
          %v2510 = vadd.f32 %v2395, %v2509
          %2511 = vadd.xlane.f32.xlu0 %v2510
          %v2512 = vpop.xlane.xlu0 %2511
          %v2513 = vsel %vm2277, %v2398, 0.0
          %v2514 = vadd.f32 %v2397, %v2513
          %2515 = vadd.xlane.f32.xlu0 %v2514
          %v2516 = vpop.xlane.xlu0 %2515
          %v2517 = vsel %vm2277, %v2400, 0.0
          %v2518 = vadd.f32 %v2399, %v2517
          %2519 = vadd.xlane.f32.xlu0 %v2518
          %v2520 = vpop.xlane.xlu0 %2519
          %v2521 = vsel %vm2277, %v2402, 0.0
          %v2522 = vadd.f32 %v2401, %v2521
          %2523 = vadd.xlane.f32.xlu0 %v2522
          %v2524 = vpop.xlane.xlu0 %2523
          %v2525 = vsel %vm2277, %v2404, 0.0
          %v2526 = vadd.f32 %v2403, %v2525
          %2527 = vadd.xlane.f32.xlu0 %v2526
          %v2528 = vpop.xlane.xlu0 %2527
          %v2529 = vsel %vm2277, %v2406, 0.0
          %v2530 = vadd.f32 %v2405, %v2529
          %2531 = vadd.xlane.f32.xlu0 %v2530
          %v2532 = vpop.xlane.xlu0 %2531
          %v2533 = vsel %vm2277, %v2408, 0.0
          %v2534 = vadd.f32 %v2407, %v2533
          %2535 = vadd.xlane.f32.xlu0 %v2534
          %v2536 = vpop.xlane.xlu0 %2535
          %v2537 = vmul.f32 %v2345, %v2345
          %v2538 = vmul.f32 %v2346, %v2346
          %v2539 = vmul.f32 %v2347, %v2347
          %v2540 = vmul.f32 %v2348, %v2348
          %v2541 = vmul.f32 %v2349, %v2349
          %v2542 = vmul.f32 %v2350, %v2350
          %v2543 = vmul.f32 %v2351, %v2351
          %v2544 = vmul.f32 %v2352, %v2352
          %v2545 = vmul.f32 %v2353, %v2353
          %v2546 = vmul.f32 %v2354, %v2354
          %v2547 = vmul.f32 %v2355, %v2355
          %v2548 = vmul.f32 %v2356, %v2356
          %v2549 = vmul.f32 %v2357, %v2357
          %v2550 = vmul.f32 %v2358, %v2358
          %v2551 = vmul.f32 %v2359, %v2359
          %v2552 = vmul.f32 %v2360, %v2360
          %v2553 = vmul.f32 %v2361, %v2361
          %v2554 = vmul.f32 %v2362, %v2362
          %v2555 = vmul.f32 %v2363, %v2363
          %v2556 = vmul.f32 %v2364, %v2364
          %v2557 = vmul.f32 %v2365, %v2365
          %v2558 = vmul.f32 %v2366, %v2366
          %v2559 = vmul.f32 %v2367, %v2367
          %v2560 = vmul.f32 %v2368, %v2368
          %v2561 = vmul.f32 %v2369, %v2369
          %v2562 = vmul.f32 %v2370, %v2370
          %v2563 = vmul.f32 %v2371, %v2371
          %v2564 = vmul.f32 %v2372, %v2372
          %v2565 = vmul.f32 %v2373, %v2373
          %v2566 = vmul.f32 %v2374, %v2374
          %v2567 = vmul.f32 %v2375, %v2375
          %v2568 = vmul.f32 %v2376, %v2376
          %v2569 = vmul.f32 %v2377, %v2377
          %v2570 = vmul.f32 %v2378, %v2378
          %v2571 = vmul.f32 %v2379, %v2379
          %v2572 = vmul.f32 %v2380, %v2380
          %v2573 = vmul.f32 %v2381, %v2381
          %v2574 = vmul.f32 %v2382, %v2382
          %v2575 = vmul.f32 %v2383, %v2383
          %v2576 = vmul.f32 %v2384, %v2384
          %v2577 = vmul.f32 %v2385, %v2385
          %v2578 = vmul.f32 %v2386, %v2386
          %v2579 = vmul.f32 %v2387, %v2387
          %v2580 = vmul.f32 %v2388, %v2388
          %v2581 = vmul.f32 %v2389, %v2389
          %v2582 = vmul.f32 %v2390, %v2390
          %v2583 = vmul.f32 %v2391, %v2391
          %v2584 = vmul.f32 %v2392, %v2392
          %v2585 = vmul.f32 %v2393, %v2393
          %v2586 = vmul.f32 %v2394, %v2394
          %v2587 = vmul.f32 %v2395, %v2395
          %v2588 = vmul.f32 %v2396, %v2396
          %v2589 = vmul.f32 %v2397, %v2397
          %v2590 = vmul.f32 %v2398, %v2398
          %v2591 = vmul.f32 %v2399, %v2399
          %v2592 = vmul.f32 %v2400, %v2400
          %v2593 = vmul.f32 %v2401, %v2401
          %v2594 = vmul.f32 %v2402, %v2402
          %v2595 = vmul.f32 %v2403, %v2403
          %v2596 = vmul.f32 %v2404, %v2404
          %v2597 = vmul.f32 %v2405, %v2405
          %v2598 = vmul.f32 %v2406, %v2406
          %v2599 = vmul.f32 %v2407, %v2407
          %v2600 = vmul.f32 %v2408, %v2408
          %v2601 = vsel %vm2277, %v2538, 0.0
          %v2602 = vadd.f32 %v2537, %v2601
          %2603 = vadd.xlane.f32.xlu0 %v2602
          %v2604 = vpop.xlane.xlu0 %2603
          %v2605 = vsel %vm2277, %v2540, 0.0
          %v2606 = vadd.f32 %v2539, %v2605
          %2607 = vadd.xlane.f32.xlu0 %v2606
          %v2608 = vpop.xlane.xlu0 %2607
          %v2609 = vsel %vm2277, %v2542, 0.0
          %v2610 = vadd.f32 %v2541, %v2609
          %2611 = vadd.xlane.f32.xlu0 %v2610
          %v2612 = vpop.xlane.xlu0 %2611
          %v2613 = vsel %vm2277, %v2544, 0.0
          %v2614 = vadd.f32 %v2543, %v2613
          %2615 = vadd.xlane.f32.xlu0 %v2614
          %v2616 = vpop.xlane.xlu0 %2615
          %v2617 = vsel %vm2277, %v2546, 0.0
          %v2618 = vadd.f32 %v2545, %v2617
          %2619 = vadd.xlane.f32.xlu0 %v2618
          %v2620 = vpop.xlane.xlu0 %2619
          %v2621 = vsel %vm2277, %v2548, 0.0
          %v2622 = vadd.f32 %v2547, %v2621
          %2623 = vadd.xlane.f32.xlu0 %v2622
          %v2624 = vpop.xlane.xlu0 %2623
          %v2625 = vsel %vm2277, %v2550, 0.0
          %v2626 = vadd.f32 %v2549, %v2625
          %2627 = vadd.xlane.f32.xlu0 %v2626
          %v2628 = vpop.xlane.xlu0 %2627
          %v2629 = vsel %vm2277, %v2552, 0.0
          %v2630 = vadd.f32 %v2551, %v2629
          %2631 = vadd.xlane.f32.xlu0 %v2630
          %v2632 = vpop.xlane.xlu0 %2631
          %v2633 = vsel %vm2277, %v2554, 0.0
          %v2634 = vadd.f32 %v2553, %v2633
          %2635 = vadd.xlane.f32.xlu0 %v2634
          %v2636 = vpop.xlane.xlu0 %2635
          %v2637 = vsel %vm2277, %v2556, 0.0
          %v2638 = vadd.f32 %v2555, %v2637
          %2639 = vadd.xlane.f32.xlu0 %v2638
          %v2640 = vpop.xlane.xlu0 %2639
          %v2641 = vsel %vm2277, %v2558, 0.0
          %v2642 = vadd.f32 %v2557, %v2641
          %2643 = vadd.xlane.f32.xlu0 %v2642
          %v2644 = vpop.xlane.xlu0 %2643
          %v2645 = vsel %vm2277, %v2560, 0.0
          %v2646 = vadd.f32 %v2559, %v2645
          %2647 = vadd.xlane.f32.xlu0 %v2646
          %v2648 = vpop.xlane.xlu0 %2647
          %v2649 = vsel %vm2277, %v2562, 0.0
          %v2650 = vadd.f32 %v2561, %v2649
          %2651 = vadd.xlane.f32.xlu0 %v2650
          %v2652 = vpop.xlane.xlu0 %2651
          %v2653 = vsel %vm2277, %v2564, 0.0
          %v2654 = vadd.f32 %v2563, %v2653
          %2655 = vadd.xlane.f32.xlu0 %v2654
          %v2656 = vpop.xlane.xlu0 %2655
          %v2657 = vsel %vm2277, %v2566, 0.0
          %v2658 = vadd.f32 %v2565, %v2657
          %2659 = vadd.xlane.f32.xlu0 %v2658
          %v2660 = vpop.xlane.xlu0 %2659
          %v2661 = vsel %vm2277, %v2568, 0.0
          %v2662 = vadd.f32 %v2567, %v2661
          %2663 = vadd.xlane.f32.xlu0 %v2662
          %v2664 = vpop.xlane.xlu0 %2663
          %v2665 = vsel %vm2277, %v2570, 0.0
          %v2666 = vadd.f32 %v2569, %v2665
          %2667 = vadd.xlane.f32.xlu0 %v2666
          %v2668 = vpop.xlane.xlu0 %2667
          %v2669 = vsel %vm2277, %v2572, 0.0
          %v2670 = vadd.f32 %v2571, %v2669
          %2671 = vadd.xlane.f32.xlu0 %v2670
          %v2672 = vpop.xlane.xlu0 %2671
          %v2673 = vsel %vm2277, %v2574, 0.0
          %v2674 = vadd.f32 %v2573, %v2673
          %2675 = vadd.xlane.f32.xlu0 %v2674
          %v2676 = vpop.xlane.xlu0 %2675
          %v2677 = vsel %vm2277, %v2576, 0.0
          %v2678 = vadd.f32 %v2575, %v2677
          %2679 = vadd.xlane.f32.xlu0 %v2678
          %v2680 = vpop.xlane.xlu0 %2679
          %v2681 = vsel %vm2277, %v2578, 0.0
          %v2682 = vadd.f32 %v2577, %v2681
          %2683 = vadd.xlane.f32.xlu0 %v2682
          %v2684 = vpop.xlane.xlu0 %2683
          %v2685 = vsel %vm2277, %v2580, 0.0
          %v2686 = vadd.f32 %v2579, %v2685
          %2687 = vadd.xlane.f32.xlu0 %v2686
          %v2688 = vpop.xlane.xlu0 %2687
          %v2689 = vsel %vm2277, %v2582, 0.0
          %v2690 = vadd.f32 %v2581, %v2689
          %2691 = vadd.xlane.f32.xlu0 %v2690
          %v2692 = vpop.xlane.xlu0 %2691
          %v2693 = vsel %vm2277, %v2584, 0.0
          %v2694 = vadd.f32 %v2583, %v2693
          %2695 = vadd.xlane.f32.xlu0 %v2694
          %v2696 = vpop.xlane.xlu0 %2695
          %v2697 = vsel %vm2277, %v2586, 0.0
          %v2698 = vadd.f32 %v2585, %v2697
          %2699 = vadd.xlane.f32.xlu0 %v2698
          %v2700 = vpop.xlane.xlu0 %2699
          %v2701 = vsel %vm2277, %v2588, 0.0
          %v2702 = vadd.f32 %v2587, %v2701
          %2703 = vadd.xlane.f32.xlu0 %v2702
          %v2704 = vpop.xlane.xlu0 %2703
          %v2705 = vsel %vm2277, %v2590, 0.0
          %v2706 = vadd.f32 %v2589, %v2705
          %2707 = vadd.xlane.f32.xlu0 %v2706
          %v2708 = vpop.xlane.xlu0 %2707
          %v2709 = vsel %vm2277, %v2592, 0.0
          %v2710 = vadd.f32 %v2591, %v2709
          %2711 = vadd.xlane.f32.xlu0 %v2710
          %v2712 = vpop.xlane.xlu0 %2711
          %v2713 = vsel %vm2277, %v2594, 0.0
          %v2714 = vadd.f32 %v2593, %v2713
          %2715 = vadd.xlane.f32.xlu0 %v2714
          %v2716 = vpop.xlane.xlu0 %2715
          %v2717 = vsel %vm2277, %v2596, 0.0
          %v2718 = vadd.f32 %v2595, %v2717
          %2719 = vadd.xlane.f32.xlu0 %v2718
          %v2720 = vpop.xlane.xlu0 %2719
          %v2721 = vsel %vm2277, %v2598, 0.0
          %v2722 = vadd.f32 %v2597, %v2721
          %2723 = vadd.xlane.f32.xlu0 %v2722
          %v2724 = vpop.xlane.xlu0 %2723
          %v2725 = vsel %vm2277, %v2600, 0.0
          %v2726 = vadd.f32 %v2599, %v2725
          %2727 = vadd.xlane.f32.xlu0 %v2726
          %v2728 = vpop.xlane.xlu0 %2727
          %v2729 = vmul.f32 %v2412, 0.0051020407
          %v2730 = vmul.f32 %v2416, 0.0051020407
          %v2731 = vmul.f32 %v2420, 0.0051020407
          %v2732 = vmul.f32 %v2424, 0.0051020407
          %v2733 = vmul.f32 %v2428, 0.0051020407
          %v2734 = vmul.f32 %v2432, 0.0051020407
          %v2735 = vmul.f32 %v2436, 0.0051020407
          %v2736 = vmul.f32 %v2440, 0.0051020407
          %v2737 = vmul.f32 %v2444, 0.0051020407
          %v2738 = vmul.f32 %v2448, 0.0051020407
          %v2739 = vmul.f32 %v2452, 0.0051020407
          %v2740 = vmul.f32 %v2456, 0.0051020407
          %v2741 = vmul.f32 %v2460, 0.0051020407
          %v2742 = vmul.f32 %v2464, 0.0051020407
          %v2743 = vmul.f32 %v2468, 0.0051020407
          %v2744 = vmul.f32 %v2472, 0.0051020407
          %v2745 = vmul.f32 %v2476, 0.0051020407
          %v2746 = vmul.f32 %v2480, 0.0051020407
          %v2747 = vmul.f32 %v2484, 0.0051020407
          %v2748 = vmul.f32 %v2488, 0.0051020407
          %v2749 = vmul.f32 %v2492, 0.0051020407
          %v2750 = vmul.f32 %v2496, 0.0051020407
          %v2751 = vmul.f32 %v2500, 0.0051020407
          %v2752 = vmul.f32 %v2504, 0.0051020407
          %v2753 = vmul.f32 %v2508, 0.0051020407
          %v2754 = vmul.f32 %v2512, 0.0051020407
          %v2755 = vmul.f32 %v2516, 0.0051020407
          %v2756 = vmul.f32 %v2520, 0.0051020407
          %v2757 = vmul.f32 %v2524, 0.0051020407
          %v2758 = vmul.f32 %v2528, 0.0051020407
          %v2759 = vmul.f32 %v2532, 0.0051020407
          %v2760 = vmul.f32 %v2536, 0.0051020407
          %v2761 = vmul.f32 %v2604, 0.0051020407
          %v2762 = vmul.f32 %v2608, 0.0051020407
          %v2763 = vmul.f32 %v2612, 0.0051020407
          %v2764 = vmul.f32 %v2616, 0.0051020407
          %v2765 = vmul.f32 %v2620, 0.0051020407
          %v2766 = vmul.f32 %v2624, 0.0051020407
          %v2767 = vmul.f32 %v2628, 0.0051020407
          %v2768 = vmul.f32 %v2632, 0.0051020407
          %v2769 = vmul.f32 %v2636, 0.0051020407
          %v2770 = vmul.f32 %v2640, 0.0051020407
          %v2771 = vmul.f32 %v2644, 0.0051020407
          %v2772 = vmul.f32 %v2648, 0.0051020407
          %v2773 = vmul.f32 %v2652, 0.0051020407
          %v2774 = vmul.f32 %v2656, 0.0051020407
          %v2775 = vmul.f32 %v2660, 0.0051020407
          %v2776 = vmul.f32 %v2664, 0.0051020407
          %v2777 = vmul.f32 %v2668, 0.0051020407
          %v2778 = vmul.f32 %v2672, 0.0051020407
          %v2779 = vmul.f32 %v2676, 0.0051020407
          %v2780 = vmul.f32 %v2680, 0.0051020407
          %v2781 = vmul.f32 %v2684, 0.0051020407
          %v2782 = vmul.f32 %v2688, 0.0051020407
          %v2783 = vmul.f32 %v2692, 0.0051020407
          %v2784 = vmul.f32 %v2696, 0.0051020407
          %v2785 = vmul.f32 %v2700, 0.0051020407
          %v2786 = vmul.f32 %v2704, 0.0051020407
          %v2787 = vmul.f32 %v2708, 0.0051020407
          %v2788 = vmul.f32 %v2712, 0.0051020407
          %v2789 = vmul.f32 %v2716, 0.0051020407
          %v2790 = vmul.f32 %v2720, 0.0051020407
          %v2791 = vmul.f32 %v2724, 0.0051020407
          %v2792 = vmul.f32 %v2728, 0.0051020407
          %v2793 = vmul.f32 %v2729, %v2729
          %v2794 = vmul.f32 %v2730, %v2730
          %v2795 = vmul.f32 %v2731, %v2731
          %v2796 = vmul.f32 %v2732, %v2732
          %v2797 = vmul.f32 %v2733, %v2733
          %v2798 = vmul.f32 %v2734, %v2734
          %v2799 = vmul.f32 %v2735, %v2735
          %v2800 = vmul.f32 %v2736, %v2736
          %v2801 = vmul.f32 %v2737, %v2737
          %v2802 = vmul.f32 %v2738, %v2738
          %v2803 = vmul.f32 %v2739, %v2739
          %v2804 = vmul.f32 %v2740, %v2740
          %v2805 = vmul.f32 %v2741, %v2741
          %v2806 = vmul.f32 %v2742, %v2742
          %v2807 = vmul.f32 %v2743, %v2743
          %v2808 = vmul.f32 %v2744, %v2744
          %v2809 = vmul.f32 %v2745, %v2745
          %v2810 = vmul.f32 %v2746, %v2746
          %v2811 = vmul.f32 %v2747, %v2747
          %v2812 = vmul.f32 %v2748, %v2748
          %v2813 = vmul.f32 %v2749, %v2749
          %v2814 = vmul.f32 %v2750, %v2750
          %v2815 = vmul.f32 %v2751, %v2751
          %v2816 = vmul.f32 %v2752, %v2752
          %v2817 = vmul.f32 %v2753, %v2753
          %v2818 = vmul.f32 %v2754, %v2754
          %v2819 = vmul.f32 %v2755, %v2755
          %v2820 = vmul.f32 %v2756, %v2756
          %v2821 = vmul.f32 %v2757, %v2757
          %v2822 = vmul.f32 %v2758, %v2758
          %v2823 = vmul.f32 %v2759, %v2759
          %v2824 = vmul.f32 %v2760, %v2760
          %v2825 = vsub.f32 %v2761, %v2793
          %v2826 = vsub.f32 %v2762, %v2794
          %v2827 = vsub.f32 %v2763, %v2795
          %v2828 = vsub.f32 %v2764, %v2796
          %v2829 = vsub.f32 %v2765, %v2797
          %v2830 = vsub.f32 %v2766, %v2798
          %v2831 = vsub.f32 %v2767, %v2799
          %v2832 = vsub.f32 %v2768, %v2800
          %v2833 = vsub.f32 %v2769, %v2801
          %v2834 = vsub.f32 %v2770, %v2802
          %v2835 = vsub.f32 %v2771, %v2803
          %v2836 = vsub.f32 %v2772, %v2804
          %v2837 = vsub.f32 %v2773, %v2805
          %v2838 = vsub.f32 %v2774, %v2806
          %v2839 = vsub.f32 %v2775, %v2807
          %v2840 = vsub.f32 %v2776, %v2808
          %v2841 = vsub.f32 %v2777, %v2809
          %v2842 = vsub.f32 %v2778, %v2810
          %v2843 = vsub.f32 %v2779, %v2811
          %v2844 = vsub.f32 %v2780, %v2812
          %v2845 = vsub.f32 %v2781, %v2813
          %v2846 = vsub.f32 %v2782, %v2814
          %v2847 = vsub.f32 %v2783, %v2815
          %v2848 = vsub.f32 %v2784, %v2816
          %v2849 = vsub.f32 %v2785, %v2817
          %v2850 = vsub.f32 %v2786, %v2818
          %v2851 = vsub.f32 %v2787, %v2819
          %v2852 = vsub.f32 %v2788, %v2820
          %v2853 = vsub.f32 %v2789, %v2821
          %v2854 = vsub.f32 %v2790, %v2822
          %v2855 = vsub.f32 %v2791, %v2823
          %v2856 = vsub.f32 %v2792, %v2824
          %v2857 = vmax.f32 %v2825, 0.0
          %v2858 = vmax.f32 %v2826, 0.0
          %v2859 = vmax.f32 %v2827, 0.0
          %v2860 = vmax.f32 %v2828, 0.0
          %v2861 = vmax.f32 %v2829, 0.0
          %v2862 = vmax.f32 %v2830, 0.0
          %v2863 = vmax.f32 %v2831, 0.0
          %v2864 = vmax.f32 %v2832, 0.0
          %v2865 = vmax.f32 %v2833, 0.0
          %v2866 = vmax.f32 %v2834, 0.0
          %v2867 = vmax.f32 %v2835, 0.0
          %v2868 = vmax.f32 %v2836, 0.0
          %v2869 = vmax.f32 %v2837, 0.0
          %v2870 = vmax.f32 %v2838, 0.0
          %v2871 = vmax.f32 %v2839, 0.0
          %v2872 = vmax.f32 %v2840, 0.0
          %v2873 = vmax.f32 %v2841, 0.0
          %v2874 = vmax.f32 %v2842, 0.0
          %v2875 = vmax.f32 %v2843, 0.0
          %v2876 = vmax.f32 %v2844, 0.0
          %v2877 = vmax.f32 %v2845, 0.0
          %v2878 = vmax.f32 %v2846, 0.0
          %v2879 = vmax.f32 %v2847, 0.0
          %v2880 = vmax.f32 %v2848, 0.0
          %v2881 = vmax.f32 %v2849, 0.0
          %v2882 = vmax.f32 %v2850, 0.0
          %v2883 = vmax.f32 %v2851, 0.0
          %v2884 = vmax.f32 %v2852, 0.0
          %v2885 = vmax.f32 %v2853, 0.0
          %v2886 = vmax.f32 %v2854, 0.0
          %v2887 = vmax.f32 %v2855, 0.0
          %v2888 = vmax.f32 %v2856, 0.0
          %v2889 = vld [vmem:[%s3] sm:$0xff]
          %v2890 = vld [vmem:[%s3 + $0x8] sm:$0xff]
          %v2891 = vld [vmem:[%s3 + $0x10] sm:$0xff]
          %v2892 = vld [vmem:[%s3 + $0x18] sm:$0xff]
          %v2893 = vld [vmem:[%s3 + $0x20] sm:$0xff]
          %v2894 = vld [vmem:[%s3 + $0x28] sm:$0xff]
          %v2895 = vld [vmem:[%s3 + $0x30] sm:$0xff]
          %v2896 = vld [vmem:[%s3 + $0x38] sm:$0xff]
          %v2897 = vld [vmem:[%s3 + $0x40] sm:$0xff]
          %v2898 = vld [vmem:[%s3 + $0x48] sm:$0xff]
          %v2899 = vld [vmem:[%s3 + $0x50] sm:$0xff]
          %v2900 = vld [vmem:[%s3 + $0x58] sm:$0xff]
          %v2901 = vld [vmem:[%s3 + $0x60] sm:$0xff]
          %v2902 = vld [vmem:[%s3 + $0x68] sm:$0xff]
          %v2903 = vld [vmem:[%s3 + $0x70] sm:$0xff]
          %v2904 = vld [vmem:[%s3 + $0x78] sm:$0xff]
          %v2905 = vld [vmem:[%s3 + $0x80] sm:$0xff]
          %v2906 = vld [vmem:[%s3 + $0x88] sm:$0xff]
          %v2907 = vld [vmem:[%s3 + $0x90] sm:$0xff]
          %v2908 = vld [vmem:[%s3 + $0x98] sm:$0xff]
          %v2909 = vld [vmem:[%s3 + $0xa0] sm:$0xff]
          %v2910 = vld [vmem:[%s3 + $0xa8] sm:$0xff]
          %v2911 = vld [vmem:[%s3 + $0xb0] sm:$0xff]
          %v2912 = vld [vmem:[%s3 + $0xb8] sm:$0xff]
          %v2913 = vld [vmem:[%s3 + $0xc0] sm:$0xff]
          %v2914 = vld [vmem:[%s3 + $0xc8] sm:$0xff]
          %v2915 = vld [vmem:[%s3 + $0xd0] sm:$0xff]
          %v2916 = vld [vmem:[%s3 + $0xd8] sm:$0xff]
          %v2917 = vld [vmem:[%s3 + $0xe0] sm:$0xff]
          %v2918 = vld [vmem:[%s3 + $0xe8] sm:$0xff]
          %v2919 = vld [vmem:[%s3 + $0xf0] sm:$0xff]
          %v2920 = vld [vmem:[%s3 + $0xf8] sm:$0xff]
          %v2921 = vadd.f32 %v2857, 1e-05
          %v2922 = vadd.f32 %v2858, 1e-05
          %v2923 = vadd.f32 %v2859, 1e-05
          %v2924 = vadd.f32 %v2860, 1e-05
          %v2925 = vadd.f32 %v2861, 1e-05
          %v2926 = vadd.f32 %v2862, 1e-05
          %v2927 = vadd.f32 %v2863, 1e-05
          %v2928 = vadd.f32 %v2864, 1e-05
          %v2929 = vadd.f32 %v2865, 1e-05
          %v2930 = vadd.f32 %v2866, 1e-05
          %v2931 = vadd.f32 %v2867, 1e-05
          %v2932 = vadd.f32 %v2868, 1e-05
          %v2933 = vadd.f32 %v2869, 1e-05
          %v2934 = vadd.f32 %v2870, 1e-05
          %v2935 = vadd.f32 %v2871, 1e-05
          %v2936 = vadd.f32 %v2872, 1e-05
          %v2937 = vadd.f32 %v2873, 1e-05
          %v2938 = vadd.f32 %v2874, 1e-05
          %v2939 = vadd.f32 %v2875, 1e-05
          %v2940 = vadd.f32 %v2876, 1e-05
          %v2941 = vadd.f32 %v2877, 1e-05
          %v2942 = vadd.f32 %v2878, 1e-05
          %v2943 = vadd.f32 %v2879, 1e-05
          %v2944 = vadd.f32 %v2880, 1e-05
          %v2945 = vadd.f32 %v2881, 1e-05
          %v2946 = vadd.f32 %v2882, 1e-05
          %v2947 = vadd.f32 %v2883, 1e-05
          %v2948 = vadd.f32 %v2884, 1e-05
          %v2949 = vadd.f32 %v2885, 1e-05
          %v2950 = vadd.f32 %v2886, 1e-05
          %v2951 = vadd.f32 %v2887, 1e-05
          %v2952 = vadd.f32 %v2888, 1e-05
          %v2953 = vrsqrt.pop %v2921
          %v2954 = vmul.f32 %v2953, %v2921
          %v2955 = vmul.f32 %v2954, %v2953
          %v2956 = vmul.f32 0.5, %v2955
          %v2957 = vsub.f32 1.5, %v2956
          %v2958 = vmul.f32 %v2953, %v2957
          %vm2959 = vweird.f32 %v2921
          %vm2960 = vweird.f32 %v2953
          %vm2961 = vmor %vm2959, %vm2960
          %v2962 = vsel %vm2961, %v2953, %v2958
          %v2963 = vrsqrt.pop %v2922
          %v2964 = vmul.f32 %v2963, %v2922
          %v2965 = vmul.f32 %v2964, %v2963
          %v2966 = vmul.f32 0.5, %v2965
          %v2967 = vsub.f32 1.5, %v2966
          %v2968 = vmul.f32 %v2963, %v2967
          %vm2969 = vweird.f32 %v2922
          %vm2970 = vweird.f32 %v2963
          %vm2971 = vmor %vm2969, %vm2970
          %v2972 = vsel %vm2971, %v2963, %v2968
          %v2973 = vrsqrt.pop %v2923
          %v2974 = vmul.f32 %v2973, %v2923
          %v2975 = vmul.f32 %v2974, %v2973
          %v2976 = vmul.f32 0.5, %v2975
          %v2977 = vsub.f32 1.5, %v2976
          %v2978 = vmul.f32 %v2973, %v2977
          %vm2979 = vweird.f32 %v2923
          %vm2980 = vweird.f32 %v2973
          %vm2981 = vmor %vm2979, %vm2980
          %v2982 = vsel %vm2981, %v2973, %v2978
          %v2983 = vrsqrt.pop %v2924
          %v2984 = vmul.f32 %v2983, %v2924
          %v2985 = vmul.f32 %v2984, %v2983
          %v2986 = vmul.f32 0.5, %v2985
          %v2987 = vsub.f32 1.5, %v2986
          %v2988 = vmul.f32 %v2983, %v2987
          %vm2989 = vweird.f32 %v2924
          %vm2990 = vweird.f32 %v2983
          %vm2991 = vmor %vm2989, %vm2990
          %v2992 = vsel %vm2991, %v2983, %v2988
          %v2993 = vrsqrt.pop %v2925
          %v2994 = vmul.f32 %v2993, %v2925
          %v2995 = vmul.f32 %v2994, %v2993
          %v2996 = vmul.f32 0.5, %v2995
          %v2997 = vsub.f32 1.5, %v2996
          %v2998 = vmul.f32 %v2993, %v2997
          %vm2999 = vweird.f32 %v2925
          %vm3000 = vweird.f32 %v2993
          %vm3001 = vmor %vm2999, %vm3000
          %v3002 = vsel %vm3001, %v2993, %v2998
          %v3003 = vrsqrt.pop %v2926
          %v3004 = vmul.f32 %v3003, %v2926
          %v3005 = vmul.f32 %v3004, %v3003
          %v3006 = vmul.f32 0.5, %v3005
          %v3007 = vsub.f32 1.5, %v3006
          %v3008 = vmul.f32 %v3003, %v3007
          %vm3009 = vweird.f32 %v2926
          %vm3010 = vweird.f32 %v3003
          %vm3011 = vmor %vm3009, %vm3010
          %v3012 = vsel %vm3011, %v3003, %v3008
          %v3013 = vrsqrt.pop %v2927
          %v3014 = vmul.f32 %v3013, %v2927
          %v3015 = vmul.f32 %v3014, %v3013
          %v3016 = vmul.f32 0.5, %v3015
          %v3017 = vsub.f32 1.5, %v3016
          %v3018 = vmul.f32 %v3013, %v3017
          %vm3019 = vweird.f32 %v2927
          %vm3020 = vweird.f32 %v3013
          %vm3021 = vmor %vm3019, %vm3020
          %v3022 = vsel %vm3021, %v3013, %v3018
          %v3023 = vrsqrt.pop %v2928
          %v3024 = vmul.f32 %v3023, %v2928
          %v3025 = vmul.f32 %v3024, %v3023
          %v3026 = vmul.f32 0.5, %v3025
          %v3027 = vsub.f32 1.5, %v3026
          %v3028 = vmul.f32 %v3023, %v3027
          %vm3029 = vweird.f32 %v2928
          %vm3030 = vweird.f32 %v3023
          %vm3031 = vmor %vm3029, %vm3030
          %v3032 = vsel %vm3031, %v3023, %v3028
          %v3033 = vrsqrt.pop %v2929
          %v3034 = vmul.f32 %v3033, %v2929
          %v3035 = vmul.f32 %v3034, %v3033
          %v3036 = vmul.f32 0.5, %v3035
          %v3037 = vsub.f32 1.5, %v3036
          %v3038 = vmul.f32 %v3033, %v3037
          %vm3039 = vweird.f32 %v2929
          %vm3040 = vweird.f32 %v3033
          %vm3041 = vmor %vm3039, %vm3040
          %v3042 = vsel %vm3041, %v3033, %v3038
          %v3043 = vrsqrt.pop %v2930
          %v3044 = vmul.f32 %v3043, %v2930
          %v3045 = vmul.f32 %v3044, %v3043
          %v3046 = vmul.f32 0.5, %v3045
          %v3047 = vsub.f32 1.5, %v3046
          %v3048 = vmul.f32 %v3043, %v3047
          %vm3049 = vweird.f32 %v2930
          %vm3050 = vweird.f32 %v3043
          %vm3051 = vmor %vm3049, %vm3050
          %v3052 = vsel %vm3051, %v3043, %v3048
          %v3053 = vrsqrt.pop %v2931
          %v3054 = vmul.f32 %v3053, %v2931
          %v3055 = vmul.f32 %v3054, %v3053
          %v3056 = vmul.f32 0.5, %v3055
          %v3057 = vsub.f32 1.5, %v3056
          %v3058 = vmul.f32 %v3053, %v3057
          %vm3059 = vweird.f32 %v2931
          %vm3060 = vweird.f32 %v3053
          %vm3061 = vmor %vm3059, %vm3060
          %v3062 = vsel %vm3061, %v3053, %v3058
          %v3063 = vrsqrt.pop %v2932
          %v3064 = vmul.f32 %v3063, %v2932
          %v3065 = vmul.f32 %v3064, %v3063
          %v3066 = vmul.f32 0.5, %v3065
          %v3067 = vsub.f32 1.5, %v3066
          %v3068 = vmul.f32 %v3063, %v3067
          %vm3069 = vweird.f32 %v2932
          %vm3070 = vweird.f32 %v3063
          %vm3071 = vmor %vm3069, %vm3070
          %v3072 = vsel %vm3071, %v3063, %v3068
          %v3073 = vrsqrt.pop %v2933
          %v3074 = vmul.f32 %v3073, %v2933
          %v3075 = vmul.f32 %v3074, %v3073
          %v3076 = vmul.f32 0.5, %v3075
          %v3077 = vsub.f32 1.5, %v3076
          %v3078 = vmul.f32 %v3073, %v3077
          %vm3079 = vweird.f32 %v2933
          %vm3080 = vweird.f32 %v3073
          %vm3081 = vmor %vm3079, %vm3080
          %v3082 = vsel %vm3081, %v3073, %v3078
          %v3083 = vrsqrt.pop %v2934
          %v3084 = vmul.f32 %v3083, %v2934
          %v3085 = vmul.f32 %v3084, %v3083
          %v3086 = vmul.f32 0.5, %v3085
          %v3087 = vsub.f32 1.5, %v3086
          %v3088 = vmul.f32 %v3083, %v3087
          %vm3089 = vweird.f32 %v2934
          %vm3090 = vweird.f32 %v3083
          %vm3091 = vmor %vm3089, %vm3090
          %v3092 = vsel %vm3091, %v3083, %v3088
          %v3093 = vrsqrt.pop %v2935
          %v3094 = vmul.f32 %v3093, %v2935
          %v3095 = vmul.f32 %v3094, %v3093
          %v3096 = vmul.f32 0.5, %v3095
          %v3097 = vsub.f32 1.5, %v3096
          %v3098 = vmul.f32 %v3093, %v3097
          %vm3099 = vweird.f32 %v2935
          %vm3100 = vweird.f32 %v3093
          %vm3101 = vmor %vm3099, %vm3100
          %v3102 = vsel %vm3101, %v3093, %v3098
          %v3103 = vrsqrt.pop %v2936
          %v3104 = vmul.f32 %v3103, %v2936
          %v3105 = vmul.f32 %v3104, %v3103
          %v3106 = vmul.f32 0.5, %v3105
          %v3107 = vsub.f32 1.5, %v3106
          %v3108 = vmul.f32 %v3103, %v3107
          %vm3109 = vweird.f32 %v2936
          %vm3110 = vweird.f32 %v3103
          %vm3111 = vmor %vm3109, %vm3110
          %v3112 = vsel %vm3111, %v3103, %v3108
          %v3113 = vrsqrt.pop %v2937
          %v3114 = vmul.f32 %v3113, %v2937
          %v3115 = vmul.f32 %v3114, %v3113
          %v3116 = vmul.f32 0.5, %v3115
          %v3117 = vsub.f32 1.5, %v3116
          %v3118 = vmul.f32 %v3113, %v3117
          %vm3119 = vweird.f32 %v2937
          %vm3120 = vweird.f32 %v3113
          %vm3121 = vmor %vm3119, %vm3120
          %v3122 = vsel %vm3121, %v3113, %v3118
          %v3123 = vrsqrt.pop %v2938
          %v3124 = vmul.f32 %v3123, %v2938
          %v3125 = vmul.f32 %v3124, %v3123
          %v3126 = vmul.f32 0.5, %v3125
          %v3127 = vsub.f32 1.5, %v3126
          %v3128 = vmul.f32 %v3123, %v3127
          %vm3129 = vweird.f32 %v2938
          %vm3130 = vweird.f32 %v3123
          %vm3131 = vmor %vm3129, %vm3130
          %v3132 = vsel %vm3131, %v3123, %v3128
          %v3133 = vrsqrt.pop %v2939
          %v3134 = vmul.f32 %v3133, %v2939
          %v3135 = vmul.f32 %v3134, %v3133
          %v3136 = vmul.f32 0.5, %v3135
          %v3137 = vsub.f32 1.5, %v3136
          %v3138 = vmul.f32 %v3133, %v3137
          %vm3139 = vweird.f32 %v2939
          %vm3140 = vweird.f32 %v3133
          %vm3141 = vmor %vm3139, %vm3140
          %v3142 = vsel %vm3141, %v3133, %v3138
          %v3143 = vrsqrt.pop %v2940
          %v3144 = vmul.f32 %v3143, %v2940
          %v3145 = vmul.f32 %v3144, %v3143
          %v3146 = vmul.f32 0.5, %v3145
          %v3147 = vsub.f32 1.5, %v3146
          %v3148 = vmul.f32 %v3143, %v3147
          %vm3149 = vweird.f32 %v2940
          %vm3150 = vweird.f32 %v3143
          %vm3151 = vmor %vm3149, %vm3150
          %v3152 = vsel %vm3151, %v3143, %v3148
          %v3153 = vrsqrt.pop %v2941
          %v3154 = vmul.f32 %v3153, %v2941
          %v3155 = vmul.f32 %v3154, %v3153
          %v3156 = vmul.f32 0.5, %v3155
          %v3157 = vsub.f32 1.5, %v3156
          %v3158 = vmul.f32 %v3153, %v3157
          %vm3159 = vweird.f32 %v2941
          %vm3160 = vweird.f32 %v3153
          %vm3161 = vmor %vm3159, %vm3160
          %v3162 = vsel %vm3161, %v3153, %v3158
          %v3163 = vrsqrt.pop %v2942
          %v3164 = vmul.f32 %v3163, %v2942
          %v3165 = vmul.f32 %v3164, %v3163
          %v3166 = vmul.f32 0.5, %v3165
          %v3167 = vsub.f32 1.5, %v3166
          %v3168 = vmul.f32 %v3163, %v3167
          %vm3169 = vweird.f32 %v2942
          %vm3170 = vweird.f32 %v3163
          %vm3171 = vmor %vm3169, %vm3170
          %v3172 = vsel %vm3171, %v3163, %v3168
          %v3173 = vrsqrt.pop %v2943
          %v3174 = vmul.f32 %v3173, %v2943
          %v3175 = vmul.f32 %v3174, %v3173
          %v3176 = vmul.f32 0.5, %v3175
          %v3177 = vsub.f32 1.5, %v3176
          %v3178 = vmul.f32 %v3173, %v3177
          %vm3179 = vweird.f32 %v2943
          %vm3180 = vweird.f32 %v3173
          %vm3181 = vmor %vm3179, %vm3180
          %v3182 = vsel %vm3181, %v3173, %v3178
          %v3183 = vrsqrt.pop %v2944
          %v3184 = vmul.f32 %v3183, %v2944
          %v3185 = vmul.f32 %v3184, %v3183
          %v3186 = vmul.f32 0.5, %v3185
          %v3187 = vsub.f32 1.5, %v3186
          %v3188 = vmul.f32 %v3183, %v3187
          %vm3189 = vweird.f32 %v2944
          %vm3190 = vweird.f32 %v3183
          %vm3191 = vmor %vm3189, %vm3190
          %v3192 = vsel %vm3191, %v3183, %v3188
          %v3193 = vrsqrt.pop %v2945
          %v3194 = vmul.f32 %v3193, %v2945
          %v3195 = vmul.f32 %v3194, %v3193
          %v3196 = vmul.f32 0.5, %v3195
          %v3197 = vsub.f32 1.5, %v3196
          %v3198 = vmul.f32 %v3193, %v3197
          %vm3199 = vweird.f32 %v2945
          %vm3200 = vweird.f32 %v3193
          %vm3201 = vmor %vm3199, %vm3200
          %v3202 = vsel %vm3201, %v3193, %v3198
          %v3203 = vrsqrt.pop %v2946
          %v3204 = vmul.f32 %v3203, %v2946
          %v3205 = vmul.f32 %v3204, %v3203
          %v3206 = vmul.f32 0.5, %v3205
          %v3207 = vsub.f32 1.5, %v3206
          %v3208 = vmul.f32 %v3203, %v3207
          %vm3209 = vweird.f32 %v2946
          %vm3210 = vweird.f32 %v3203
          %vm3211 = vmor %vm3209, %vm3210
          %v3212 = vsel %vm3211, %v3203, %v3208
          %v3213 = vrsqrt.pop %v2947
          %v3214 = vmul.f32 %v3213, %v2947
          %v3215 = vmul.f32 %v3214, %v3213
          %v3216 = vmul.f32 0.5, %v3215
          %v3217 = vsub.f32 1.5, %v3216
          %v3218 = vmul.f32 %v3213, %v3217
          %vm3219 = vweird.f32 %v2947
          %vm3220 = vweird.f32 %v3213
          %vm3221 = vmor %vm3219, %vm3220
          %v3222 = vsel %vm3221, %v3213, %v3218
          %v3223 = vrsqrt.pop %v2948
          %v3224 = vmul.f32 %v3223, %v2948
          %v3225 = vmul.f32 %v3224, %v3223
          %v3226 = vmul.f32 0.5, %v3225
          %v3227 = vsub.f32 1.5, %v3226
          %v3228 = vmul.f32 %v3223, %v3227
          %vm3229 = vweird.f32 %v2948
          %vm3230 = vweird.f32 %v3223
          %vm3231 = vmor %vm3229, %vm3230
          %v3232 = vsel %vm3231, %v3223, %v3228
          %v3233 = vrsqrt.pop %v2949
          %v3234 = vmul.f32 %v3233, %v2949
          %v3235 = vmul.f32 %v3234, %v3233
          %v3236 = vmul.f32 0.5, %v3235
          %v3237 = vsub.f32 1.5, %v3236
          %v3238 = vmul.f32 %v3233, %v3237
          %vm3239 = vweird.f32 %v2949
          %vm3240 = vweird.f32 %v3233
          %vm3241 = vmor %vm3239, %vm3240
          %v3242 = vsel %vm3241, %v3233, %v3238
          %v3243 = vrsqrt.pop %v2950
          %v3244 = vmul.f32 %v3243, %v2950
          %v3245 = vmul.f32 %v3244, %v3243
          %v3246 = vmul.f32 0.5, %v3245
          %v3247 = vsub.f32 1.5, %v3246
          %v3248 = vmul.f32 %v3243, %v3247
          %vm3249 = vweird.f32 %v2950
          %vm3250 = vweird.f32 %v3243
          %vm3251 = vmor %vm3249, %vm3250
          %v3252 = vsel %vm3251, %v3243, %v3248
          %v3253 = vrsqrt.pop %v2951
          %v3254 = vmul.f32 %v3253, %v2951
          %v3255 = vmul.f32 %v3254, %v3253
          %v3256 = vmul.f32 0.5, %v3255
          %v3257 = vsub.f32 1.5, %v3256
          %v3258 = vmul.f32 %v3253, %v3257
          %vm3259 = vweird.f32 %v2951
          %vm3260 = vweird.f32 %v3253
          %vm3261 = vmor %vm3259, %vm3260
          %v3262 = vsel %vm3261, %v3253, %v3258
          %v3263 = vrsqrt.pop %v2952
          %v3264 = vmul.f32 %v3263, %v2952
          %v3265 = vmul.f32 %v3264, %v3263
          %v3266 = vmul.f32 0.5, %v3265
          %v3267 = vsub.f32 1.5, %v3266
          %v3268 = vmul.f32 %v3263, %v3267
          %vm3269 = vweird.f32 %v2952
          %vm3270 = vweird.f32 %v3263
          %vm3271 = vmor %vm3269, %vm3270
          %v3272 = vsel %vm3271, %v3263, %v3268
          %v3273 = vmul.f32 %v2889, %v2962
          %v3274 = vmul.f32 %v2890, %v2972
          %v3275 = vmul.f32 %v2891, %v2982
          %v3276 = vmul.f32 %v2892, %v2992
          %v3277 = vmul.f32 %v2893, %v3002
          %v3278 = vmul.f32 %v2894, %v3012
          %v3279 = vmul.f32 %v2895, %v3022
          %v3280 = vmul.f32 %v2896, %v3032
          %v3281 = vmul.f32 %v2897, %v3042
          %v3282 = vmul.f32 %v2898, %v3052
          %v3283 = vmul.f32 %v2899, %v3062
          %v3284 = vmul.f32 %v2900, %v3072
          %v3285 = vmul.f32 %v2901, %v3082
          %v3286 = vmul.f32 %v2902, %v3092
          %v3287 = vmul.f32 %v2903, %v3102
          %v3288 = vmul.f32 %v2904, %v3112
          %v3289 = vmul.f32 %v2905, %v3122
          %v3290 = vmul.f32 %v2906, %v3132
          %v3291 = vmul.f32 %v2907, %v3142
          %v3292 = vmul.f32 %v2908, %v3152
          %v3293 = vmul.f32 %v2909, %v3162
          %v3294 = vmul.f32 %v2910, %v3172
          %v3295 = vmul.f32 %v2911, %v3182
          %v3296 = vmul.f32 %v2912, %v3192
          %v3297 = vmul.f32 %v2913, %v3202
          %v3298 = vmul.f32 %v2914, %v3212
          %v3299 = vmul.f32 %v2915, %v3222
          %v3300 = vmul.f32 %v2916, %v3232
          %v3301 = vmul.f32 %v2917, %v3242
          %v3302 = vmul.f32 %v2918, %v3252
          %v3303 = vmul.f32 %v2919, %v3262
          %v3304 = vmul.f32 %v2920, %v3272
          %v3305 = vld [vmem:[%s4] sm:$0xff]
          %v3306 = vld [vmem:[%s4 + $0x8] sm:$0xff]
          %v3307 = vld [vmem:[%s4 + $0x10] sm:$0xff]
          %v3308 = vld [vmem:[%s4 + $0x18] sm:$0xff]
          %v3309 = vld [vmem:[%s4 + $0x20] sm:$0xff]
          %v3310 = vld [vmem:[%s4 + $0x28] sm:$0xff]
          %v3311 = vld [vmem:[%s4 + $0x30] sm:$0xff]
          %v3312 = vld [vmem:[%s4 + $0x38] sm:$0xff]
          %v3313 = vld [vmem:[%s4 + $0x40] sm:$0xff]
          %v3314 = vld [vmem:[%s4 + $0x48] sm:$0xff]
          %v3315 = vld [vmem:[%s4 + $0x50] sm:$0xff]
          %v3316 = vld [vmem:[%s4 + $0x58] sm:$0xff]
          %v3317 = vld [vmem:[%s4 + $0x60] sm:$0xff]
          %v3318 = vld [vmem:[%s4 + $0x68] sm:$0xff]
          %v3319 = vld [vmem:[%s4 + $0x70] sm:$0xff]
          %v3320 = vld [vmem:[%s4 + $0x78] sm:$0xff]
          %v3321 = vld [vmem:[%s4 + $0x80] sm:$0xff]
          %v3322 = vld [vmem:[%s4 + $0x88] sm:$0xff]
          %v3323 = vld [vmem:[%s4 + $0x90] sm:$0xff]
          %v3324 = vld [vmem:[%s4 + $0x98] sm:$0xff]
          %v3325 = vld [vmem:[%s4 + $0xa0] sm:$0xff]
          %v3326 = vld [vmem:[%s4 + $0xa8] sm:$0xff]
          %v3327 = vld [vmem:[%s4 + $0xb0] sm:$0xff]
          %v3328 = vld [vmem:[%s4 + $0xb8] sm:$0xff]
          %v3329 = vld [vmem:[%s4 + $0xc0] sm:$0xff]
          %v3330 = vld [vmem:[%s4 + $0xc8] sm:$0xff]
          %v3331 = vld [vmem:[%s4 + $0xd0] sm:$0xff]
          %v3332 = vld [vmem:[%s4 + $0xd8] sm:$0xff]
          %v3333 = vld [vmem:[%s4 + $0xe0] sm:$0xff]
          %v3334 = vld [vmem:[%s4 + $0xe8] sm:$0xff]
          %v3335 = vld [vmem:[%s4 + $0xf0] sm:$0xff]
          %v3336 = vld [vmem:[%s4 + $0xf8] sm:$0xff]
          %v3337 = vmul.f32 %v2729, %v3273
          %v3338 = vmul.f32 %v2730, %v3274
          %v3339 = vmul.f32 %v2731, %v3275
          %v3340 = vmul.f32 %v2732, %v3276
          %v3341 = vmul.f32 %v2733, %v3277
          %v3342 = vmul.f32 %v2734, %v3278
          %v3343 = vmul.f32 %v2735, %v3279
          %v3344 = vmul.f32 %v2736, %v3280
          %v3345 = vmul.f32 %v2737, %v3281
          %v3346 = vmul.f32 %v2738, %v3282
          %v3347 = vmul.f32 %v2739, %v3283
          %v3348 = vmul.f32 %v2740, %v3284
          %v3349 = vmul.f32 %v2741, %v3285
          %v3350 = vmul.f32 %v2742, %v3286
          %v3351 = vmul.f32 %v2743, %v3287
          %v3352 = vmul.f32 %v2744, %v3288
          %v3353 = vmul.f32 %v2745, %v3289
          %v3354 = vmul.f32 %v2746, %v3290
          %v3355 = vmul.f32 %v2747, %v3291
          %v3356 = vmul.f32 %v2748, %v3292
          %v3357 = vmul.f32 %v2749, %v3293
          %v3358 = vmul.f32 %v2750, %v3294
          %v3359 = vmul.f32 %v2751, %v3295
          %v3360 = vmul.f32 %v2752, %v3296
          %v3361 = vmul.f32 %v2753, %v3297
          %v3362 = vmul.f32 %v2754, %v3298
          %v3363 = vmul.f32 %v2755, %v3299
          %v3364 = vmul.f32 %v2756, %v3300
          %v3365 = vmul.f32 %v2757, %v3301
          %v3366 = vmul.f32 %v2758, %v3302
          %v3367 = vmul.f32 %v2759, %v3303
          %v3368 = vmul.f32 %v2760, %v3304
          %v3369 = vsub.f32 %v3305, %v3337
          %v3370 = vsub.f32 %v3306, %v3338
          %v3371 = vsub.f32 %v3307, %v3339
          %v3372 = vsub.f32 %v3308, %v3340
          %v3373 = vsub.f32 %v3309, %v3341
          %v3374 = vsub.f32 %v3310, %v3342
          %v3375 = vsub.f32 %v3311, %v3343
          %v3376 = vsub.f32 %v3312, %v3344
          %v3377 = vsub.f32 %v3313, %v3345
          %v3378 = vsub.f32 %v3314, %v3346
          %v3379 = vsub.f32 %v3315, %v3347
          %v3380 = vsub.f32 %v3316, %v3348
          %v3381 = vsub.f32 %v3317, %v3349
          %v3382 = vsub.f32 %v3318, %v3350
          %v3383 = vsub.f32 %v3319, %v3351
          %v3384 = vsub.f32 %v3320, %v3352
          %v3385 = vsub.f32 %v3321, %v3353
          %v3386 = vsub.f32 %v3322, %v3354
          %v3387 = vsub.f32 %v3323, %v3355
          %v3388 = vsub.f32 %v3324, %v3356
          %v3389 = vsub.f32 %v3325, %v3357
          %v3390 = vsub.f32 %v3326, %v3358
          %v3391 = vsub.f32 %v3327, %v3359
          %v3392 = vsub.f32 %v3328, %v3360
          %v3393 = vsub.f32 %v3329, %v3361
          %v3394 = vsub.f32 %v3330, %v3362
          %v3395 = vsub.f32 %v3331, %v3363
          %v3396 = vsub.f32 %v3332, %v3364
          %v3397 = vsub.f32 %v3333, %v3365
          %v3398 = vsub.f32 %v3334, %v3366
          %v3399 = vsub.f32 %v3335, %v3367
          %v3400 = vsub.f32 %v3336, %v3368
          %3402 = vset.pattern.permute.xlu0 0
          %3403 = vperm.xlu0 %3402, %v3273
          %v3404 = vpop.permute.xlu0 %3403
          %3407 = vset.pattern.permute.xlu0 0
          %3408 = vperm.xlu0 %3407, %v3274
          %v3409 = vpop.permute.xlu0 %3408
          %3412 = vset.pattern.permute.xlu0 0
          %3413 = vperm.xlu0 %3412, %v3275
          %v3414 = vpop.permute.xlu0 %3413
          %3417 = vset.pattern.permute.xlu0 0
          %3418 = vperm.xlu0 %3417, %v3276
          %v3419 = vpop.permute.xlu0 %3418
          %3422 = vset.pattern.permute.xlu0 0
          %3423 = vperm.xlu0 %3422, %v3277
          %v3424 = vpop.permute.xlu0 %3423
          %3427 = vset.pattern.permute.xlu0 0
          %3428 = vperm.xlu0 %3427, %v3278
          %v3429 = vpop.permute.xlu0 %3428
          %3432 = vset.pattern.permute.xlu0 0
          %3433 = vperm.xlu0 %3432, %v3279
          %v3434 = vpop.permute.xlu0 %3433
          %3437 = vset.pattern.permute.xlu0 0
          %3438 = vperm.xlu0 %3437, %v3280
          %v3439 = vpop.permute.xlu0 %3438
          %3442 = vset.pattern.permute.xlu0 0
          %3443 = vperm.xlu0 %3442, %v3281
          %v3444 = vpop.permute.xlu0 %3443
          %3447 = vset.pattern.permute.xlu0 0
          %3448 = vperm.xlu0 %3447, %v3282
          %v3449 = vpop.permute.xlu0 %3448
          %3452 = vset.pattern.permute.xlu0 0
          %3453 = vperm.xlu0 %3452, %v3283
          %v3454 = vpop.permute.xlu0 %3453
          %3457 = vset.pattern.permute.xlu0 0
          %3458 = vperm.xlu0 %3457, %v3284
          %v3459 = vpop.permute.xlu0 %3458
          %3462 = vset.pattern.permute.xlu0 0
          %3463 = vperm.xlu0 %3462, %v3285
          %v3464 = vpop.permute.xlu0 %3463
          %3467 = vset.pattern.permute.xlu0 0
          %3468 = vperm.xlu0 %3467, %v3286
          %v3469 = vpop.permute.xlu0 %3468
          %3472 = vset.pattern.permute.xlu0 0
          %3473 = vperm.xlu0 %3472, %v3287
          %v3474 = vpop.permute.xlu0 %3473
          %3477 = vset.pattern.permute.xlu0 0
          %3478 = vperm.xlu0 %3477, %v3288
          %v3479 = vpop.permute.xlu0 %3478
          %3482 = vset.pattern.permute.xlu0 0
          %3483 = vperm.xlu0 %3482, %v3289
          %v3484 = vpop.permute.xlu0 %3483
          %3487 = vset.pattern.permute.xlu0 0
          %3488 = vperm.xlu0 %3487, %v3290
          %v3489 = vpop.permute.xlu0 %3488
          %3492 = vset.pattern.permute.xlu0 0
          %3493 = vperm.xlu0 %3492, %v3291
          %v3494 = vpop.permute.xlu0 %3493
          %3497 = vset.pattern.permute.xlu0 0
          %3498 = vperm.xlu0 %3497, %v3292
          %v3499 = vpop.permute.xlu0 %3498
          %3502 = vset.pattern.permute.xlu0 0
          %3503 = vperm.xlu0 %3502, %v3293
          %v3504 = vpop.permute.xlu0 %3503
          %3507 = vset.pattern.permute.xlu0 0
          %3508 = vperm.xlu0 %3507, %v3294
          %v3509 = vpop.permute.xlu0 %3508
          %3512 = vset.pattern.permute.xlu0 0
          %3513 = vperm.xlu0 %3512, %v3295
          %v3514 = vpop.permute.xlu0 %3513
          %3517 = vset.pattern.permute.xlu0 0
          %3518 = vperm.xlu0 %3517, %v3296
          %v3519 = vpop.permute.xlu0 %3518
          %3522 = vset.pattern.permute.xlu0 0
          %3523 = vperm.xlu0 %3522, %v3297
          %v3524 = vpop.permute.xlu0 %3523
          %3527 = vset.pattern.permute.xlu0 0
          %3528 = vperm.xlu0 %3527, %v3298
          %v3529 = vpop.permute.xlu0 %3528
          %3532 = vset.pattern.permute.xlu0 0
          %3533 = vperm.xlu0 %3532, %v3299
          %v3534 = vpop.permute.xlu0 %3533
          %3537 = vset.pattern.permute.xlu0 0
          %3538 = vperm.xlu0 %3537, %v3300
          %v3539 = vpop.permute.xlu0 %3538
          %3542 = vset.pattern.permute.xlu0 0
          %3543 = vperm.xlu0 %3542, %v3301
          %v3544 = vpop.permute.xlu0 %3543
          %3547 = vset.pattern.permute.xlu0 0
          %3548 = vperm.xlu0 %3547, %v3302
          %v3549 = vpop.permute.xlu0 %3548
          %3552 = vset.pattern.permute.xlu0 0
          %3553 = vperm.xlu0 %3552, %v3303
          %v3554 = vpop.permute.xlu0 %3553
          %3557 = vset.pattern.permute.xlu0 0
          %3558 = vperm.xlu0 %3557, %v3304
          %v3559 = vpop.permute.xlu0 %3558
          %v3561 = vmul.f32 %v2345, %v3404
          %v3562 = vmul.f32 %v2346, %v3404
          %v3563 = vmul.f32 %v2347, %v3409
          %v3564 = vmul.f32 %v2348, %v3409
          %v3565 = vmul.f32 %v2349, %v3414
          %v3566 = vmul.f32 %v2350, %v3414
          %v3567 = vmul.f32 %v2351, %v3419
          %v3568 = vmul.f32 %v2352, %v3419
          %v3569 = vmul.f32 %v2353, %v3424
          %v3570 = vmul.f32 %v2354, %v3424
          %v3571 = vmul.f32 %v2355, %v3429
          %v3572 = vmul.f32 %v2356, %v3429
          %v3573 = vmul.f32 %v2357, %v3434
          %v3574 = vmul.f32 %v2358, %v3434
          %v3575 = vmul.f32 %v2359, %v3439
          %v3576 = vmul.f32 %v2360, %v3439
          %v3577 = vmul.f32 %v2361, %v3444
          %v3578 = vmul.f32 %v2362, %v3444
          %v3579 = vmul.f32 %v2363, %v3449
          %v3580 = vmul.f32 %v2364, %v3449
          %v3581 = vmul.f32 %v2365, %v3454
          %v3582 = vmul.f32 %v2366, %v3454
          %v3583 = vmul.f32 %v2367, %v3459
          %v3584 = vmul.f32 %v2368, %v3459
          %v3585 = vmul.f32 %v2369, %v3464
          %v3586 = vmul.f32 %v2370, %v3464
          %v3587 = vmul.f32 %v2371, %v3469
          %v3588 = vmul.f32 %v2372, %v3469
          %v3589 = vmul.f32 %v2373, %v3474
          %v3590 = vmul.f32 %v2374, %v3474
          %v3591 = vmul.f32 %v2375, %v3479
          %v3592 = vmul.f32 %v2376, %v3479
          %v3593 = vmul.f32 %v2377, %v3484
          %v3594 = vmul.f32 %v2378, %v3484
          %v3595 = vmul.f32 %v2379, %v3489
          %v3596 = vmul.f32 %v2380, %v3489
          %v3597 = vmul.f32 %v2381, %v3494
          %v3598 = vmul.f32 %v2382, %v3494
          %v3599 = vmul.f32 %v2383, %v3499
          %v3600 = vmul.f32 %v2384, %v3499
          %v3601 = vmul.f32 %v2385, %v3504
          %v3602 = vmul.f32 %v2386, %v3504
          %v3603 = vmul.f32 %v2387, %v3509
          %v3604 = vmul.f32 %v2388, %v3509
          %v3605 = vmul.f32 %v2389, %v3514
          %v3606 = vmul.f32 %v2390, %v3514
          %v3607 = vmul.f32 %v2391, %v3519
          %v3608 = vmul.f32 %v2392, %v3519
          %v3609 = vmul.f32 %v2393, %v3524
          %v3610 = vmul.f32 %v2394, %v3524
          %v3611 = vmul.f32 %v2395, %v3529
          %v3612 = vmul.f32 %v2396, %v3529
          %v3613 = vmul.f32 %v2397, %v3534
          %v3614 = vmul.f32 %v2398, %v3534
          %v3615 = vmul.f32 %v2399, %v3539
          %v3616 = vmul.f32 %v2400, %v3539
          %v3617 = vmul.f32 %v2401, %v3544
          %v3618 = vmul.f32 %v2402, %v3544
          %v3619 = vmul.f32 %v2403, %v3549
          %v3620 = vmul.f32 %v2404, %v3549
          %v3621 = vmul.f32 %v2405, %v3554
          %v3622 = vmul.f32 %v2406, %v3554
          %v3623 = vmul.f32 %v2407, %v3559
          %v3624 = vmul.f32 %v2408, %v3559
          %3626 = vset.pattern.permute.xlu0 0
          %3627 = vperm.xlu0 %3626, %v3369
          %v3628 = vpop.permute.xlu0 %3627
          %3631 = vset.pattern.permute.xlu0 0
          %3632 = vperm.xlu0 %3631, %v3370
          %v3633 = vpop.permute.xlu0 %3632
          %3636 = vset.pattern.permute.xlu0 0
          %3637 = vperm.xlu0 %3636, %v3371
          %v3638 = vpop.permute.xlu0 %3637
          %3641 = vset.pattern.permute.xlu0 0
          %3642 = vperm.xlu0 %3641, %v3372
          %v3643 = vpop.permute.xlu0 %3642
          %3646 = vset.pattern.permute.xlu0 0
          %3647 = vperm.xlu0 %3646, %v3373
          %v3648 = vpop.permute.xlu0 %3647
          %3651 = vset.pattern.permute.xlu0 0
          %3652 = vperm.xlu0 %3651, %v3374
          %v3653 = vpop.permute.xlu0 %3652
          %3656 = vset.pattern.permute.xlu0 0
          %3657 = vperm.xlu0 %3656, %v3375
          %v3658 = vpop.permute.xlu0 %3657
          %3661 = vset.pattern.permute.xlu0 0
          %3662 = vperm.xlu0 %3661, %v3376
          %v3663 = vpop.permute.xlu0 %3662
          %3666 = vset.pattern.permute.xlu0 0
          %3667 = vperm.xlu0 %3666, %v3377
          %v3668 = vpop.permute.xlu0 %3667
          %3671 = vset.pattern.permute.xlu0 0
          %3672 = vperm.xlu0 %3671, %v3378
          %v3673 = vpop.permute.xlu0 %3672
          %3676 = vset.pattern.permute.xlu0 0
          %3677 = vperm.xlu0 %3676, %v3379
          %v3678 = vpop.permute.xlu0 %3677
          %3681 = vset.pattern.permute.xlu0 0
          %3682 = vperm.xlu0 %3681, %v3380
          %v3683 = vpop.permute.xlu0 %3682
          %3686 = vset.pattern.permute.xlu0 0
          %3687 = vperm.xlu0 %3686, %v3381
          %v3688 = vpop.permute.xlu0 %3687
          %3691 = vset.pattern.permute.xlu0 0
          %3692 = vperm.xlu0 %3691, %v3382
          %v3693 = vpop.permute.xlu0 %3692
          %3696 = vset.pattern.permute.xlu0 0
          %3697 = vperm.xlu0 %3696, %v3383
          %v3698 = vpop.permute.xlu0 %3697
          %3701 = vset.pattern.permute.xlu0 0
          %3702 = vperm.xlu0 %3701, %v3384
          %v3703 = vpop.permute.xlu0 %3702
          %3706 = vset.pattern.permute.xlu0 0
          %3707 = vperm.xlu0 %3706, %v3385
          %v3708 = vpop.permute.xlu0 %3707
          %3711 = vset.pattern.permute.xlu0 0
          %3712 = vperm.xlu0 %3711, %v3386
          %v3713 = vpop.permute.xlu0 %3712
          %3716 = vset.pattern.permute.xlu0 0
          %3717 = vperm.xlu0 %3716, %v3387
          %v3718 = vpop.permute.xlu0 %3717
          %3721 = vset.pattern.permute.xlu0 0
          %3722 = vperm.xlu0 %3721, %v3388
          %v3723 = vpop.permute.xlu0 %3722
          %3726 = vset.pattern.permute.xlu0 0
          %3727 = vperm.xlu0 %3726, %v3389
          %v3728 = vpop.permute.xlu0 %3727
          %3731 = vset.pattern.permute.xlu0 0
          %3732 = vperm.xlu0 %3731, %v3390
          %v3733 = vpop.permute.xlu0 %3732
          %3736 = vset.pattern.permute.xlu0 0
          %3737 = vperm.xlu0 %3736, %v3391
          %v3738 = vpop.permute.xlu0 %3737
          %3741 = vset.pattern.permute.xlu0 0
          %3742 = vperm.xlu0 %3741, %v3392
          %v3743 = vpop.permute.xlu0 %3742
          %3746 = vset.pattern.permute.xlu0 0
          %3747 = vperm.xlu0 %3746, %v3393
          %v3748 = vpop.permute.xlu0 %3747
          %3751 = vset.pattern.permute.xlu0 0
          %3752 = vperm.xlu0 %3751, %v3394
          %v3753 = vpop.permute.xlu0 %3752
          %3756 = vset.pattern.permute.xlu0 0
          %3757 = vperm.xlu0 %3756, %v3395
          %v3758 = vpop.permute.xlu0 %3757
          %3761 = vset.pattern.permute.xlu0 0
          %3762 = vperm.xlu0 %3761, %v3396
          %v3763 = vpop.permute.xlu0 %3762
          %3766 = vset.pattern.permute.xlu0 0
          %3767 = vperm.xlu0 %3766, %v3397
          %v3768 = vpop.permute.xlu0 %3767
          %3771 = vset.pattern.permute.xlu0 0
          %3772 = vperm.xlu0 %3771, %v3398
          %v3773 = vpop.permute.xlu0 %3772
          %3776 = vset.pattern.permute.xlu0 0
          %3777 = vperm.xlu0 %3776, %v3399
          %v3778 = vpop.permute.xlu0 %3777
          %3781 = vset.pattern.permute.xlu0 0
          %3782 = vperm.xlu0 %3781, %v3400
          %v3783 = vpop.permute.xlu0 %3782
          %v3785 = vadd.f32 %v3561, %v3628
          %v3786 = vadd.f32 %v3562, %v3628
          %v3787 = vadd.f32 %v3563, %v3633
          %v3788 = vadd.f32 %v3564, %v3633
          %v3789 = vadd.f32 %v3565, %v3638
          %v3790 = vadd.f32 %v3566, %v3638
          %v3791 = vadd.f32 %v3567, %v3643
          %v3792 = vadd.f32 %v3568, %v3643
          %v3793 = vadd.f32 %v3569, %v3648
          %v3794 = vadd.f32 %v3570, %v3648
          %v3795 = vadd.f32 %v3571, %v3653
          %v3796 = vadd.f32 %v3572, %v3653
          %v3797 = vadd.f32 %v3573, %v3658
          %v3798 = vadd.f32 %v3574, %v3658
          %v3799 = vadd.f32 %v3575, %v3663
          %v3800 = vadd.f32 %v3576, %v3663
          %v3801 = vadd.f32 %v3577, %v3668
          %v3802 = vadd.f32 %v3578, %v3668
          %v3803 = vadd.f32 %v3579, %v3673
          %v3804 = vadd.f32 %v3580, %v3673
          %v3805 = vadd.f32 %v3581, %v3678
          %v3806 = vadd.f32 %v3582, %v3678
          %v3807 = vadd.f32 %v3583, %v3683
          %v3808 = vadd.f32 %v3584, %v3683
          %v3809 = vadd.f32 %v3585, %v3688
          %v3810 = vadd.f32 %v3586, %v3688
          %v3811 = vadd.f32 %v3587, %v3693
          %v3812 = vadd.f32 %v3588, %v3693
          %v3813 = vadd.f32 %v3589, %v3698
          %v3814 = vadd.f32 %v3590, %v3698
          %v3815 = vadd.f32 %v3591, %v3703
          %v3816 = vadd.f32 %v3592, %v3703
          %v3817 = vadd.f32 %v3593, %v3708
          %v3818 = vadd.f32 %v3594, %v3708
          %v3819 = vadd.f32 %v3595, %v3713
          %v3820 = vadd.f32 %v3596, %v3713
          %v3821 = vadd.f32 %v3597, %v3718
          %v3822 = vadd.f32 %v3598, %v3718
          %v3823 = vadd.f32 %v3599, %v3723
          %v3824 = vadd.f32 %v3600, %v3723
          %v3825 = vadd.f32 %v3601, %v3728
          %v3826 = vadd.f32 %v3602, %v3728
          %v3827 = vadd.f32 %v3603, %v3733
          %v3828 = vadd.f32 %v3604, %v3733
          %v3829 = vadd.f32 %v3605, %v3738
          %v3830 = vadd.f32 %v3606, %v3738
          %v3831 = vadd.f32 %v3607, %v3743
          %v3832 = vadd.f32 %v3608, %v3743
          %v3833 = vadd.f32 %v3609, %v3748
          %v3834 = vadd.f32 %v3610, %v3748
          %v3835 = vadd.f32 %v3611, %v3753
          %v3836 = vadd.f32 %v3612, %v3753
          %v3837 = vadd.f32 %v3613, %v3758
          %v3838 = vadd.f32 %v3614, %v3758
          %v3839 = vadd.f32 %v3615, %v3763
          %v3840 = vadd.f32 %v3616, %v3763
          %v3841 = vadd.f32 %v3617, %v3768
          %v3842 = vadd.f32 %v3618, %v3768
          %v3843 = vadd.f32 %v3619, %v3773
          %v3844 = vadd.f32 %v3620, %v3773
          %v3845 = vadd.f32 %v3621, %v3778
          %v3846 = vadd.f32 %v3622, %v3778
          %v3847 = vadd.f32 %v3623, %v3783
          %v3848 = vadd.f32 %v3624, %v3783
          %3849 = vst [vmem:[%s5] sm:$0xff] %v3785
          %3850 = vst.msk [vmem:[%s5 + $0x8] sm:$0xff] %vm2277, %v3786
          %3851 = vst [vmem:[%s5 + $0x10] sm:$0xff] %v3787
          %3852 = vst.msk [vmem:[%s5 + $0x18] sm:$0xff] %vm2277, %v3788
          %3853 = vst [vmem:[%s5 + $0x20] sm:$0xff] %v3789
          %3854 = vst.msk [vmem:[%s5 + $0x28] sm:$0xff] %vm2277, %v3790
          %3855 = vst [vmem:[%s5 + $0x30] sm:$0xff] %v3791
          %3856 = vst.msk [vmem:[%s5 + $0x38] sm:$0xff] %vm2277, %v3792
          %3857 = vst [vmem:[%s5 + $0x40] sm:$0xff] %v3793
          %3858 = vst.msk [vmem:[%s5 + $0x48] sm:$0xff] %vm2277, %v3794
          %3859 = vst [vmem:[%s5 + $0x50] sm:$0xff] %v3795
          %3860 = vst.msk [vmem:[%s5 + $0x58] sm:$0xff] %vm2277, %v3796
          %3861 = vst [vmem:[%s5 + $0x60] sm:$0xff] %v3797
          %3862 = vst.msk [vmem:[%s5 + $0x68] sm:$0xff] %vm2277, %v3798
          %3863 = vst [vmem:[%s5 + $0x70] sm:$0xff] %v3799
          %3864 = vst.msk [vmem:[%s5 + $0x78] sm:$0xff] %vm2277, %v3800
          %3865 = vst [vmem:[%s5 + $0x80] sm:$0xff] %v3801
          %3866 = vst.msk [vmem:[%s5 + $0x88] sm:$0xff] %vm2277, %v3802
          %3867 = vst [vmem:[%s5 + $0x90] sm:$0xff] %v3803
          %3868 = vst.msk [vmem:[%s5 + $0x98] sm:$0xff] %vm2277, %v3804
          %3869 = vst [vmem:[%s5 + $0xa0] sm:$0xff] %v3805
          %3870 = vst.msk [vmem:[%s5 + $0xa8] sm:$0xff] %vm2277, %v3806
          %3871 = vst [vmem:[%s5 + $0xb0] sm:$0xff] %v3807
          %3872 = vst.msk [vmem:[%s5 + $0xb8] sm:$0xff] %vm2277, %v3808
          %3873 = vst [vmem:[%s5 + $0xc0] sm:$0xff] %v3809
          %3874 = vst.msk [vmem:[%s5 + $0xc8] sm:$0xff] %vm2277, %v3810
          %3875 = vst [vmem:[%s5 + $0xd0] sm:$0xff] %v3811
          %3876 = vst.msk [vmem:[%s5 + $0xd8] sm:$0xff] %vm2277, %v3812
          %3877 = vst [vmem:[%s5 + $0xe0] sm:$0xff] %v3813
          %3878 = vst.msk [vmem:[%s5 + $0xe8] sm:$0xff] %vm2277, %v3814
          %3879 = vst [vmem:[%s5 + $0xf0] sm:$0xff] %v3815
          %3880 = vst.msk [vmem:[%s5 + $0xf8] sm:$0xff] %vm2277, %v3816
          %3881 = vst [vmem:[%s5 + $0x100] sm:$0xff] %v3817
          %3882 = vst.msk [vmem:[%s5 + $0x108] sm:$0xff] %vm2277, %v3818
          %3883 = vst [vmem:[%s5 + $0x110] sm:$0xff] %v3819
          %3884 = vst.msk [vmem:[%s5 + $0x118] sm:$0xff] %vm2277, %v3820
          %3885 = vst [vmem:[%s5 + $0x120] sm:$0xff] %v3821
          %3886 = vst.msk [vmem:[%s5 + $0x128] sm:$0xff] %vm2277, %v3822
          %3887 = vst [vmem:[%s5 + $0x130] sm:$0xff] %v3823
          %3888 = vst.msk [vmem:[%s5 + $0x138] sm:$0xff] %vm2277, %v3824
          %3889 = vst [vmem:[%s5 + $0x140] sm:$0xff] %v3825
          %3890 = vst.msk [vmem:[%s5 + $0x148] sm:$0xff] %vm2277, %v3826
          %3891 = vst [vmem:[%s5 + $0x150] sm:$0xff] %v3827
          %3892 = vst.msk [vmem:[%s5 + $0x158] sm:$0xff] %vm2277, %v3828
          %3893 = vst [vmem:[%s5 + $0x160] sm:$0xff] %v3829
          %3894 = vst.msk [vmem:[%s5 + $0x168] sm:$0xff] %vm2277, %v3830
          %3895 = vst [vmem:[%s5 + $0x170] sm:$0xff] %v3831
          %3896 = vst.msk [vmem:[%s5 + $0x178] sm:$0xff] %vm2277, %v3832
          %3897 = vst [vmem:[%s5 + $0x180] sm:$0xff] %v3833
          %3898 = vst.msk [vmem:[%s5 + $0x188] sm:$0xff] %vm2277, %v3834
          %3899 = vst [vmem:[%s5 + $0x190] sm:$0xff] %v3835
          %3900 = vst.msk [vmem:[%s5 + $0x198] sm:$0xff] %vm2277, %v3836
          %3901 = vst [vmem:[%s5 + $0x1a0] sm:$0xff] %v3837
          %3902 = vst.msk [vmem:[%s5 + $0x1a8] sm:$0xff] %vm2277, %v3838
          %3903 = vst [vmem:[%s5 + $0x1b0] sm:$0xff] %v3839
          %3904 = vst.msk [vmem:[%s5 + $0x1b8] sm:$0xff] %vm2277, %v3840
          %3905 = vst [vmem:[%s5 + $0x1c0] sm:$0xff] %v3841
          %3906 = vst.msk [vmem:[%s5 + $0x1c8] sm:$0xff] %vm2277, %v3842
          %3907 = vst [vmem:[%s5 + $0x1d0] sm:$0xff] %v3843
          %3908 = vst.msk [vmem:[%s5 + $0x1d8] sm:$0xff] %vm2277, %v3844
          %3909 = vst [vmem:[%s5 + $0x1e0] sm:$0xff] %v3845
          %3910 = vst.msk [vmem:[%s5 + $0x1e8] sm:$0xff] %vm2277, %v3846
          %3911 = vst [vmem:[%s5 + $0x1f0] sm:$0xff] %v3847
          %3912 = vst.msk [vmem:[%s5 + $0x1f8] sm:$0xff] %vm2277, %v3848
        $region71: #{tpu_custom_call.1} parent=58 // pred_fallthru
          _
        // Predicated region
        $region72: #{tpu_custom_call.1} parent=58 // pred_check
          %p3913 = pneg %p149
        $region73: #{tpu_custom_call.1} parent=58 // pred_check_branch
          %3915 = sbr.rel (%p3913) target = $region75
        $region74: #{tpu_custom_call.1} parent=58 // pred_region
          _
        $region75: #{tpu_custom_call.1} parent=58 // pred_fallthru
          _
        // Predicated region
        $region76: #{tpu_custom_call.1} parent=58 // pred_check
          %p3916 = pneg %p149
        $region77: #{tpu_custom_call.1} parent=58 // pred_check_branch
          %3918 = sbr.rel (%p3916) target = $region79
        $region78: #{tpu_custom_call.1} parent=58 // pred_region
          _
        $region79: #{tpu_custom_call.1} parent=58 // pred_fallthru
          _
      $region59: #{tpu_custom_call.1} parent=5 // pred_fallthru
        _
      %p3919 = scmp.le.s32.totalorder 2, %s11
      // Predicated region
      $region80: #{tpu_custom_call.1} parent=5 // pred_check
        %p3920 = pneg %p3919
      $region81: #{tpu_custom_call.1} parent=5 // pred_check_branch
        %3922 = sbr.rel (%p3920) target = $region83
      $region82: #{tpu_custom_call.1} parent=5 // pred_region
        %s3923 = ssub.s32 %s11, 2
      $region83: #{tpu_custom_call.1} parent=5 // pred_fallthru
        _
    $region6: #{tpu_custom_call.1} parent=1 // loop_footer
      %s15 = sadd.s32 1, %s11
    $region7: #{tpu_custom_call.1} parent=1 // loop_footer_branch
      %10 = sbr.rel target = $region3
    $region8: #{tpu_custom_call.1} parent=1 // loop_exit
      _

</llo_original>
